<compile_context>
chip_gen: v7x
topology: tpu7x:2x2x1
jax: 0.10.0
libtpu: 0.0.40
codegen_flags: <defaults>
</compile_context>

<pallas_src>
import jax
import jax.numpy as jnp
from jax import lax
from jax.experimental import pallas as pl
from jax.experimental.pallas import tpu as pltpu


# --------------------------------------------------------------------------------------
# In-kernel helpers
# --------------------------------------------------------------------------------------
def _recip(x):
    # EUP reciprocal -> keeps the VALU slots free in these tiny kernels.
    return pl.reciprocal(x, approx=True)


def _sigmoid(x):
    return _recip(1.0 + jnp.exp(-x))


def _softmax_lastdim(x):
    x = x - jnp.max(x, axis=-1, keepdims=True)
    e = jnp.exp(x)
    return e * _recip(jnp.sum(e, axis=-1, keepdims=True))


# --------------------------------------------------------------------------------------
# Fused GAT stack kernel:  grid = (batch, Syn_Layer)
# --------------------------------------------------------------------------------------
def gat_stack_kernel(x_in_ref, ap_ref, edge_ref, adj_ref, am_ref,
                     wmap_ref, wsel_ref, wto_ref, bto_ref,
                     wal_ref, bal_ref, wawx_ref, wawh_ref, baw_ref,
                     wz_ref, uz_ref, bz_ref, wr_ref, ur_ref, br_ref,
                     wg_ref, bwg_ref, ug_ref, bug_ref,
                     x2_ref,
                     x_state, he_scr):
    n_heads = he_scr.shape[0]

    # Layer 0: seed the carried state with this batch element's text_out block.
    @pl.when(pl.program_id(1) == 0)
    def _():
        x_state[...] = x_in_ref[0]

    x = x_state[...]                          # (S, H)  current layer input
    ap = ap_ref[0]                            # (S, 1)  sigmoid(position_to_weight)
    x1 = x * ap                               # aspect-position gate (fused in-kernel)
    adj = adj_ref[0]                          # (S, S)
    am = am_ref[0]                            # (S, 1)  aspect mask
    em = edge_ref[0]                          # (S, S*E)

    # ---- Trans_Gat_Layer, one pass per head (h_edge kept in VMEM scratch) ----
    # Block-diag edge weights keep the (S, S*E) operand lane-dense and avoid a
    # (S*S, 1) -> (S, S) in-kernel relayout; at S=8 the extra MXU/DMA is negligible.
    # TODO(synk): for large S switch to a per-pair (S*S, E) contraction (O(S^2) weight blowup).
    for h in range(n_heads):
        m = jnp.maximum(jnp.dot(em, wmap_ref[0, h],
                                preferred_element_type=jnp.float32), 0.0)      # relu(edge_mapping)
        ew = jnp.dot(m, wsel_ref[0, h], preferred_element_type=jnp.float32)    # (S, S)
        inv = _recip(jnp.abs(jnp.mean(ew, axis=-1, keepdims=True)) + 1e-10)
        ew = ew * inv
        att = jnp.where(adj != 0.0, ew, jnp.float32(-9e15))
        att = _softmax_lastdim(att)
        hv = jnp.dot(x1, wto_ref[0, h],
                     preferred_element_type=jnp.float32) + bto_ref[0, h]       # edge_to(input)
        he_scr[h] = jnp.maximum(jnp.dot(att, hv,
                                        preferred_element_type=jnp.float32), 0.0)

    # ---- Muti_GAT head aggregation ----
    he = he_scr[...]                                            # (n_heads, S, H)
    aspect_x = jnp.max(x1 * am, axis=0, keepdims=True)          # (1, H)   max-pool over seq
    aspect_h = jnp.max(he * am[None], axis=1)                   # (n_heads, H)
    aspect_h = jnp.tanh(jnp.dot(aspect_h, wal_ref[0],
                                preferred_element_type=jnp.float32) + bal_ref[0])
    w_x = jnp.dot(aspect_x, wawx_ref[0], preferred_element_type=jnp.float32)   # (1, 1)
    w_h = jnp.dot(aspect_h, wawh_ref[0], preferred_element_type=jnp.float32)   # (n_heads, 1)
    aw = jnp.maximum(w_h + w_x + baw_ref[0], 0.0)               # relu(aspect_weight)
    aw = aw - jnp.max(aw, axis=0, keepdims=True)                # softmax over heads
    e = jnp.exp(aw)
    aw = e * _recip(jnp.sum(e, axis=0, keepdims=True))
    h_prime = jnp.mean(he * aw[:, :, None], axis=0)             # (S, H)
    # TODO(synk): reference applies F.dropout(training=True); graph_dropout=0 -> identity.
    x2 = jnp.maximum(h_prime, 0.0)
    x2_ref[...] = x2[None]        # revisited over the layer axis; last layer's value survives

    # ---- GAT_GRU gate -> carried x for the next layer ----
    Z = _sigmoid(jnp.dot(x2, wz_ref[...], preferred_element_type=jnp.float32)
                 + jnp.dot(x1, uz_ref[...], preferred_element_type=jnp.float32)
                 + bz_ref[...])
    R = _sigmoid(jnp.dot(x2, wr_ref[...], preferred_element_type=jnp.float32)
                 + jnp.dot(x1, ur_ref[...], preferred_element_type=jnp.float32)
                 + br_ref[...])
    ux = jnp.dot(x1, ug_ref[...], preferred_element_type=jnp.float32) + bug_ref[...]
    hv = jnp.tanh(jnp.dot(x2, wg_ref[...], preferred_element_type=jnp.float32) + bwg_ref[...]
                  + jnp.dot(R * ux, ug_ref[...], preferred_element_type=jnp.float32)
                  + bug_ref[...])                   # reference genuinely applies U/bU twice
    # TODO(synk): GAT_GRU has a Dropout(0.3) on its output; identity at eval.
    x_state[...] = (1.0 - Z) * x2 + Z * hv


def gat_stack_pallas(text_out, ap, edge_sse, adj, am, stack, gru):
    B, S, H = text_out.shape
    L, n_heads, SE, SEH = stack['wmap'].shape

    bmap = lambda b, l: (b, 0, 0)
    lmap4 = lambda b, l: (l, 0, 0, 0)
    lmap3 = lambda b, l: (l, 0, 0)
    cmap2 = lambda b, l: (0, 0)

    in_specs = [
        pl.BlockSpec((1, S, H), bmap),                 # text_out (layer-0 seed)
        pl.BlockSpec((1, S, 1), bmap),                 # aspect_position gate
        pl.BlockSpec((1, S, SE), bmap),                # edge embeddings
        pl.BlockSpec((1, S, S), bmap),                 # adjacency
        pl.BlockSpec((1, S, 1), bmap),                 # aspect mask
        pl.BlockSpec((1, n_heads, SE, SEH), lmap4),    # edge_mapping (block-diag)
        pl.BlockSpec((1, n_heads, SEH, S), lmap4),     # edge_weight_liner (block-diag)
        pl.BlockSpec((1, n_heads, H, H), lmap4),       # edge_to.W
        pl.BlockSpec((1, n_heads, 1, H), lmap4),       # edge_to.b
        pl.BlockSpec((1, H, H), lmap3),                # aspect_liner.W
        pl.BlockSpec((1, 1, H), lmap3),                # aspect_liner.b
        pl.BlockSpec((1, H, 1), lmap3),                # aspect_weight.W (x half)
        pl.BlockSpec((1, H, 1), lmap3),                # aspect_weight.W (h half)
        pl.BlockSpec((1, 1, 1), lmap3),                # aspect_weight.b
        pl.BlockSpec((H, 1), cmap2),                   # GRU W_z
        pl.BlockSpec((H, 1), cmap2),                   # GRU U_z
        pl.BlockSpec((1, 1), cmap2),                   # GRU b_z + b_uz
        pl.BlockSpec((H, 1), cmap2),                   # GRU W_r
        pl.BlockSpec((H, 1), cmap2),                   # GRU U_r
        pl.BlockSpec((1, 1), cmap2),                   # GRU b_r + b_ur
        pl.BlockSpec((H, H), cmap2),                   # GRU W
        pl.BlockSpec((1, H), cmap2),                   # GRU b_W
        pl.BlockSpec((H, H), cmap2),                   # GRU U
        pl.BlockSpec((1, H), cmap2),                   # GRU b_U
    ]
    return pl.pallas_call(
        gat_stack_kernel,
        out_shape=jax.ShapeDtypeStruct((B, S, H), jnp.float32),
        grid=(B, L),
        in_specs=in_specs,
        out_specs=pl.BlockSpec((1, S, H), bmap),
        scratch_shapes=[pltpu.VMEM((S, H), jnp.float32),            # carried x
                        pltpu.VMEM((n_heads, S, H), jnp.float32)],  # per-head h_edge
        compiler_params=pltpu.CompilerParams(
            dimension_semantics=("parallel", "arbitrary")),
    )(text_out, ap, edge_sse, adj, am,
      stack['wmap'], stack['wsel'], stack['wto'], stack['bto'],
      stack['wal'], stack['bal'], stack['wawx'], stack['wawh'], stack['baw'],
      gru['wz'], gru['uz'], gru['bz1'], gru['wr'], gru['ur'], gru['br1'],
      gru['w'], gru['bw'], gru['u'], gru['bu'])


# --------------------------------------------------------------------------------------
# Readout kernel: single grid step over the whole batch, lane-padded logits
# --------------------------------------------------------------------------------------
def readout_kernel(to_ref, xf_ref, am_ref, w12_ref, w3_ref, b_ref, out_ref, alpha_ref):
    B = to_ref.shape[0]
    for b in range(B):
        to = to_ref[b]                                 # (S, H) text_out
        xf = xf_ref[b]                                 # (S, H) x_finaly
        am = am_ref[b]                                 # (S, 1)

        gmp = jnp.max(xf * am, axis=0, keepdims=True)                              # (1, H)
        alpha_mat = lax.dot_general(gmp, to, (((1,), (1,)), ((), ())),
                                    preferred_element_type=jnp.float32)            # (1, S)
        alpha_att = _softmax_lastdim(alpha_mat)

        amt = lax.dot_general(to * am, to, (((1,), (1,)), ((), ())),
                              preferred_element_type=jnp.float32)                  # (S, S)
        alpha_text = _softmax_lastdim(jnp.sum(amt, axis=0, keepdims=True))         # (1, S)
        a3 = jnp.dot(alpha_text, to, preferred_element_type=jnp.float32)           # (1, H)

        # fnout = cat(before_aspect, graph_max_pool, a3); before_aspect == graph_max_pool,
        # so fc3(fnout) = gmp @ (W1 + W2) + a3 @ W3 + b  (W1+W2 pre-added in the wrapper).
        out = (jnp.dot(gmp, w12_ref[...], preferred_element_type=jnp.float32)
               + jnp.dot(a3, w3_ref[...], preferred_element_type=jnp.float32)
               + b_ref[...])                                                       # (1, Ppad)
        out_ref[b] = out
        alpha_ref[b] = alpha_att


def readout_pallas(text_out, x_finaly, am, wfc1, wfc2, wfc3, bfc):
    B, S, H = text_out.shape
    P = wfc1.shape[-1]
    PPAD = 128                      # lane-dense logits store; sliced back to P below
    w12 = jnp.zeros((H, PPAD), jnp.float32).at[:, :P].set(wfc1 + wfc2)
    w3 = jnp.zeros((H, PPAD), jnp.float32).at[:, :P].set(wfc3)
    bp = jnp.zeros((1, PPAD), jnp.float32).at[:, :P].set(bfc)

    full3 = lambda i: (0, 0, 0)
    full2 = lambda i: (0, 0)
    out, alpha = pl.pallas_call(
        readout_kernel,
        out_shape=(jax.ShapeDtypeStruct((B, 1, PPAD), jnp.float32),
                   jax.ShapeDtypeStruct((B, 1, S), jnp.float32)),
        grid=(1,),
        in_specs=[pl.BlockSpec((B, S, H), full3),
                  pl.BlockSpec((B, S, H), full3),
                  pl.BlockSpec((B, S, 1), full3),
                  pl.BlockSpec((H, PPAD), full2),
                  pl.BlockSpec((H, PPAD), full2),
                  pl.BlockSpec((1, PPAD), full2)],
        out_specs=(pl.BlockSpec((B, 1, PPAD), full3),
                   pl.BlockSpec((B, 1, S), full3)),
        compiler_params=pltpu.CompilerParams(dimension_semantics=("arbitrary",)),
    )(text_out, x_finaly, am, w12, w3, bp)
    return out[:, 0, :P], alpha[:, 0, :]


# --------------------------------------------------------------------------------------
# Plain-JAX glue (embeddings, BiLSTM)
# --------------------------------------------------------------------------------------
def _lstm_dir(wih, whh, bih, bhh, xs):
    # xs: (S, B, D) ; PyTorch gate order i, f, g, o
    B = xs.shape[1]
    Hh = whh.shape[1]

    def step(carry, x_t):
        h, c = carry
        gates = x_t @ wih.T + bih + h @ whh.T + bhh
        i, f, g, o = jnp.split(gates, 4, axis=-1)
        i = jax.nn.sigmoid(i); f = jax.nn.sigmoid(f)
        g = jnp.tanh(g); o = jax.nn.sigmoid(o)
        c = f * c + i * g
        h = o * jnp.tanh(c)
        return (h, c), h

    init = (jnp.zeros((B, Hh), xs.dtype), jnp.zeros((B, Hh), xs.dtype))
    _, hs = lax.scan(step, init, xs)
    return hs


def bilstm(p, x, text_len):
    # TODO(synk): sequential LSTM recurrence stays in lax.scan (no Pallas win at this size).
    B, S, _ = x.shape
    t = jnp.arange(S)
    h_f = jnp.swapaxes(_lstm_dir(p['wih_f'], p['whh_f'], p['bih_f'], p['bhh_f'],
                                 jnp.swapaxes(x, 0, 1)), 0, 1)
    # backward pass processed on length-reversed sequences (packed-sequence semantics)
    rev = jnp.clip(text_len[:, None] - 1 - t[None, :], 0, S - 1)
    idx = jnp.broadcast_to(rev[:, :, None], x.shape)
    x_rev = jnp.take_along_axis(x, idx, axis=1)
    h_b = jnp.swapaxes(_lstm_dir(p['wih_b'], p['whh_b'], p['bih_b'], p['bhh_b'],
                                 jnp.swapaxes(x_rev, 0, 1)), 0, 1)
    h_b = jnp.take_along_axis(h_b, jnp.broadcast_to(rev[:, :, None], h_b.shape), axis=1)
    out = jnp.concatenate([h_f, h_b], axis=-1)
    valid = (t[None, :] < text_len[:, None]).astype(out.dtype)[:, :, None]
    return out * valid                                  # pad positions zeroed (pad_packed)


# --------------------------------------------------------------------------------------
# Full forward (Relation_aware_Pos.forward)
# --------------------------------------------------------------------------------------
def relation_aware_pos_forward(params, text_indices, aspect_indices, left_indices,
                               unadj, dep_undir, position_syntax_indices):
    f32 = jnp.float32
    B, S = text_indices.shape

    text_len = jnp.sum((text_indices != 0).astype(jnp.int32), axis=-1)
    aspect_len = jnp.sum((aspect_indices != 0).astype(jnp.int32), axis=-1)
    left_len = jnp.sum((left_indices != 0).astype(jnp.int32), axis=-1)
    asp_begin = left_len
    asp_end = left_len + aspect_len - 1

    text = params['embed'][text_indices]
    pos_idx = position_syntax_indices.astype(jnp.int32)
    position = params['pos_embed'][pos_idx] * (pos_idx > 0).astype(f32)[..., None]
    embed_all = jnp.concatenate([text, position], axis=-1)
    text_out = bilstm(params['lstm'], embed_all, text_len)            # (B, S, H)

    aspect_postion = jax.nn.sigmoid(position @ params['pos2w_w'] + params['pos2w_b'])

    adj = unadj.astype(f32)
    dep_flat = dep_undir.reshape(B, -1).astype(jnp.int32)             # (B, S*S)
    edge = params['edge_embed'][dep_flat] * (dep_flat != 0).astype(f32)[..., None]
    E = edge.shape[-1]
    edge_sse = edge.reshape(B, S, S * E)                              # (B, S, S*E)

    j = jnp.arange(S)
    am = ((j[None, :] >= asp_begin[:, None]) &
          (j[None, :] <= asp_end[:, None])).astype(f32)[..., None]    # (B, S, 1) aspect mask

    g = params['gru']
    gru = dict(wz=g['wz'], uz=g['uz'], bz1=g['bz'] + g['buz'],
               wr=g['wr'], ur=g['ur'], br1=g['br'] + g['bur'],
               w=g['w'], bw=g['bw'], u=g['u'], bu=g['bu'])

    # Whole GAT stack (all Syn_Layer iterations, all heads, aspect gating + GRU) in one call.
    x_finaly = gat_stack_pallas(text_out, aspect_postion, edge_sse, adj, am,
                                params['gat_stack'], gru)

    # NOTE: the reference's hop-attention `a1` is dead code (never used downstream); omitted.
    output, alpha_attention = readout_pallas(text_out, x_finaly, am,
                                             params['wfc1'], params['wfc2'],
                                             params['wfc3'], params['bfc'])
    return output, alpha_attention


# --------------------------------------------------------------------------------------
# Deterministic parameter init
# --------------------------------------------------------------------------------------
def init_params(key, cfg):
    kit = iter(jax.random.split(key, 256))

    def nrm(shape, scale=0.1):
        return scale * jax.random.normal(next(kit), shape, dtype=jnp.float32)

    S, H = cfg['seq_len'], cfg['hidden_dim']
    E, EH, P = cfg['dependency_edge_dim'], cfg['edge_hidden_dim'], cfg['polarities_dim']
    Din, Hh = cfg['embed_dim'] + cfg['position_dim'], cfg['hidden_dim'] // 2
    L, NH = cfg['Syn_Layer'], cfg['n_heads']

    params = {}
    params['embed'] = nrm((cfg['vocab'], cfg['embed_dim']), 1.0).at[0].set(0.0)
    params['pos_embed'] = nrm((cfg['pos_vocab'], cfg['position_dim']), 1.0).at[0].set(0.0)
    params['edge_embed'] = nrm((cfg['dep_vocab'], E), 1.0).at[0].set(0.0)
    params['lstm'] = {
        'wih_f': nrm((4 * Hh, Din)), 'whh_f': nrm((4 * Hh, Hh)),
        'bih_f': nrm((4 * Hh,)), 'bhh_f': nrm((4 * Hh,)),
        'wih_b': nrm((4 * Hh, Din)), 'whh_b': nrm((4 * Hh, Hh)),
        'bih_b': nrm((4 * Hh,)), 'bhh_b': nrm((4 * Hh,)),
    }
    params['pos2w_w'] = nrm((cfg['position_dim'], 1))
    params['pos2w_b'] = nrm((1, 1))

    eye_s = jnp.eye(S, dtype=jnp.float32)
    wmaps, wsels, wtos, btos = [], [], [], []
    wals, bals, wawxs, wawhs, baws = [], [], [], [], []
    for _l in range(L):
        wm_h, ws_h, wt_h, bt_h = [], [], [], []
        for _h in range(NH):
            wmap = nrm((E, EH))            # edge_mapping.weight^T  (no bias)
            wwl = nrm((EH, 1))             # edge_weight_liner.weight^T (no bias)
            wm_h.append(jnp.kron(eye_s, wmap))   # (S*E, S*EH) block-diag
            ws_h.append(jnp.kron(eye_s, wwl))    # (S*EH, S)   block-diag
            wt_h.append(nrm((H, H)))
            bt_h.append(nrm((1, H)))
        wmaps.append(jnp.stack(wm_h)); wsels.append(jnp.stack(ws_h))
        wtos.append(jnp.stack(wt_h)); btos.append(jnp.stack(bt_h))
        waw = nrm((2 * H, 1))
        wals.append(nrm((H, H))); bals.append(nrm((1, H)))
        wawxs.append(waw[:H]); wawhs.append(waw[H:]); baws.append(nrm((1, 1)))
    params['gat_stack'] = {
        'wmap': jnp.stack(wmaps), 'wsel': jnp.stack(wsels),
        'wto': jnp.stack(wtos), 'bto': jnp.stack(btos),
        'wal': jnp.stack(wals), 'bal': jnp.stack(bals),
        'wawx': jnp.stack(wawxs), 'wawh': jnp.stack(wawhs), 'baw': jnp.stack(baws),
    }
    params['gru'] = {
        'wz': nrm((H, 1)), 'bz': nrm((1, 1)), 'uz': nrm((H, 1)), 'buz': nrm((1, 1)),
        'wr': nrm((H, 1)), 'br': nrm((1, 1)), 'ur': nrm((H, 1)), 'bur': nrm((1, 1)),
        'w': nrm((H, H)), 'bw': nrm((1, H)), 'u': nrm((H, H)), 'bu': nrm((1, H)),
    }
    wfc = nrm((3 * H, P))
    params['wfc1'], params['wfc2'], params['wfc3'] = wfc[:H], wfc[H:2 * H], wfc[2 * H:]
    params['bfc'] = nrm((1, P))
    return params


# --------------------------------------------------------------------------------------
if __name__ == "__main__":
    cfg = dict(seq_len=8, hidden_dim=32, embed_dim=16, position_dim=8,
               dependency_edge_dim=16, edge_hidden_dim=16,
               vocab=20, pos_vocab=12, dep_vocab=10,
               n_heads=2, Syn_Layer=2, polarities_dim=3)

    root = jax.random.PRNGKey(0)
    kp, k_adj, k_dep, k_pos = jax.random.split(root, 4)
    params = init_params(kp, cfg)

    B, S = 2, cfg['seq_len']
    text_indices = jnp.array([[3, 5, 7, 2, 9, 4, 0, 0],
                              [6, 2, 8, 3, 5, 7, 9, 4]], dtype=jnp.int32)
    aspect_indices = jnp.array([[7, 2, 0, 0, 0, 0, 0, 0],
                                [3, 0, 0, 0, 0, 0, 0, 0]], dtype=jnp.int32)
    left_indices = jnp.array([[3, 5, 0, 0, 0, 0, 0, 0],
                              [6, 2, 8, 0, 0, 0, 0, 0]], dtype=jnp.int32)

    a = (jax.random.uniform(k_adj, (B, S, S)) > 0.6).astype(jnp.float32)
    unadj = jnp.clip(a + jnp.swapaxes(a, 1, 2) + jnp.eye(S, dtype=jnp.float32)[None], 0.0, 1.0)
    dep_vals = jax.random.randint(k_dep, (B, S, S), 1, cfg['dep_vocab'])
    dep_undir = (dep_vals * unadj.astype(jnp.int32)).astype(jnp.int32)

    t = jnp.arange(S)
    text_len = jnp.sum((text_indices != 0).astype(jnp.int32), axis=-1)
    pos_rand = jax.random.randint(k_pos, (B, S), 1, cfg['pos_vocab'])
    position_syntax_indices = jnp.where(t[None, :] < text_len[:, None], pos_rand, 0).astype(jnp.int32)

    fwd = jax.jit(relation_aware_pos_forward)
    output, alpha_attention = fwd(params, text_indices, aspect_indices, left_indices,
                                  unadj, dep_undir, position_syntax_indices)
    jax.block_until_ready((output, alpha_attention))
    assert output.shape == (B, cfg['polarities_dim'])
    assert alpha_attention.shape == (B, S)
    print("KERNEL_OK")
</pallas_src>

<mosaic_0001>
module attributes {stable_mosaic.version = 11 : i64} {
  func.func @readout_kernel(%arg0: i32, %arg1: memref<2x8x32xf32, #tpu.memory_space<vmem>>, %arg2: memref<2x8x32xf32, #tpu.memory_space<vmem>>, %arg3: memref<2x8x1xf32, #tpu.memory_space<vmem>>, %arg4: memref<32x128xf32, #tpu.memory_space<vmem>>, %arg5: memref<32x128xf32, #tpu.memory_space<vmem>>, %arg6: memref<1x128xf32, #tpu.memory_space<vmem>>, %arg7: memref<2x1x128xf32, #tpu.memory_space<vmem>>, %arg8: memref<2x1x8xf32, #tpu.memory_space<vmem>>) attributes {dimension_semantics = [#tpu.dimension_semantics<arbitrary>], iteration_bounds = array<i64: 1>, scalar_prefetch = 0 : i64, scratch_operands = 0 : i64, tpu.core_type = #tpu.core_type<tc>, window_params = [{pipeline_mode = #tpu.pipeline_mode<synchronous>, transform_indices = @transform_0, window_bounds = array<i64: 2, 8, 32>}, {pipeline_mode = #tpu.pipeline_mode<synchronous>, transform_indices = @transform_1, window_bounds = array<i64: 2, 8, 32>}, {pipeline_mode = #tpu.pipeline_mode<synchronous>, transform_indices = @transform_2, window_bounds = array<i64: 2, 8, 1>}, {pipeline_mode = #tpu.pipeline_mode<synchronous>, transform_indices = @transform_3, window_bounds = array<i64: 32, 128>}, {pipeline_mode = #tpu.pipeline_mode<synchronous>, transform_indices = @transform_4, window_bounds = array<i64: 32, 128>}, {pipeline_mode = #tpu.pipeline_mode<synchronous>, transform_indices = @transform_5, window_bounds = array<i64: 1, 128>}, {pipeline_mode = #tpu.pipeline_mode<synchronous>, transform_indices = @transform_6, window_bounds = array<i64: 2, 1, 128>}, {pipeline_mode = #tpu.pipeline_mode<synchronous>, transform_indices = @transform_7, window_bounds = array<i64: 2, 1, 8>}]} {
    %c0 = arith.constant 0 : index
    %c0_0 = arith.constant 0 : index
    %c0_1 = arith.constant 0 : index
    %0 = vector.load %arg1[%c0, %c0_0, %c0_1] : memref<2x8x32xf32, #tpu.memory_space<vmem>>, vector<1x8x32xf32>
    %1 = vector.shape_cast %0 : vector<1x8x32xf32> to vector<8x32xf32>
    %c0_2 = arith.constant 0 : index
    %c0_3 = arith.constant 0 : index
    %c0_4 = arith.constant 0 : index
    %2 = vector.load %arg2[%c0_2, %c0_3, %c0_4] : memref<2x8x32xf32, #tpu.memory_space<vmem>>, vector<1x8x32xf32>
    %3 = vector.shape_cast %2 : vector<1x8x32xf32> to vector<8x32xf32>
    %c0_5 = arith.constant 0 : index
    %c0_6 = arith.constant 0 : index
    %c0_7 = arith.constant 0 : index
    %4 = vector.load %arg3[%c0_5, %c0_6, %c0_7] : memref<2x8x1xf32, #tpu.memory_space<vmem>>, vector<1x8x1xf32>
    %5 = vector.shape_cast %4 : vector<1x8x1xf32> to vector<8x1xf32>
    %6 = vector.broadcast %5 : vector<8x1xf32> to vector<8x32xf32>
    %7 = arith.mulf %3, %6 : vector<8x32xf32>
    %cst = arith.constant dense<0xFF800000> : vector<32xf32>
    %8 = vector.multi_reduction <maximumf>, %7, %cst [0] : vector<8x32xf32> to vector<32xf32>
    %9 = vector.shape_cast %8 : vector<32xf32> to vector<1x32xf32>
    %cst_8 = arith.constant dense<0.000000e+00> : vector<1x8xf32>
    %10 = tpu.matmul %9, %1, %cst_8 {dimension_numbers = #tpu.dot_dimension_numbers<[1], [1], [0], [0], [0, 0, 1, 0], [], []>} : vector<1x32xf32>, vector<8x32xf32>, vector<1x8xf32> -> vector<1x8xf32>
    %cst_9 = arith.constant dense<0xFF800000> : vector<1xf32>
    %11 = vector.multi_reduction <maximumf>, %10, %cst_9 [1] : vector<1x8xf32> to vector<1xf32>
    %12 = vector.shape_cast %11 : vector<1xf32> to vector<1x1xf32>
    %13 = vector.broadcast %12 : vector<1x1xf32> to vector<1x8xf32>
    %14 = arith.subf %10, %13 : vector<1x8xf32>
    %15 = math.exp %14 : vector<1x8xf32>
    %cst_10 = arith.constant dense<0.000000e+00> : vector<1xf32>
    %16 = vector.multi_reduction <add>, %15, %cst_10 [1] : vector<1x8xf32> to vector<1xf32>
    %17 = vector.shape_cast %16 : vector<1xf32> to vector<1x1xf32>
    %18 = tpu.reciprocal %17 {approx = true} : vector<1x1xf32> -> vector<1x1xf32>
    %19 = vector.broadcast %18 : vector<1x1xf32> to vector<1x8xf32>
    %20 = arith.mulf %15, %19 : vector<1x8xf32>
    %21 = vector.broadcast %5 : vector<8x1xf32> to vector<8x32xf32>
    %22 = arith.mulf %1, %21 : vector<8x32xf32>
    %cst_11 = arith.constant dense<0.000000e+00> : vector<8x8xf32>
    %23 = tpu.matmul %22, %1, %cst_11 {dimension_numbers = #tpu.dot_dimension_numbers<[1], [1], [0], [0], [0, 0, 1, 0], [], []>} : vector<8x32xf32>, vector<8x32xf32>, vector<8x8xf32> -> vector<8x8xf32>
    %cst_12 = arith.constant dense<0.000000e+00> : vector<8xf32>
    %24 = vector.multi_reduction <add>, %23, %cst_12 [0] : vector<8x8xf32> to vector<8xf32>
    %25 = vector.shape_cast %24 : vector<8xf32> to vector<1x8xf32>
    %cst_13 = arith.constant dense<0xFF800000> : vector<1xf32>
    %26 = vector.multi_reduction <maximumf>, %25, %cst_13 [1] : vector<1x8xf32> to vector<1xf32>
    %27 = vector.shape_cast %26 : vector<1xf32> to vector<1x1xf32>
    %28 = vector.broadcast %27 : vector<1x1xf32> to vector<1x8xf32>
    %29 = arith.subf %25, %28 : vector<1x8xf32>
    %30 = math.exp %29 : vector<1x8xf32>
    %cst_14 = arith.constant dense<0.000000e+00> : vector<1xf32>
    %31 = vector.multi_reduction <add>, %30, %cst_14 [1] : vector<1x8xf32> to vector<1xf32>
    %32 = vector.shape_cast %31 : vector<1xf32> to vector<1x1xf32>
    %33 = tpu.reciprocal %32 {approx = true} : vector<1x1xf32> -> vector<1x1xf32>
    %34 = vector.broadcast %33 : vector<1x1xf32> to vector<1x8xf32>
    %35 = arith.mulf %30, %34 : vector<1x8xf32>
    %cst_15 = arith.constant dense<0.000000e+00> : vector<1x32xf32>
    %36 = tpu.matmul %35, %1, %cst_15 {dimension_numbers = #tpu.dot_dimension_numbers<[1], [0], [0], [1], [0, 0, 1, 1], [], []>} : vector<1x8xf32>, vector<8x32xf32>, vector<1x32xf32> -> vector<1x32xf32>
    %c0_16 = arith.constant 0 : index
    %c0_17 = arith.constant 0 : index
    %37 = vector.load %arg4[%c0_16, %c0_17] : memref<32x128xf32, #tpu.memory_space<vmem>>, vector<32x128xf32>
    %cst_18 = arith.constant dense<0.000000e+00> : vector<1x128xf32>
    %38 = tpu.matmul %9, %37, %cst_18 {dimension_numbers = #tpu.dot_dimension_numbers<[1], [0], [0], [1], [0, 0, 1, 1], [], []>} : vector<1x32xf32>, vector<32x128xf32>, vector<1x128xf32> -> vector<1x128xf32>
    %c0_19 = arith.constant 0 : index
    %c0_20 = arith.constant 0 : index
    %39 = vector.load %arg5[%c0_19, %c0_20] : memref<32x128xf32, #tpu.memory_space<vmem>>, vector<32x128xf32>
    %cst_21 = arith.constant dense<0.000000e+00> : vector<1x128xf32>
    %40 = tpu.matmul %36, %39, %cst_21 {dimension_numbers = #tpu.dot_dimension_numbers<[1], [0], [0], [1], [0, 0, 1, 1], [], []>} : vector<1x32xf32>, vector<32x128xf32>, vector<1x128xf32> -> vector<1x128xf32>
    %41 = arith.addf %38, %40 : vector<1x128xf32>
    %c0_22 = arith.constant 0 : index
    %c0_23 = arith.constant 0 : index
    %42 = vector.load %arg6[%c0_22, %c0_23] : memref<1x128xf32, #tpu.memory_space<vmem>>, vector<1x128xf32>
    %43 = arith.addf %41, %42 : vector<1x128xf32>
    %c0_24 = arith.constant 0 : index
    %c0_25 = arith.constant 0 : index
    %c0_26 = arith.constant 0 : index
    %44 = vector.load %arg7[%c0_24, %c0_25, %c0_26] : memref<2x1x128xf32, #tpu.memory_space<vmem>>, vector<1x1x128xf32>
    %45 = vector.shape_cast %44 : vector<1x1x128xf32> to vector<1x128xf32>
    %46 = vector.shape_cast %43 : vector<1x128xf32> to vector<1x1x128xf32>
    tpu.vector_store %arg7[%c0_24, %c0_25, %c0_26], %46 {strides = array<i32>} : memref<2x1x128xf32, #tpu.memory_space<vmem>>, vector<1x1x128xf32>,
    %c0_27 = arith.constant 0 : index
    %c0_28 = arith.constant 0 : index
    %c0_29 = arith.constant 0 : index
    %47 = vector.load %arg8[%c0_27, %c0_28, %c0_29] : memref<2x1x8xf32, #tpu.memory_space<vmem>>, vector<1x1x8xf32>
    %48 = vector.shape_cast %47 : vector<1x1x8xf32> to vector<1x8xf32>
    %49 = vector.shape_cast %20 : vector<1x8xf32> to vector<1x1x8xf32>
    tpu.vector_store %arg8[%c0_27, %c0_28, %c0_29], %49 {strides = array<i32>} : memref<2x1x8xf32, #tpu.memory_space<vmem>>, vector<1x1x8xf32>,
    %c1 = arith.constant 1 : index
    %c0_30 = arith.constant 0 : index
    %c0_31 = arith.constant 0 : index
    %50 = vector.load %arg1[%c1, %c0_30, %c0_31] : memref<2x8x32xf32, #tpu.memory_space<vmem>>, vector<1x8x32xf32>
    %51 = vector.shape_cast %50 : vector<1x8x32xf32> to vector<8x32xf32>
    %c1_32 = arith.constant 1 : index
    %c0_33 = arith.constant 0 : index
    %c0_34 = arith.constant 0 : index
    %52 = vector.load %arg2[%c1_32, %c0_33, %c0_34] : memref<2x8x32xf32, #tpu.memory_space<vmem>>, vector<1x8x32xf32>
    %53 = vector.shape_cast %52 : vector<1x8x32xf32> to vector<8x32xf32>
    %c1_35 = arith.constant 1 : index
    %c0_36 = arith.constant 0 : index
    %c0_37 = arith.constant 0 : index
    %54 = vector.load %arg3[%c1_35, %c0_36, %c0_37] : memref<2x8x1xf32, #tpu.memory_space<vmem>>, vector<1x8x1xf32>
    %55 = vector.shape_cast %54 : vector<1x8x1xf32> to vector<8x1xf32>
    %56 = vector.broadcast %55 : vector<8x1xf32> to vector<8x32xf32>
    %57 = arith.mulf %53, %56 : vector<8x32xf32>
    %cst_38 = arith.constant dense<0xFF800000> : vector<32xf32>
    %58 = vector.multi_reduction <maximumf>, %57, %cst_38 [0] : vector<8x32xf32> to vector<32xf32>
    %59 = vector.shape_cast %58 : vector<32xf32> to vector<1x32xf32>
    %cst_39 = arith.constant dense<0.000000e+00> : vector<1x8xf32>
    %60 = tpu.matmul %59, %51, %cst_39 {dimension_numbers = #tpu.dot_dimension_numbers<[1], [1], [0], [0], [0, 0, 1, 0], [], []>} : vector<1x32xf32>, vector<8x32xf32>, vector<1x8xf32> -> vector<1x8xf32>
    %cst_40 = arith.constant dense<0xFF800000> : vector<1xf32>
    %61 = vector.multi_reduction <maximumf>, %60, %cst_40 [1] : vector<1x8xf32> to vector<1xf32>
    %62 = vector.shape_cast %61 : vector<1xf32> to vector<1x1xf32>
    %63 = vector.broadcast %62 : vector<1x1xf32> to vector<1x8xf32>
    %64 = arith.subf %60, %63 : vector<1x8xf32>
    %65 = math.exp %64 : vector<1x8xf32>
    %cst_41 = arith.constant dense<0.000000e+00> : vector<1xf32>
    %66 = vector.multi_reduction <add>, %65, %cst_41 [1] : vector<1x8xf32> to vector<1xf32>
    %67 = vector.shape_cast %66 : vector<1xf32> to vector<1x1xf32>
    %68 = tpu.reciprocal %67 {approx = true} : vector<1x1xf32> -> vector<1x1xf32>
    %69 = vector.broadcast %68 : vector<1x1xf32> to vector<1x8xf32>
    %70 = arith.mulf %65, %69 : vector<1x8xf32>
    %71 = vector.broadcast %55 : vector<8x1xf32> to vector<8x32xf32>
    %72 = arith.mulf %51, %71 : vector<8x32xf32>
    %cst_42 = arith.constant dense<0.000000e+00> : vector<8x8xf32>
    %73 = tpu.matmul %72, %51, %cst_42 {dimension_numbers = #tpu.dot_dimension_numbers<[1], [1], [0], [0], [0, 0, 1, 0], [], []>} : vector<8x32xf32>, vector<8x32xf32>, vector<8x8xf32> -> vector<8x8xf32>
    %cst_43 = arith.constant dense<0.000000e+00> : vector<8xf32>
    %74 = vector.multi_reduction <add>, %73, %cst_43 [0] : vector<8x8xf32> to vector<8xf32>
    %75 = vector.shape_cast %74 : vector<8xf32> to vector<1x8xf32>
    %cst_44 = arith.constant dense<0xFF800000> : vector<1xf32>
    %76 = vector.multi_reduction <maximumf>, %75, %cst_44 [1] : vector<1x8xf32> to vector<1xf32>
    %77 = vector.shape_cast %76 : vector<1xf32> to vector<1x1xf32>
    %78 = vector.broadcast %77 : vector<1x1xf32> to vector<1x8xf32>
    %79 = arith.subf %75, %78 : vector<1x8xf32>
    %80 = math.exp %79 : vector<1x8xf32>
    %cst_45 = arith.constant dense<0.000000e+00> : vector<1xf32>
    %81 = vector.multi_reduction <add>, %80, %cst_45 [1] : vector<1x8xf32> to vector<1xf32>
    %82 = vector.shape_cast %81 : vector<1xf32> to vector<1x1xf32>
    %83 = tpu.reciprocal %82 {approx = true} : vector<1x1xf32> -> vector<1x1xf32>
    %84 = vector.broadcast %83 : vector<1x1xf32> to vector<1x8xf32>
    %85 = arith.mulf %80, %84 : vector<1x8xf32>
    %cst_46 = arith.constant dense<0.000000e+00> : vector<1x32xf32>
    %86 = tpu.matmul %85, %51, %cst_46 {dimension_numbers = #tpu.dot_dimension_numbers<[1], [0], [0], [1], [0, 0, 1, 1], [], []>} : vector<1x8xf32>, vector<8x32xf32>, vector<1x32xf32> -> vector<1x32xf32>
    %c0_47 = arith.constant 0 : index
    %c0_48 = arith.constant 0 : index
    %87 = vector.load %arg4[%c0_47, %c0_48] : memref<32x128xf32, #tpu.memory_space<vmem>>, vector<32x128xf32>
    %cst_49 = arith.constant dense<0.000000e+00> : vector<1x128xf32>
    %88 = tpu.matmul %59, %87, %cst_49 {dimension_numbers = #tpu.dot_dimension_numbers<[1], [0], [0], [1], [0, 0, 1, 1], [], []>} : vector<1x32xf32>, vector<32x128xf32>, vector<1x128xf32> -> vector<1x128xf32>
    %c0_50 = arith.constant 0 : index
    %c0_51 = arith.constant 0 : index
    %89 = vector.load %arg5[%c0_50, %c0_51] : memref<32x128xf32, #tpu.memory_space<vmem>>, vector<32x128xf32>
    %cst_52 = arith.constant dense<0.000000e+00> : vector<1x128xf32>
    %90 = tpu.matmul %86, %89, %cst_52 {dimension_numbers = #tpu.dot_dimension_numbers<[1], [0], [0], [1], [0, 0, 1, 1], [], []>} : vector<1x32xf32>, vector<32x128xf32>, vector<1x128xf32> -> vector<1x128xf32>
    %91 = arith.addf %88, %90 : vector<1x128xf32>
    %c0_53 = arith.constant 0 : index
    %c0_54 = arith.constant 0 : index
    %92 = vector.load %arg6[%c0_53, %c0_54] : memref<1x128xf32, #tpu.memory_space<vmem>>, vector<1x128xf32>
    %93 = arith.addf %91, %92 : vector<1x128xf32>
    %c1_55 = arith.constant 1 : index
    %c0_56 = arith.constant 0 : index
    %c0_57 = arith.constant 0 : index
    %94 = vector.load %arg7[%c1_55, %c0_56, %c0_57] : memref<2x1x128xf32, #tpu.memory_space<vmem>>, vector<1x1x128xf32>
    %95 = vector.shape_cast %94 : vector<1x1x128xf32> to vector<1x128xf32>
    %96 = vector.shape_cast %93 : vector<1x128xf32> to vector<1x1x128xf32>
    tpu.vector_store %arg7[%c1_55, %c0_56, %c0_57], %96 {strides = array<i32>} : memref<2x1x128xf32, #tpu.memory_space<vmem>>, vector<1x1x128xf32>,
    %c1_58 = arith.constant 1 : index
    %c0_59 = arith.constant 0 : index
    %c0_60 = arith.constant 0 : index
    %97 = vector.load %arg8[%c1_58, %c0_59, %c0_60] : memref<2x1x8xf32, #tpu.memory_space<vmem>>, vector<1x1x8xf32>
    %98 = vector.shape_cast %97 : vector<1x1x8xf32> to vector<1x8xf32>
    %99 = vector.shape_cast %70 : vector<1x8xf32> to vector<1x1x8xf32>
    tpu.vector_store %arg8[%c1_58, %c0_59, %c0_60], %99 {strides = array<i32>} : memref<2x1x8xf32, #tpu.memory_space<vmem>>, vector<1x1x8xf32>,
    return
  }
  func.func @transform_0(%arg0: i32) -> (i32, i32, i32) {
    %c0_i32 = arith.constant 0 : i32
    %c0_i32_0 = arith.constant 0 : i32
    %c0_i32_1 = arith.constant 0 : i32
    %c0_i32_2 = arith.constant 0 : i32
    return %c0_i32, %c0_i32_0, %c0_i32_1 : i32, i32, i32
  }
  func.func @transform_1(%arg0: i32) -> (i32, i32, i32) {
    %c0_i32 = arith.constant 0 : i32
    %c0_i32_0 = arith.constant 0 : i32
    %c0_i32_1 = arith.constant 0 : i32
    %c0_i32_2 = arith.constant 0 : i32
    return %c0_i32, %c0_i32_0, %c0_i32_1 : i32, i32, i32
  }
  func.func @transform_2(%arg0: i32) -> (i32, i32, i32) {
    %c0_i32 = arith.constant 0 : i32
    %c0_i32_0 = arith.constant 0 : i32
    %c0_i32_1 = arith.constant 0 : i32
    %c0_i32_2 = arith.constant 0 : i32
    return %c0_i32, %c0_i32_0, %c0_i32_1 : i32, i32, i32
  }
  func.func @transform_3(%arg0: i32) -> (i32, i32) {
    %c0_i32 = arith.constant 0 : i32
    %c0_i32_0 = arith.constant 0 : i32
    %c0_i32_1 = arith.constant 0 : i32
    return %c0_i32, %c0_i32_0 : i32, i32
  }
  func.func @transform_4(%arg0: i32) -> (i32, i32) {
    %c0_i32 = arith.constant 0 : i32
    %c0_i32_0 = arith.constant 0 : i32
    %c0_i32_1 = arith.constant 0 : i32
    return %c0_i32, %c0_i32_0 : i32, i32
  }
  func.func @transform_5(%arg0: i32) -> (i32, i32) {
    %c0_i32 = arith.constant 0 : i32
    %c0_i32_0 = arith.constant 0 : i32
    %c0_i32_1 = arith.constant 0 : i32
    return %c0_i32, %c0_i32_0 : i32, i32
  }
  func.func @transform_6(%arg0: i32) -> (i32, i32, i32) {
    %c0_i32 = arith.constant 0 : i32
    %c0_i32_0 = arith.constant 0 : i32
    %c0_i32_1 = arith.constant 0 : i32
    %c0_i32_2 = arith.constant 0 : i32
    return %c0_i32, %c0_i32_0, %c0_i32_1 : i32, i32, i32
  }
  func.func @transform_7(%arg0: i32) -> (i32, i32, i32) {
    %c0_i32 = arith.constant 0 : i32
    %c0_i32_0 = arith.constant 0 : i32
    %c0_i32_1 = arith.constant 0 : i32
    %c0_i32_2 = arith.constant 0 : i32
    return %c0_i32, %c0_i32_0, %c0_i32_1 : i32, i32, i32
  }
}

module attributes {stable_mosaic.version = 11 : i64} {
  func.func @gat_stack_kernel(%arg0: i32, %arg1: i32, %arg2: memref<1x8x32xf32, #tpu.memory_space<vmem>>, %arg3: memref<1x8x1xf32, #tpu.memory_space<vmem>>, %arg4: memref<1x8x128xf32, #tpu.memory_space<vmem>>, %arg5: memref<1x8x8xf32, #tpu.memory_space<vmem>>, %arg6: memref<1x8x1xf32, #tpu.memory_space<vmem>>, %arg7: memref<1x2x128x128xf32, #tpu.memory_space<vmem>>, %arg8: memref<1x2x128x8xf32, #tpu.memory_space<vmem>>, %arg9: memref<1x2x32x32xf32, #tpu.memory_space<vmem>>, %arg10: memref<1x2x1x32xf32, #tpu.memory_space<vmem>>, %arg11: memref<1x32x32xf32, #tpu.memory_space<vmem>>, %arg12: memref<1x1x32xf32, #tpu.memory_space<vmem>>, %arg13: memref<1x32x1xf32, #tpu.memory_space<vmem>>, %arg14: memref<1x32x1xf32, #tpu.memory_space<vmem>>, %arg15: memref<1x1x1xf32, #tpu.memory_space<vmem>>, %arg16: memref<32x1xf32, #tpu.memory_space<vmem>>, %arg17: memref<32x1xf32, #tpu.memory_space<vmem>>, %arg18: memref<1x1xf32, #tpu.memory_space<vmem>>, %arg19: memref<32x1xf32, #tpu.memory_space<vmem>>, %arg20: memref<32x1xf32, #tpu.memory_space<vmem>>, %arg21: memref<1x1xf32, #tpu.memory_space<vmem>>, %arg22: memref<32x32xf32, #tpu.memory_space<vmem>>, %arg23: memref<1x32xf32, #tpu.memory_space<vmem>>, %arg24: memref<32x32xf32, #tpu.memory_space<vmem>>, %arg25: memref<1x32xf32, #tpu.memory_space<vmem>>, %arg26: memref<1x8x32xf32, #tpu.memory_space<vmem>>, %arg27: memref<8x32xf32, #tpu.memory_space<vmem>>, %arg28: memref<2x8x32xf32, #tpu.memory_space<vmem>>) attributes {dimension_semantics = [#tpu.dimension_semantics<parallel>, #tpu.dimension_semantics<arbitrary>], iteration_bounds = array<i64: 2, 2>, scalar_prefetch = 0 : i64, scratch_operands = 2 : i64, tpu.core_type = #tpu.core_type<tc>, window_params = [{transform_indices = @transform_0, window_bounds = array<i64: 1, 8, 32>}, {transform_indices = @transform_1, window_bounds = array<i64: 1, 8, 1>}, {transform_indices = @transform_2, window_bounds = array<i64: 1, 8, 128>}, {transform_indices = @transform_3, window_bounds = array<i64: 1, 8, 8>}, {transform_indices = @transform_4, window_bounds = array<i64: 1, 8, 1>}, {transform_indices = @transform_5, window_bounds = array<i64: 1, 2, 128, 128>}, {transform_indices = @transform_6, window_bounds = array<i64: 1, 2, 128, 8>}, {transform_indices = @transform_7, window_bounds = array<i64: 1, 2, 32, 32>}, {transform_indices = @transform_8, window_bounds = array<i64: 1, 2, 1, 32>}, {transform_indices = @transform_9, window_bounds = array<i64: 1, 32, 32>}, {transform_indices = @transform_10, window_bounds = array<i64: 1, 1, 32>}, {transform_indices = @transform_11, window_bounds = array<i64: 1, 32, 1>}, {transform_indices = @transform_12, window_bounds = array<i64: 1, 32, 1>}, {transform_indices = @transform_13, window_bounds = array<i64: 1, 1, 1>}, {pipeline_mode = #tpu.pipeline_mode<synchronous>, transform_indices = @transform_14, window_bounds = array<i64: 32, 1>}, {pipeline_mode = #tpu.pipeline_mode<synchronous>, transform_indices = @transform_15, window_bounds = array<i64: 32, 1>}, {pipeline_mode = #tpu.pipeline_mode<synchronous>, transform_indices = @transform_16, window_bounds = array<i64: 1, 1>}, {pipeline_mode = #tpu.pipeline_mode<synchronous>, transform_indices = @transform_17, window_bounds = array<i64: 32, 1>}, {pipeline_mode = #tpu.pipeline_mode<synchronous>, transform_indices = @transform_18, window_bounds = array<i64: 32, 1>}, {pipeline_mode = #tpu.pipeline_mode<synchronous>, transform_indices = @transform_19, window_bounds = array<i64: 1, 1>}, {pipeline_mode = #tpu.pipeline_mode<synchronous>, transform_indices = @transform_20, window_bounds = array<i64: 32, 32>}, {pipeline_mode = #tpu.pipeline_mode<synchronous>, transform_indices = @transform_21, window_bounds = array<i64: 1, 32>}, {pipeline_mode = #tpu.pipeline_mode<synchronous>, transform_indices = @transform_22, window_bounds = array<i64: 32, 32>}, {pipeline_mode = #tpu.pipeline_mode<synchronous>, transform_indices = @transform_23, window_bounds = array<i64: 1, 32>}, {transform_indices = @transform_24, window_bounds = array<i64: 1, 8, 32>}]} {
    %c0_i32 = arith.constant 0 : i32
    %0 = arith.cmpi eq, %arg1, %c0_i32 : i32
    %1 = arith.extui %0 : i1 to i32
    %c0_i32_0 = arith.constant 0 : i32
    %2 = arith.cmpi ne, %1, %c0_i32_0 : i32
    scf.if %2 {
      %c0_146 = arith.constant 0 : index
      %c0_147 = arith.constant 0 : index
      %c0_148 = arith.constant 0 : index
      %210 = vector.load %arg2[%c0_146, %c0_147, %c0_148] : memref<1x8x32xf32, #tpu.memory_space<vmem>>, vector<1x8x32xf32>
      %211 = vector.shape_cast %210 : vector<1x8x32xf32> to vector<8x32xf32>
      %c0_149 = arith.constant 0 : index
      %c0_150 = arith.constant 0 : index
      %212 = vector.load %arg27[%c0_149, %c0_150] : memref<8x32xf32, #tpu.memory_space<vmem>>, vector<8x32xf32>
      tpu.vector_store %arg27[%c0_149, %c0_150], %211 {strides = array<i32>} : memref<8x32xf32, #tpu.memory_space<vmem>>, vector<8x32xf32>,
    } else {
    }
    %c0 = arith.constant 0 : index
    %c0_1 = arith.constant 0 : index
    %3 = vector.load %arg27[%c0, %c0_1] : memref<8x32xf32, #tpu.memory_space<vmem>>, vector<8x32xf32>
    %c0_2 = arith.constant 0 : index
    %c0_3 = arith.constant 0 : index
    %c0_4 = arith.constant 0 : index
    %4 = vector.load %arg3[%c0_2, %c0_3, %c0_4] : memref<1x8x1xf32, #tpu.memory_space<vmem>>, vector<1x8x1xf32>
    %5 = vector.shape_cast %4 : vector<1x8x1xf32> to vector<8x1xf32>
    %6 = vector.broadcast %5 : vector<8x1xf32> to vector<8x32xf32>
    %7 = arith.mulf %3, %6 : vector<8x32xf32>
    %c0_5 = arith.constant 0 : index
    %c0_6 = arith.constant 0 : index
    %c0_7 = arith.constant 0 : index
    %8 = vector.load %arg5[%c0_5, %c0_6, %c0_7] : memref<1x8x8xf32, #tpu.memory_space<vmem>>, vector<1x8x8xf32>
    %9 = vector.shape_cast %8 : vector<1x8x8xf32> to vector<8x8xf32>
    %c0_8 = arith.constant 0 : index
    %c0_9 = arith.constant 0 : index
    %c0_10 = arith.constant 0 : index
    %10 = vector.load %arg6[%c0_8, %c0_9, %c0_10] : memref<1x8x1xf32, #tpu.memory_space<vmem>>, vector<1x8x1xf32>
    %11 = vector.shape_cast %10 : vector<1x8x1xf32> to vector<8x1xf32>
    %c0_11 = arith.constant 0 : index
    %c0_12 = arith.constant 0 : index
    %c0_13 = arith.constant 0 : index
    %12 = vector.load %arg4[%c0_11, %c0_12, %c0_13] : memref<1x8x128xf32, #tpu.memory_space<vmem>>, vector<1x8x128xf32>
    %13 = vector.shape_cast %12 : vector<1x8x128xf32> to vector<8x128xf32>
    %c0_14 = arith.constant 0 : index
    %c0_15 = arith.constant 0 : index
    %c0_16 = arith.constant 0 : index
    %c0_17 = arith.constant 0 : index
    %14 = vector.load %arg7[%c0_14, %c0_15, %c0_16, %c0_17] : memref<1x2x128x128xf32, #tpu.memory_space<vmem>>, vector<1x1x128x128xf32>
    %15 = vector.shape_cast %14 : vector<1x1x128x128xf32> to vector<128x128xf32>
    %cst = arith.constant dense<0.000000e+00> : vector<8x128xf32>
    %16 = tpu.matmul %13, %15, %cst {dimension_numbers = #tpu.dot_dimension_numbers<[1], [0], [0], [1], [0, 0, 1, 1], [], []>} : vector<8x128xf32>, vector<128x128xf32>, vector<8x128xf32> -> vector<8x128xf32>
    %cst_18 = arith.constant 0.000000e+00 : f32
    %17 = vector.broadcast %cst_18 : f32 to vector<8x128xf32>
    %18 = arith.maximumf %16, %17 : vector<8x128xf32>
    %c0_19 = arith.constant 0 : index
    %c0_20 = arith.constant 0 : index
    %c0_21 = arith.constant 0 : index
    %c0_22 = arith.constant 0 : index
    %19 = vector.load %arg8[%c0_19, %c0_20, %c0_21, %c0_22] : memref<1x2x128x8xf32, #tpu.memory_space<vmem>>, vector<1x1x128x8xf32>
    %20 = vector.shape_cast %19 : vector<1x1x128x8xf32> to vector<128x8xf32>
    %cst_23 = arith.constant dense<0.000000e+00> : vector<8x8xf32>
    %21 = tpu.matmul %18, %20, %cst_23 {dimension_numbers = #tpu.dot_dimension_numbers<[1], [0], [0], [1], [0, 0, 1, 1], [], []>} : vector<8x128xf32>, vector<128x8xf32>, vector<8x8xf32> -> vector<8x8xf32>
    %cst_24 = arith.constant dense<0.000000e+00> : vector<8xf32>
    %22 = vector.multi_reduction <add>, %21, %cst_24 [1] : vector<8x8xf32> to vector<8xf32>
    %23 = vector.shape_cast %22 : vector<8xf32> to vector<8x1xf32>
    %cst_25 = arith.constant 8.000000e+00 : f32
    %24 = vector.broadcast %cst_25 : f32 to vector<8x1xf32>
    %25 = arith.divf %23, %24 : vector<8x1xf32>
    %26 = math.absf %25 : vector<8x1xf32>
    %cst_26 = arith.constant 1.000000e-10 : f32
    %27 = vector.broadcast %cst_26 : f32 to vector<8x1xf32>
    %28 = arith.addf %26, %27 : vector<8x1xf32>
    %29 = tpu.reciprocal %28 {approx = true} : vector<8x1xf32> -> vector<8x1xf32>
    %30 = vector.broadcast %29 : vector<8x1xf32> to vector<8x8xf32>
    %31 = arith.mulf %21, %30 : vector<8x8xf32>
    %cst_27 = arith.constant 0.000000e+00 : f32
    %32 = vector.broadcast %cst_27 : f32 to vector<8x8xf32>
    %33 = arith.cmpf one, %9, %32 : vector<8x8xf32>
    %cst_28 = arith.constant -9.000000e+15 : f32
    %34 = vector.broadcast %cst_28 : f32 to vector<8x8xf32>
    %35 = arith.select %33, %31, %34 : vector<8x8xi1>, vector<8x8xf32>
    %cst_29 = arith.constant dense<0xFF800000> : vector<8xf32>
    %36 = vector.multi_reduction <maximumf>, %35, %cst_29 [1] : vector<8x8xf32> to vector<8xf32>
    %37 = vector.shape_cast %36 : vector<8xf32> to vector<8x1xf32>
    %38 = vector.broadcast %37 : vector<8x1xf32> to vector<8x8xf32>
    %39 = arith.subf %35, %38 : vector<8x8xf32>
    %40 = math.exp %39 : vector<8x8xf32>
    %cst_30 = arith.constant dense<0.000000e+00> : vector<8xf32>
    %41 = vector.multi_reduction <add>, %40, %cst_30 [1] : vector<8x8xf32> to vector<8xf32>
    %42 = vector.shape_cast %41 : vector<8xf32> to vector<8x1xf32>
    %43 = tpu.reciprocal %42 {approx = true} : vector<8x1xf32> -> vector<8x1xf32>
    %44 = vector.broadcast %43 : vector<8x1xf32> to vector<8x8xf32>
    %45 = arith.mulf %40, %44 : vector<8x8xf32>
    %c0_31 = arith.constant 0 : index
    %c0_32 = arith.constant 0 : index
    %c0_33 = arith.constant 0 : index
    %c0_34 = arith.constant 0 : index
    %46 = vector.load %arg9[%c0_31, %c0_32, %c0_33, %c0_34] : memref<1x2x32x32xf32, #tpu.memory_space<vmem>>, vector<1x1x32x32xf32>
    %47 = vector.shape_cast %46 : vector<1x1x32x32xf32> to vector<32x32xf32>
    %cst_35 = arith.constant dense<0.000000e+00> : vector<8x32xf32>
    %48 = tpu.matmul %7, %47, %cst_35 {dimension_numbers = #tpu.dot_dimension_numbers<[1], [0], [0], [1], [0, 0, 1, 1], [], []>} : vector<8x32xf32>, vector<32x32xf32>, vector<8x32xf32> -> vector<8x32xf32>
    %c0_36 = arith.constant 0 : index
    %c0_37 = arith.constant 0 : index
    %c0_38 = arith.constant 0 : index
    %c0_39 = arith.constant 0 : index
    %49 = vector.load %arg10[%c0_36, %c0_37, %c0_38, %c0_39] : memref<1x2x1x32xf32, #tpu.memory_space<vmem>>, vector<1x1x1x32xf32>
    %50 = vector.shape_cast %49 : vector<1x1x1x32xf32> to vector<1x32xf32>
    %51 = vector.broadcast %50 : vector<1x32xf32> to vector<8x32xf32>
    %52 = arith.addf %48, %51 : vector<8x32xf32>
    %cst_40 = arith.constant dense<0.000000e+00> : vector<8x32xf32>
    %53 = tpu.matmul %45, %52, %cst_40 {dimension_numbers = #tpu.dot_dimension_numbers<[1], [0], [0], [1], [0, 0, 1, 1], [], []>} : vector<8x8xf32>, vector<8x32xf32>, vector<8x32xf32> -> vector<8x32xf32>
    %cst_41 = arith.constant 0.000000e+00 : f32
    %54 = vector.broadcast %cst_41 : f32 to vector<8x32xf32>
    %55 = arith.maximumf %53, %54 : vector<8x32xf32>
    %c0_42 = arith.constant 0 : index
    %c0_43 = arith.constant 0 : index
    %c0_44 = arith.constant 0 : index
    %56 = vector.load %arg28[%c0_42, %c0_43, %c0_44] : memref<2x8x32xf32, #tpu.memory_space<vmem>>, vector<1x8x32xf32>
    %57 = vector.shape_cast %56 : vector<1x8x32xf32> to vector<8x32xf32>
    %58 = vector.shape_cast %55 : vector<8x32xf32> to vector<1x8x32xf32>
    tpu.vector_store %arg28[%c0_42, %c0_43, %c0_44], %58 {strides = array<i32>} : memref<2x8x32xf32, #tpu.memory_space<vmem>>, vector<1x8x32xf32>,
    %c0_45 = arith.constant 0 : index
    %c1 = arith.constant 1 : index
    %c0_46 = arith.constant 0 : index
    %c0_47 = arith.constant 0 : index
    %59 = vector.load %arg7[%c0_45, %c1, %c0_46, %c0_47] : memref<1x2x128x128xf32, #tpu.memory_space<vmem>>, vector<1x1x128x128xf32>
    %60 = vector.shape_cast %59 : vector<1x1x128x128xf32> to vector<128x128xf32>
    %cst_48 = arith.constant dense<0.000000e+00> : vector<8x128xf32>
    %61 = tpu.matmul %13, %60, %cst_48 {dimension_numbers = #tpu.dot_dimension_numbers<[1], [0], [0], [1], [0, 0, 1, 1], [], []>} : vector<8x128xf32>, vector<128x128xf32>, vector<8x128xf32> -> vector<8x128xf32>
    %cst_49 = arith.constant 0.000000e+00 : f32
    %62 = vector.broadcast %cst_49 : f32 to vector<8x128xf32>
    %63 = arith.maximumf %61, %62 : vector<8x128xf32>
    %c0_50 = arith.constant 0 : index
    %c1_51 = arith.constant 1 : index
    %c0_52 = arith.constant 0 : index
    %c0_53 = arith.constant 0 : index
    %64 = vector.load %arg8[%c0_50, %c1_51, %c0_52, %c0_53] : memref<1x2x128x8xf32, #tpu.memory_space<vmem>>, vector<1x1x128x8xf32>
    %65 = vector.shape_cast %64 : vector<1x1x128x8xf32> to vector<128x8xf32>
    %cst_54 = arith.constant dense<0.000000e+00> : vector<8x8xf32>
    %66 = tpu.matmul %63, %65, %cst_54 {dimension_numbers = #tpu.dot_dimension_numbers<[1], [0], [0], [1], [0, 0, 1, 1], [], []>} : vector<8x128xf32>, vector<128x8xf32>, vector<8x8xf32> -> vector<8x8xf32>
    %cst_55 = arith.constant dense<0.000000e+00> : vector<8xf32>
    %67 = vector.multi_reduction <add>, %66, %cst_55 [1] : vector<8x8xf32> to vector<8xf32>
    %68 = vector.shape_cast %67 : vector<8xf32> to vector<8x1xf32>
    %cst_56 = arith.constant 8.000000e+00 : f32
    %69 = vector.broadcast %cst_56 : f32 to vector<8x1xf32>
    %70 = arith.divf %68, %69 : vector<8x1xf32>
    %71 = math.absf %70 : vector<8x1xf32>
    %cst_57 = arith.constant 1.000000e-10 : f32
    %72 = vector.broadcast %cst_57 : f32 to vector<8x1xf32>
    %73 = arith.addf %71, %72 : vector<8x1xf32>
    %74 = tpu.reciprocal %73 {approx = true} : vector<8x1xf32> -> vector<8x1xf32>
    %75 = vector.broadcast %74 : vector<8x1xf32> to vector<8x8xf32>
    %76 = arith.mulf %66, %75 : vector<8x8xf32>
    %cst_58 = arith.constant 0.000000e+00 : f32
    %77 = vector.broadcast %cst_58 : f32 to vector<8x8xf32>
    %78 = arith.cmpf one, %9, %77 : vector<8x8xf32>
    %cst_59 = arith.constant -9.000000e+15 : f32
    %79 = vector.broadcast %cst_59 : f32 to vector<8x8xf32>
    %80 = arith.select %78, %76, %79 : vector<8x8xi1>, vector<8x8xf32>
    %cst_60 = arith.constant dense<0xFF800000> : vector<8xf32>
    %81 = vector.multi_reduction <maximumf>, %80, %cst_60 [1] : vector<8x8xf32> to vector<8xf32>
    %82 = vector.shape_cast %81 : vector<8xf32> to vector<8x1xf32>
    %83 = vector.broadcast %82 : vector<8x1xf32> to vector<8x8xf32>
    %84 = arith.subf %80, %83 : vector<8x8xf32>
    %85 = math.exp %84 : vector<8x8xf32>
    %cst_61 = arith.constant dense<0.000000e+00> : vector<8xf32>
    %86 = vector.multi_reduction <add>, %85, %cst_61 [1] : vector<8x8xf32> to vector<8xf32>
    %87 = vector.shape_cast %86 : vector<8xf32> to vector<8x1xf32>
    %88 = tpu.reciprocal %87 {approx = true} : vector<8x1xf32> -> vector<8x1xf32>
    %89 = vector.broadcast %88 : vector<8x1xf32> to vector<8x8xf32>
    %90 = arith.mulf %85, %89 : vector<8x8xf32>
    %c0_62 = arith.constant 0 : index
    %c1_63 = arith.constant 1 : index
    %c0_64 = arith.constant 0 : index
    %c0_65 = arith.constant 0 : index
    %91 = vector.load %arg9[%c0_62, %c1_63, %c0_64, %c0_65] : memref<1x2x32x32xf32, #tpu.memory_space<vmem>>, vector<1x1x32x32xf32>
    %92 = vector.shape_cast %91 : vector<1x1x32x32xf32> to vector<32x32xf32>
    %cst_66 = arith.constant dense<0.000000e+00> : vector<8x32xf32>
    %93 = tpu.matmul %7, %92, %cst_66 {dimension_numbers = #tpu.dot_dimension_numbers<[1], [0], [0], [1], [0, 0, 1, 1], [], []>} : vector<8x32xf32>, vector<32x32xf32>, vector<8x32xf32> -> vector<8x32xf32>
    %c0_67 = arith.constant 0 : index
    %c1_68 = arith.constant 1 : index
    %c0_69 = arith.constant 0 : index
    %c0_70 = arith.constant 0 : index
    %94 = vector.load %arg10[%c0_67, %c1_68, %c0_69, %c0_70] : memref<1x2x1x32xf32, #tpu.memory_space<vmem>>, vector<1x1x1x32xf32>
    %95 = vector.shape_cast %94 : vector<1x1x1x32xf32> to vector<1x32xf32>
    %96 = vector.broadcast %95 : vector<1x32xf32> to vector<8x32xf32>
    %97 = arith.addf %93, %96 : vector<8x32xf32>
    %cst_71 = arith.constant dense<0.000000e+00> : vector<8x32xf32>
    %98 = tpu.matmul %90, %97, %cst_71 {dimension_numbers = #tpu.dot_dimension_numbers<[1], [0], [0], [1], [0, 0, 1, 1], [], []>} : vector<8x8xf32>, vector<8x32xf32>, vector<8x32xf32> -> vector<8x32xf32>
    %cst_72 = arith.constant 0.000000e+00 : f32
    %99 = vector.broadcast %cst_72 : f32 to vector<8x32xf32>
    %100 = arith.maximumf %98, %99 : vector<8x32xf32>
    %c1_73 = arith.constant 1 : index
    %c0_74 = arith.constant 0 : index
    %c0_75 = arith.constant 0 : index
    %101 = vector.load %arg28[%c1_73, %c0_74, %c0_75] : memref<2x8x32xf32, #tpu.memory_space<vmem>>, vector<1x8x32xf32>
    %102 = vector.shape_cast %101 : vector<1x8x32xf32> to vector<8x32xf32>
    %103 = vector.shape_cast %100 : vector<8x32xf32> to vector<1x8x32xf32>
    tpu.vector_store %arg28[%c1_73, %c0_74, %c0_75], %103 {strides = array<i32>} : memref<2x8x32xf32, #tpu.memory_space<vmem>>, vector<1x8x32xf32>,
    %c0_76 = arith.constant 0 : index
    %c0_77 = arith.constant 0 : index
    %c0_78 = arith.constant 0 : index
    %104 = vector.load %arg28[%c0_76, %c0_77, %c0_78] : memref<2x8x32xf32, #tpu.memory_space<vmem>>, vector<2x8x32xf32>
    %105 = vector.broadcast %11 : vector<8x1xf32> to vector<8x32xf32>
    %106 = arith.mulf %7, %105 : vector<8x32xf32>
    %cst_79 = arith.constant dense<0xFF800000> : vector<32xf32>
    %107 = vector.multi_reduction <maximumf>, %106, %cst_79 [0] : vector<8x32xf32> to vector<32xf32>
    %108 = vector.shape_cast %107 : vector<32xf32> to vector<1x32xf32>
    %109 = vector.shape_cast %11 : vector<8x1xf32> to vector<1x8x1xf32>
    %110 = vector.broadcast %109 : vector<1x8x1xf32> to vector<2x8x32xf32>
    %111 = arith.mulf %104, %110 : vector<2x8x32xf32>
    %cst_80 = arith.constant dense<0xFF800000> : vector<2x32xf32>
    %112 = vector.multi_reduction <maximumf>, %111, %cst_80 [1] : vector<2x8x32xf32> to vector<2x32xf32>
    %c0_81 = arith.constant 0 : index
    %c0_82 = arith.constant 0 : index
    %c0_83 = arith.constant 0 : index
    %113 = vector.load %arg11[%c0_81, %c0_82, %c0_83] : memref<1x32x32xf32, #tpu.memory_space<vmem>>, vector<1x32x32xf32>
    %114 = vector.shape_cast %113 : vector<1x32x32xf32> to vector<32x32xf32>
    %cst_84 = arith.constant dense<0.000000e+00> : vector<2x32xf32>
    %115 = tpu.matmul %112, %114, %cst_84 {dimension_numbers = #tpu.dot_dimension_numbers<[1], [0], [0], [1], [0, 0, 1, 1], [], []>} : vector<2x32xf32>, vector<32x32xf32>, vector<2x32xf32> -> vector<2x32xf32>
    %c0_85 = arith.constant 0 : index
    %c0_86 = arith.constant 0 : index
    %c0_87 = arith.constant 0 : index
    %116 = vector.load %arg12[%c0_85, %c0_86, %c0_87] : memref<1x1x32xf32, #tpu.memory_space<vmem>>, vector<1x1x32xf32>
    %117 = vector.shape_cast %116 : vector<1x1x32xf32> to vector<1x32xf32>
    %118 = vector.broadcast %117 : vector<1x32xf32> to vector<2x32xf32>
    %119 = arith.addf %115, %118 : vector<2x32xf32>
    %120 = math.tanh %119 : vector<2x32xf32>
    %c0_88 = arith.constant 0 : index
    %c0_89 = arith.constant 0 : index
    %c0_90 = arith.constant 0 : index
    %121 = vector.load %arg13[%c0_88, %c0_89, %c0_90] : memref<1x32x1xf32, #tpu.memory_space<vmem>>, vector<1x32x1xf32>
    %122 = vector.shape_cast %121 : vector<1x32x1xf32> to vector<32x1xf32>
    %cst_91 = arith.constant dense<0.000000e+00> : vector<1x1xf32>
    %123 = tpu.matmul %108, %122, %cst_91 {dimension_numbers = #tpu.dot_dimension_numbers<[1], [0], [0], [1], [0, 0, 1, 1], [], []>} : vector<1x32xf32>, vector<32x1xf32>, vector<1x1xf32> -> vector<1x1xf32>
    %c0_92 = arith.constant 0 : index
    %c0_93 = arith.constant 0 : index
    %c0_94 = arith.constant 0 : index
    %124 = vector.load %arg14[%c0_92, %c0_93, %c0_94] : memref<1x32x1xf32, #tpu.memory_space<vmem>>, vector<1x32x1xf32>
    %125 = vector.shape_cast %124 : vector<1x32x1xf32> to vector<32x1xf32>
    %cst_95 = arith.constant dense<0.000000e+00> : vector<2x1xf32>
    %126 = tpu.matmul %120, %125, %cst_95 {dimension_numbers = #tpu.dot_dimension_numbers<[1], [0], [0], [1], [0, 0, 1, 1], [], []>} : vector<2x32xf32>, vector<32x1xf32>, vector<2x1xf32> -> vector<2x1xf32>
    %127 = vector.broadcast %123 : vector<1x1xf32> to vector<2x1xf32>
    %128 = arith.addf %126, %127 : vector<2x1xf32>
    %c0_96 = arith.constant 0 : index
    %c0_97 = arith.constant 0 : index
    %c0_98 = arith.constant 0 : index
    %129 = vector.load %arg15[%c0_96, %c0_97, %c0_98] : memref<1x1x1xf32, #tpu.memory_space<vmem>>, vector<1x1x1xf32>
    %130 = vector.shape_cast %129 : vector<1x1x1xf32> to vector<1x1xf32>
    %131 = vector.broadcast %130 : vector<1x1xf32> to vector<2x1xf32>
    %132 = arith.addf %128, %131 : vector<2x1xf32>
    %cst_99 = arith.constant 0.000000e+00 : f32
    %133 = vector.broadcast %cst_99 : f32 to vector<2x1xf32>
    %134 = arith.maximumf %132, %133 : vector<2x1xf32>
    %cst_100 = arith.constant dense<0xFF800000> : vector<1xf32>
    %135 = vector.multi_reduction <maximumf>, %134, %cst_100 [0] : vector<2x1xf32> to vector<1xf32>
    %136 = vector.shape_cast %135 : vector<1xf32> to vector<1x1xf32>
    %137 = vector.broadcast %136 : vector<1x1xf32> to vector<2x1xf32>
    %138 = arith.subf %134, %137 : vector<2x1xf32>
    %139 = math.exp %138 : vector<2x1xf32>
    %cst_101 = arith.constant dense<0.000000e+00> : vector<1xf32>
    %140 = vector.multi_reduction <add>, %139, %cst_101 [0] : vector<2x1xf32> to vector<1xf32>
    %141 = vector.shape_cast %140 : vector<1xf32> to vector<1x1xf32>
    %142 = tpu.reciprocal %141 {approx = true} : vector<1x1xf32> -> vector<1x1xf32>
    %143 = vector.broadcast %142 : vector<1x1xf32> to vector<2x1xf32>
    %144 = arith.mulf %139, %143 : vector<2x1xf32>
    %145 = vector.shape_cast %144 : vector<2x1xf32> to vector<2x1x1xf32>
    %146 = vector.broadcast %145 : vector<2x1x1xf32> to vector<2x8x32xf32>
    %147 = arith.mulf %104, %146 : vector<2x8x32xf32>
    %cst_102 = arith.constant dense<0.000000e+00> : vector<8x32xf32>
    %148 = vector.multi_reduction <add>, %147, %cst_102 [0] : vector<2x8x32xf32> to vector<8x32xf32>
    %cst_103 = arith.constant 2.000000e+00 : f32
    %149 = vector.broadcast %cst_103 : f32 to vector<8x32xf32>
    %150 = arith.divf %148, %149 : vector<8x32xf32>
    %cst_104 = arith.constant 0.000000e+00 : f32
    %151 = vector.broadcast %cst_104 : f32 to vector<8x32xf32>
    %152 = arith.maximumf %150, %151 : vector<8x32xf32>
    %153 = vector.shape_cast %152 : vector<8x32xf32> to vector<1x8x32xf32>
    %c0_105 = arith.constant 0 : index
    %c0_106 = arith.constant 0 : index
    %c0_107 = arith.constant 0 : index
    %154 = vector.load %arg26[%c0_105, %c0_106, %c0_107] : memref<1x8x32xf32, #tpu.memory_space<vmem>>, vector<1x8x32xf32>
    tpu.vector_store %arg26[%c0_105, %c0_106, %c0_107], %153 {strides = array<i32>} : memref<1x8x32xf32, #tpu.memory_space<vmem>>, vector<1x8x32xf32>,
    %c0_108 = arith.constant 0 : index
    %c0_109 = arith.constant 0 : index
    %155 = vector.load %arg16[%c0_108, %c0_109] : memref<32x1xf32, #tpu.memory_space<vmem>>, vector<32x1xf32>
    %cst_110 = arith.constant dense<0.000000e+00> : vector<8x1xf32>
    %156 = tpu.matmul %152, %155, %cst_110 {dimension_numbers = #tpu.dot_dimension_numbers<[1], [0], [0], [1], [0, 0, 1, 1], [], []>} : vector<8x32xf32>, vector<32x1xf32>, vector<8x1xf32> -> vector<8x1xf32>
    %c0_111 = arith.constant 0 : index
    %c0_112 = arith.constant 0 : index
    %157 = vector.load %arg17[%c0_111, %c0_112] : memref<32x1xf32, #tpu.memory_space<vmem>>, vector<32x1xf32>
    %cst_113 = arith.constant dense<0.000000e+00> : vector<8x1xf32>
    %158 = tpu.matmul %7, %157, %cst_113 {dimension_numbers = #tpu.dot_dimension_numbers<[1], [0], [0], [1], [0, 0, 1, 1], [], []>} : vector<8x32xf32>, vector<32x1xf32>, vector<8x1xf32> -> vector<8x1xf32>
    %159 = arith.addf %156, %158 : vector<8x1xf32>
    %c0_114 = arith.constant 0 : index
    %c0_115 = arith.constant 0 : index
    %160 = vector.load %arg18[%c0_114, %c0_115] : memref<1x1xf32, #tpu.memory_space<vmem>>, vector<1x1xf32>
    %161 = vector.broadcast %160 : vector<1x1xf32> to vector<8x1xf32>
    %162 = arith.addf %159, %161 : vector<8x1xf32>
    %cst_116 = arith.constant 0.000000e+00 : f32
    %163 = vector.broadcast %cst_116 : f32 to vector<8x1xf32>
    %164 = arith.subf %163, %162 : vector<8x1xf32>
    %165 = math.exp %164 : vector<8x1xf32>
    %cst_117 = arith.constant 1.000000e+00 : f32
    %166 = vector.broadcast %cst_117 : f32 to vector<8x1xf32>
    %167 = arith.addf %166, %165 : vector<8x1xf32>
    %168 = tpu.reciprocal %167 {approx = true} : vector<8x1xf32> -> vector<8x1xf32>
    %c0_118 = arith.constant 0 : index
    %c0_119 = arith.constant 0 : index
    %169 = vector.load %arg19[%c0_118, %c0_119] : memref<32x1xf32, #tpu.memory_space<vmem>>, vector<32x1xf32>
    %cst_120 = arith.constant dense<0.000000e+00> : vector<8x1xf32>
    %170 = tpu.matmul %152, %169, %cst_120 {dimension_numbers = #tpu.dot_dimension_numbers<[1], [0], [0], [1], [0, 0, 1, 1], [], []>} : vector<8x32xf32>, vector<32x1xf32>, vector<8x1xf32> -> vector<8x1xf32>
    %c0_121 = arith.constant 0 : index
    %c0_122 = arith.constant 0 : index
    %171 = vector.load %arg20[%c0_121, %c0_122] : memref<32x1xf32, #tpu.memory_space<vmem>>, vector<32x1xf32>
    %cst_123 = arith.constant dense<0.000000e+00> : vector<8x1xf32>
    %172 = tpu.matmul %7, %171, %cst_123 {dimension_numbers = #tpu.dot_dimension_numbers<[1], [0], [0], [1], [0, 0, 1, 1], [], []>} : vector<8x32xf32>, vector<32x1xf32>, vector<8x1xf32> -> vector<8x1xf32>
    %173 = arith.addf %170, %172 : vector<8x1xf32>
    %c0_124 = arith.constant 0 : index
    %c0_125 = arith.constant 0 : index
    %174 = vector.load %arg21[%c0_124, %c0_125] : memref<1x1xf32, #tpu.memory_space<vmem>>, vector<1x1xf32>
    %175 = vector.broadcast %174 : vector<1x1xf32> to vector<8x1xf32>
    %176 = arith.addf %173, %175 : vector<8x1xf32>
    %cst_126 = arith.constant 0.000000e+00 : f32
    %177 = vector.broadcast %cst_126 : f32 to vector<8x1xf32>
    %178 = arith.subf %177, %176 : vector<8x1xf32>
    %179 = math.exp %178 : vector<8x1xf32>
    %cst_127 = arith.constant 1.000000e+00 : f32
    %180 = vector.broadcast %cst_127 : f32 to vector<8x1xf32>
    %181 = arith.addf %180, %179 : vector<8x1xf32>
    %182 = tpu.reciprocal %181 {approx = true} : vector<8x1xf32> -> vector<8x1xf32>
    %c0_128 = arith.constant 0 : index
    %c0_129 = arith.constant 0 : index
    %183 = vector.load %arg24[%c0_128, %c0_129] : memref<32x32xf32, #tpu.memory_space<vmem>>, vector<32x32xf32>
    %cst_130 = arith.constant dense<0.000000e+00> : vector<8x32xf32>
    %184 = tpu.matmul %7, %183, %cst_130 {dimension_numbers = #tpu.dot_dimension_numbers<[1], [0], [0], [1], [0, 0, 1, 1], [], []>} : vector<8x32xf32>, vector<32x32xf32>, vector<8x32xf32> -> vector<8x32xf32>
    %c0_131 = arith.constant 0 : index
    %c0_132 = arith.constant 0 : index
    %185 = vector.load %arg25[%c0_131, %c0_132] : memref<1x32xf32, #tpu.memory_space<vmem>>, vector<1x32xf32>
    %186 = vector.broadcast %185 : vector<1x32xf32> to vector<8x32xf32>
    %187 = arith.addf %184, %186 : vector<8x32xf32>
    %c0_133 = arith.constant 0 : index
    %c0_134 = arith.constant 0 : index
    %188 = vector.load %arg22[%c0_133, %c0_134] : memref<32x32xf32, #tpu.memory_space<vmem>>, vector<32x32xf32>
    %cst_135 = arith.constant dense<0.000000e+00> : vector<8x32xf32>
    %189 = tpu.matmul %152, %188, %cst_135 {dimension_numbers = #tpu.dot_dimension_numbers<[1], [0], [0], [1], [0, 0, 1, 1], [], []>} : vector<8x32xf32>, vector<32x32xf32>, vector<8x32xf32> -> vector<8x32xf32>
    %c0_136 = arith.constant 0 : index
    %c0_137 = arith.constant 0 : index
    %190 = vector.load %arg23[%c0_136, %c0_137] : memref<1x32xf32, #tpu.memory_space<vmem>>, vector<1x32xf32>
    %191 = vector.broadcast %190 : vector<1x32xf32> to vector<8x32xf32>
    %192 = arith.addf %189, %191 : vector<8x32xf32>
    %193 = vector.broadcast %182 : vector<8x1xf32> to vector<8x32xf32>
    %194 = arith.mulf %193, %187 : vector<8x32xf32>
    %c0_138 = arith.constant 0 : index
    %c0_139 = arith.constant 0 : index
    %195 = vector.load %arg24[%c0_138, %c0_139] : memref<32x32xf32, #tpu.memory_space<vmem>>, vector<32x32xf32>
    %cst_140 = arith.constant dense<0.000000e+00> : vector<8x32xf32>
    %196 = tpu.matmul %194, %195, %cst_140 {dimension_numbers = #tpu.dot_dimension_numbers<[1], [0], [0], [1], [0, 0, 1, 1], [], []>} : vector<8x32xf32>, vector<32x32xf32>, vector<8x32xf32> -> vector<8x32xf32>
    %197 = arith.addf %192, %196 : vector<8x32xf32>
    %c0_141 = arith.constant 0 : index
    %c0_142 = arith.constant 0 : index
    %198 = vector.load %arg25[%c0_141, %c0_142] : memref<1x32xf32, #tpu.memory_space<vmem>>, vector<1x32xf32>
    %199 = vector.broadcast %198 : vector<1x32xf32> to vector<8x32xf32>
    %200 = arith.addf %197, %199 : vector<8x32xf32>
    %201 = math.tanh %200 : vector<8x32xf32>
    %cst_143 = arith.constant 1.000000e+00 : f32
    %202 = vector.broadcast %cst_143 : f32 to vector<8x1xf32>
    %203 = arith.subf %202, %168 : vector<8x1xf32>
    %204 = vector.broadcast %203 : vector<8x1xf32> to vector<8x32xf32>
    %205 = arith.mulf %204, %152 : vector<8x32xf32>
    %206 = vector.broadcast %168 : vector<8x1xf32> to vector<8x32xf32>
    %207 = arith.mulf %206, %201 : vector<8x32xf32>
    %208 = arith.addf %205, %207 : vector<8x32xf32>
    %c0_144 = arith.constant 0 : index
    %c0_145 = arith.constant 0 : index
    %209 = vector.load %arg27[%c0_144, %c0_145] : memref<8x32xf32, #tpu.memory_space<vmem>>, vector<8x32xf32>
    tpu.vector_store %arg27[%c0_144, %c0_145], %208 {strides = array<i32>} : memref<8x32xf32, #tpu.memory_space<vmem>>, vector<8x32xf32>,
    return
  }
  func.func @transform_0(%arg0: i32, %arg1: i32) -> (i32, i32, i32) {
    %c0_i32 = arith.constant 0 : i32
    %c0_i32_0 = arith.constant 0 : i32
    %c0_i32_1 = arith.constant 0 : i32
    return %arg0, %c0_i32, %c0_i32_0 : i32, i32, i32
  }
  func.func @transform_1(%arg0: i32, %arg1: i32) -> (i32, i32, i32) {
    %c0_i32 = arith.constant 0 : i32
    %c0_i32_0 = arith.constant 0 : i32
    %c0_i32_1 = arith.constant 0 : i32
    return %arg0, %c0_i32, %c0_i32_0 : i32, i32, i32
  }
  func.func @transform_2(%arg0: i32, %arg1: i32) -> (i32, i32, i32) {
    %c0_i32 = arith.constant 0 : i32
    %c0_i32_0 = arith.constant 0 : i32
    %c0_i32_1 = arith.constant 0 : i32
    return %arg0, %c0_i32, %c0_i32_0 : i32, i32, i32
  }
  func.func @transform_3(%arg0: i32, %arg1: i32) -> (i32, i32, i32) {
    %c0_i32 = arith.constant 0 : i32
    %c0_i32_0 = arith.constant 0 : i32
    %c0_i32_1 = arith.constant 0 : i32
    return %arg0, %c0_i32, %c0_i32_0 : i32, i32, i32
  }
  func.func @transform_4(%arg0: i32, %arg1: i32) -> (i32, i32, i32) {
    %c0_i32 = arith.constant 0 : i32
    %c0_i32_0 = arith.constant 0 : i32
    %c0_i32_1 = arith.constant 0 : i32
    return %arg0, %c0_i32, %c0_i32_0 : i32, i32, i32
  }
  func.func @transform_5(%arg0: i32, %arg1: i32) -> (i32, i32, i32, i32) {
    %c0_i32 = arith.constant 0 : i32
    %c0_i32_0 = arith.constant 0 : i32
    %c0_i32_1 = arith.constant 0 : i32
    %c0_i32_2 = arith.constant 0 : i32
    return %arg1, %c0_i32, %c0_i32_0, %c0_i32_1 : i32, i32, i32, i32
  }
  func.func @transform_6(%arg0: i32, %arg1: i32) -> (i32, i32, i32, i32) {
    %c0_i32 = arith.constant 0 : i32
    %c0_i32_0 = arith.constant 0 : i32
    %c0_i32_1 = arith.constant 0 : i32
    %c0_i32_2 = arith.constant 0 : i32
    return %arg1, %c0_i32, %c0_i32_0, %c0_i32_1 : i32, i32, i32, i32
  }
  func.func @transform_7(%arg0: i32, %arg1: i32) -> (i32, i32, i32, i32) {
    %c0_i32 = arith.constant 0 : i32
    %c0_i32_0 = arith.constant 0 : i32
    %c0_i32_1 = arith.constant 0 : i32
    %c0_i32_2 = arith.constant 0 : i32
    return %arg1, %c0_i32, %c0_i32_0, %c0_i32_1 : i32, i32, i32, i32
  }
  func.func @transform_8(%arg0: i32, %arg1: i32) -> (i32, i32, i32, i32) {
    %c0_i32 = arith.constant 0 : i32
    %c0_i32_0 = arith.constant 0 : i32
    %c0_i32_1 = arith.constant 0 : i32
    %c0_i32_2 = arith.constant 0 : i32
    return %arg1, %c0_i32, %c0_i32_0, %c0_i32_1 : i32, i32, i32, i32
  }
  func.func @transform_9(%arg0: i32, %arg1: i32) -> (i32, i32, i32) {
    %c0_i32 = arith.constant 0 : i32
    %c0_i32_0 = arith.constant 0 : i32
    %c0_i32_1 = arith.constant 0 : i32
    return %arg1, %c0_i32, %c0_i32_0 : i32, i32, i32
  }
  func.func @transform_10(%arg0: i32, %arg1: i32) -> (i32, i32, i32) {
    %c0_i32 = arith.constant 0 : i32
    %c0_i32_0 = arith.constant 0 : i32
    %c0_i32_1 = arith.constant 0 : i32
    return %arg1, %c0_i32, %c0_i32_0 : i32, i32, i32
  }
  func.func @transform_11(%arg0: i32, %arg1: i32) -> (i32, i32, i32) {
    %c0_i32 = arith.constant 0 : i32
    %c0_i32_0 = arith.constant 0 : i32
    %c0_i32_1 = arith.constant 0 : i32
    return %arg1, %c0_i32, %c0_i32_0 : i32, i32, i32
  }
  func.func @transform_12(%arg0: i32, %arg1: i32) -> (i32, i32, i32) {
    %c0_i32 = arith.constant 0 : i32
    %c0_i32_0 = arith.constant 0 : i32
    %c0_i32_1 = arith.constant 0 : i32
    return %arg1, %c0_i32, %c0_i32_0 : i32, i32, i32
  }
  func.func @transform_13(%arg0: i32, %arg1: i32) -> (i32, i32, i32) {
    %c0_i32 = arith.constant 0 : i32
    %c0_i32_0 = arith.constant 0 : i32
    %c0_i32_1 = arith.constant 0 : i32
    return %arg1, %c0_i32, %c0_i32_0 : i32, i32, i32
  }
  func.func @transform_14(%arg0: i32, %arg1: i32) -> (i32, i32) {
    %c0_i32 = arith.constant 0 : i32
    %c0_i32_0 = arith.constant 0 : i32
    %c0_i32_1 = arith.constant 0 : i32
    return %c0_i32, %c0_i32_0 : i32, i32
  }
  func.func @transform_15(%arg0: i32, %arg1: i32) -> (i32, i32) {
    %c0_i32 = arith.constant 0 : i32
    %c0_i32_0 = arith.constant 0 : i32
    %c0_i32_1 = arith.constant 0 : i32
    return %c0_i32, %c0_i32_0 : i32, i32
  }
  func.func @transform_16(%arg0: i32, %arg1: i32) -> (i32, i32) {
    %c0_i32 = arith.constant 0 : i32
    %c0_i32_0 = arith.constant 0 : i32
    %c0_i32_1 = arith.constant 0 : i32
    return %c0_i32, %c0_i32_0 : i32, i32
  }
  func.func @transform_17(%arg0: i32, %arg1: i32) -> (i32, i32) {
    %c0_i32 = arith.constant 0 : i32
    %c0_i32_0 = arith.constant 0 : i32
    %c0_i32_1 = arith.constant 0 : i32
    return %c0_i32, %c0_i32_0 : i32, i32
  }
  func.func @transform_18(%arg0: i32, %arg1: i32) -> (i32, i32) {
    %c0_i32 = arith.constant 0 : i32
    %c0_i32_0 = arith.constant 0 : i32
    %c0_i32_1 = arith.constant 0 : i32
    return %c0_i32, %c0_i32_0 : i32, i32
  }
  func.func @transform_19(%arg0: i32, %arg1: i32) -> (i32, i32) {
    %c0_i32 = arith.constant 0 : i32
    %c0_i32_0 = arith.constant 0 : i32
    %c0_i32_1 = arith.constant 0 : i32
    return %c0_i32, %c0_i32_0 : i32, i32
  }
  func.func @transform_20(%arg0: i32, %arg1: i32) -> (i32, i32) {
    %c0_i32 = arith.constant 0 : i32
    %c0_i32_0 = arith.constant 0 : i32
    %c0_i32_1 = arith.constant 0 : i32
    return %c0_i32, %c0_i32_0 : i32, i32
  }
  func.func @transform_21(%arg0: i32, %arg1: i32) -> (i32, i32) {
    %c0_i32 = arith.constant 0 : i32
    %c0_i32_0 = arith.constant 0 : i32
    %c0_i32_1 = arith.constant 0 : i32
    return %c0_i32, %c0_i32_0 : i32, i32
  }
  func.func @transform_22(%arg0: i32, %arg1: i32) -> (i32, i32) {
    %c0_i32 = arith.constant 0 : i32
    %c0_i32_0 = arith.constant 0 : i32
    %c0_i32_1 = arith.constant 0 : i32
    return %c0_i32, %c0_i32_0 : i32, i32
  }
  func.func @transform_23(%arg0: i32, %arg1: i32) -> (i32, i32) {
    %c0_i32 = arith.constant 0 : i32
    %c0_i32_0 = arith.constant 0 : i32
    %c0_i32_1 = arith.constant 0 : i32
    return %c0_i32, %c0_i32_0 : i32, i32
  }
  func.func @transform_24(%arg0: i32, %arg1: i32) -> (i32, i32, i32) {
    %c0_i32 = arith.constant 0 : i32
    %c0_i32_0 = arith.constant 0 : i32
    %c0_i32_1 = arith.constant 0 : i32
    return %arg0, %c0_i32, %c0_i32_0 : i32, i32, i32
  }
}

</mosaic_0001>

<llo_original>
// kernel: custom-call.15
$region0: #{custom-call.15}
  %s0 = inlined_call_operand.vmem [shape: f32[8,2,16], index: 0, kind: output, shape index: {}]

// kernel: custom-call.7
$region0: #{custom-call.7}
  %s0 = inlined_call_operand.vmem [shape: f32[2,16], index: 0, kind: output, shape index: {}]

// kernel: custom-call.6
$region0: #{custom-call.6}
  %s0 = inlined_call_operand.vmem [shape: bf16[2,16], index: 0, kind: output, shape index: {}]

// kernel: custom-call.14
$region0: #{custom-call.14}
  %s0 = inlined_call_operand.vmem [shape: f32[8,2,16], index: 0, kind: output, shape index: {}]

// kernel: relation_aware_pos_forward.3
$region0: #{relation_aware_pos_forward.3}
  #allocation0 [shape = 'u32[]', space=smem, size = 0x4, offset = 0x4, fixed_abs, tag = 'smem constant byte address 0x4 - core index']
  #allocation1 [shape = 'u32[144,128]{1,0:T(1,128)}', space=vmem, size = 0x12000, scoped, tag = 'internal scratch']
  %s0 = inlined_call_operand.vmem [shape: f32[2,8,32], index: 0, kind: input, shape index: {}]
  %s1 = inlined_call_operand.vmem [shape: f32[2,8,32], index: 1, kind: input, shape index: {}]
  %s2 = inlined_call_operand.vmem [shape: f32[2,8,1], index: 2, kind: input, shape index: {}]
  %s3 = inlined_call_operand.vmem [shape: f32[32,128], index: 3, kind: input, shape index: {}]
  %s4 = inlined_call_operand.vmem [shape: f32[32,128], index: 4, kind: input, shape index: {}]
  %s5 = inlined_call_operand.vmem [shape: f32[1,128], index: 5, kind: input, shape index: {}]
  %s6 = inlined_call_operand.hbm [shape: f32[2,1,128], index: 6, kind: output, shape index: {0}]
  %s7 = inlined_call_operand.hbm [shape: f32[2,1,8], index: 7, kind: output, shape index: {1}]
  %8 = xla_tuple %s6, %s7
  %s9 = sld [smem:[#allocation0]]
  $region42: #{relation_aware_pos_forward.3} parent=0
    _
  %s11 = ssub.s32 1, %s9
  %s12 = scalar_select 0, %s11, %s9
  $region1: #{relation_aware_pos_forward.3} parent=0
    #allocation2 [shape = 'u8[1024]{0}', space=vmem, size = 0x400, scoped, tag = 'output window, operand 0, single buffered']
    #allocation3 [shape = 's32[1]{0}', space=sflag, size = 0x4, scoped, tag = 'scoped memory for relation_aware_pos_forward.3']
    #allocation4 [shape = 'u8[1024]{0}', space=vmem, size = 0x400, scoped, tag = 'output window, operand 1, single buffered']
    #allocation5 [shape = 's32[1]{0}', space=sflag, size = 0x4, scoped, tag = 'scoped memory for relation_aware_pos_forward.3']
    %13 = vsyncpa [#allocation3], 0
    %14 = vsyncpa [#allocation5], 0
    // Predicated region
    $region2: #{relation_aware_pos_forward.3} parent=1 // pred_check
      _
    $region3: #{relation_aware_pos_forward.3} parent=1 // pred_check_branch
      %16 = sbr.rel (0) target = $region5
    $region4: #{relation_aware_pos_forward.3} parent=1 // pred_region
      _
    $region5: #{relation_aware_pos_forward.3} parent=1 // pred_fallthru
      _
    // Predicated region
    $region6: #{relation_aware_pos_forward.3} parent=1 // pred_check
      _
    $region7: #{relation_aware_pos_forward.3} parent=1 // pred_check_branch
      %18 = sbr.rel (0) target = $region9
    $region8: #{relation_aware_pos_forward.3} parent=1 // pred_region
      _
    $region9: #{relation_aware_pos_forward.3} parent=1 // pred_fallthru
      _
    // Predicated region
    $region10: #{relation_aware_pos_forward.3} parent=1 // pred_check
      _
    $region11: #{relation_aware_pos_forward.3} parent=1 // pred_check_branch
      %20 = sbr.rel (0) target = $region13
    $region12: #{relation_aware_pos_forward.3} parent=1 // pred_region
      _
    $region13: #{relation_aware_pos_forward.3} parent=1 // pred_fallthru
      _
    // Predicated region
    $region14: #{relation_aware_pos_forward.3} parent=1 // pred_check
      _
    $region15: #{relation_aware_pos_forward.3} parent=1 // pred_check_branch
      %22 = sbr.rel (0) target = $region17
    $region16: #{relation_aware_pos_forward.3} parent=1 // pred_region
      _
    $region17: #{relation_aware_pos_forward.3} parent=1 // pred_fallthru
      _
    // Predicated region
    $region18: #{relation_aware_pos_forward.3} parent=1 // pred_check
      _
    $region19: #{relation_aware_pos_forward.3} parent=1 // pred_check_branch
      %24 = sbr.rel (0) target = $region21
    $region20: #{relation_aware_pos_forward.3} parent=1 // pred_region
      _
    $region21: #{relation_aware_pos_forward.3} parent=1 // pred_fallthru
      _
    // Predicated region
    $region22: #{relation_aware_pos_forward.3} parent=1 // pred_check
      _
    $region23: #{relation_aware_pos_forward.3} parent=1 // pred_check_branch
      %26 = sbr.rel (0) target = $region25
    $region24: #{relation_aware_pos_forward.3} parent=1 // pred_region
      _
    $region25: #{relation_aware_pos_forward.3} parent=1 // pred_fallthru
      _
    %v27 = vld [vmem:[%s0] sm:$0xff]
    %v28 = vld [vmem:[%s1] sm:$0xff]
    %v29 = vld [vmem:[%s2] sm:$0xff]
    %31 = vset.pattern.permute.xlu0 0
    %32 = vperm.xlu0 %31, %v29
    %v33 = vpop.permute.xlu0 %32
    %v35 = vmul.f32 %v28, %v33
    %vm36 = vcmask 261120
    %v37 = vsel %vm36, %v35, -inf
    %v38 = vrot.slane %v37, 4
    %v39 = vmax.f32 %v37, %v38
    %v40 = vrot.slane %v39, 2
    %v41 = vmax.f32 %v39, %v40
    %v42 = vrot.slane %v41, 1
    %v43 = vmax.f32 %v41, %v42
    %v45 = vsel %vm36, %v43, 0
    %v48 = vsel %vm36, %v27, 0
    %50 = vmatprep.subr.mxu0 0.0
    %51 = vmatpush1.xpose.msra.mxu0 %v48
    %52 = vmatprep.subr.mxu0 0.0
    %53 = vmatpush1.xpose.msra.mxu0 0.0
    %54 = vmatprep.subr.mxu0 0.0
    %55 = vmatpush1.xpose.msra.mxu0 0.0
    %56 = vmatprep.subr.mxu0 0.0
    %57 = vmatpush1.xpose.msra.mxu0 0.0
    %58 = vmatprep.subr.mxu0 0.0
    %59 = vmatpush1.xpose.msra.mxu0 0.0
    %60 = vmatprep.subr.mxu0 0.0
    %61 = vmatpush1.xpose.msra.mxu0 0.0
    %62 = vmatprep.subr.mxu0 0.0
    %63 = vmatpush1.xpose.msra.mxu0 0.0
    %64 = vmatprep.subr.mxu0 0.0
    %65 = vmatpush1.xpose.msra.mxu0 0.0
    %66 = vmatprep.subr.mxu0 0.0
    %67 = vmatpush1.xpose.msra.mxu0 0.0
    %68 = vmatprep.subr.mxu0 0.0
    %69 = vmatpush1.xpose.msra.mxu0 0.0
    %70 = vmatprep.subr.mxu0 0.0
    %71 = vmatpush1.xpose.msra.mxu0 0.0
    %72 = vmatprep.subr.mxu0 0.0
    %73 = vmatpush1.xpose.msra.mxu0 0.0
    %74 = vmatprep.subr.mxu0 0.0
    %75 = vmatpush1.xpose.msra.mxu0 0.0
    %76 = vmatprep.subr.mxu0 0.0
    %77 = vmatpush1.xpose.msra.mxu0 0.0
    %78 = vmatprep.subr.mxu0 0.0
    %79 = vmatpush1.xpose.msra.mxu0 0.0
    %80 = vmatprep.subr.mxu0 0.0
    %81 = vmatpush1.xpose.msra.mxu0 0.0
    %82 = vmatprep.subr.mxu0 0.0
    %83 = vmatpush1.xpose.msra.mxu0 0.0
    %84 = vmatprep.subr.mxu0 0.0
    %85 = vmatpush1.xpose.msra.mxu0 0.0
    %86 = vmatprep.subr.mxu0 0.0
    %87 = vmatpush1.xpose.msra.mxu0 0.0
    %88 = vmatprep.subr.mxu0 0.0
    %89 = vmatpush1.xpose.msra.mxu0 0.0
    %90 = vmatprep.subr.mxu0 0.0
    %91 = vmatpush1.xpose.msra.mxu0 0.0
    %92 = vmatprep.subr.mxu0 0.0
    %93 = vmatpush1.xpose.msra.mxu0 0.0
    %94 = vmatprep.subr.mxu0 0.0
    %95 = vmatpush1.xpose.msra.mxu0 0.0
    %96 = vmatprep.subr.mxu0 0.0
    %97 = vmatpush1.xpose.msra.mxu0 0.0
    %98 = vmatprep.subr.mxu0 0.0
    %99 = vmatpush1.xpose.msra.mxu0 0.0
    %100 = vmatprep.subr.mxu0 0.0
    %101 = vmatpush1.xpose.msra.mxu0 0.0
    %102 = vmatprep.subr.mxu0 0.0
    %103 = vmatpush1.xpose.msra.mxu0 0.0
    %104 = vmatprep.subr.mxu0 0.0
    %105 = vmatpush1.xpose.msra.mxu0 0.0
    %106 = vmatprep.subr.mxu0 0.0
    %107 = vmatpush1.xpose.msra.mxu0 0.0
    %108 = vmatprep.subr.mxu0 0.0
    %109 = vmatpush1.xpose.msra.mxu0 0.0
    %110 = vmatprep.subr.mxu0 0.0
    %111 = vmatpush1.xpose.msra.mxu0 0.0
    %112 = vmatprep.subr.mxu0 0.0
    %113 = vmatpush1.xpose.msra.mxu0 0.0
    %114 = vmatprep.mubr.f32.mxu0 0.0
    %115 = vmatmul.mubr.f32.gmra.mrb[0].mxu0 %v45
    %v116 = vpop.f32.mrb[0].mxu0
    %v117 = vadd.f32 0.0, %v116
    %v118 = vpop.f32.mrb[0].mxu0
    %119 = vdwg.mxu0
    %vm120 = vcmask 57344
    %v121 = vsel %vm120, %v117, -inf
    %122 = vmax.xlane.f32.xlu0 %v121
    %v123 = vpop.xlane.xlu0 %122
    %v124 = vsub.f32 %v117, %v123
    %v125 = vmul.f32 %v124, 1.442695
    %v126 = vpow.pop %v125
    %v127 = vsel %vm120, %v126, 0.0
    %128 = vadd.xlane.f32.xlu0 %v127
    %v129 = vpop.xlane.xlu0 %128
    %v130 = vrcp.pop %v129
    %v131 = vmul.f32 %v126, %v130
    %v132 = vmul.f32 %v27, %v33
    %v134 = vsel %vm36, %v132, 0
    %136 = vmatprep.subr.mxu0 0.0
    %137 = vmatpush1.xpose.msra.mxu0 %v48
    %138 = vmatprep.subr.mxu0 0.0
    %139 = vmatpush1.xpose.msra.mxu0 0.0
    %140 = vmatprep.subr.mxu0 0.0
    %141 = vmatpush1.xpose.msra.mxu0 0.0
    %142 = vmatprep.subr.mxu0 0.0
    %143 = vmatpush1.xpose.msra.mxu0 0.0
    %144 = vmatprep.subr.mxu0 0.0
    %145 = vmatpush1.xpose.msra.mxu0 0.0
    %146 = vmatprep.subr.mxu0 0.0
    %147 = vmatpush1.xpose.msra.mxu0 0.0
    %148 = vmatprep.subr.mxu0 0.0
    %149 = vmatpush1.xpose.msra.mxu0 0.0
    %150 = vmatprep.subr.mxu0 0.0
    %151 = vmatpush1.xpose.msra.mxu0 0.0
    %152 = vmatprep.subr.mxu0 0.0
    %153 = vmatpush1.xpose.msra.mxu0 0.0
    %154 = vmatprep.subr.mxu0 0.0
    %155 = vmatpush1.xpose.msra.mxu0 0.0
    %156 = vmatprep.subr.mxu0 0.0
    %157 = vmatpush1.xpose.msra.mxu0 0.0
    %158 = vmatprep.subr.mxu0 0.0
    %159 = vmatpush1.xpose.msra.mxu0 0.0
    %160 = vmatprep.subr.mxu0 0.0
    %161 = vmatpush1.xpose.msra.mxu0 0.0
    %162 = vmatprep.subr.mxu0 0.0
    %163 = vmatpush1.xpose.msra.mxu0 0.0
    %164 = vmatprep.subr.mxu0 0.0
    %165 = vmatpush1.xpose.msra.mxu0 0.0
    %166 = vmatprep.subr.mxu0 0.0
    %167 = vmatpush1.xpose.msra.mxu0 0.0
    %168 = vmatprep.subr.mxu0 0.0
    %169 = vmatpush1.xpose.msra.mxu0 0.0
    %170 = vmatprep.subr.mxu0 0.0
    %171 = vmatpush1.xpose.msra.mxu0 0.0
    %172 = vmatprep.subr.mxu0 0.0
    %173 = vmatpush1.xpose.msra.mxu0 0.0
    %174 = vmatprep.subr.mxu0 0.0
    %175 = vmatpush1.xpose.msra.mxu0 0.0
    %176 = vmatprep.subr.mxu0 0.0
    %177 = vmatpush1.xpose.msra.mxu0 0.0
    %178 = vmatprep.subr.mxu0 0.0
    %179 = vmatpush1.xpose.msra.mxu0 0.0
    %180 = vmatprep.subr.mxu0 0.0
    %181 = vmatpush1.xpose.msra.mxu0 0.0
    %182 = vmatprep.subr.mxu0 0.0
    %183 = vmatpush1.xpose.msra.mxu0 0.0
    %184 = vmatprep.subr.mxu0 0.0
    %185 = vmatpush1.xpose.msra.mxu0 0.0
    %186 = vmatprep.subr.mxu0 0.0
    %187 = vmatpush1.xpose.msra.mxu0 0.0
    %188 = vmatprep.subr.mxu0 0.0
    %189 = vmatpush1.xpose.msra.mxu0 0.0
    %190 = vmatprep.subr.mxu0 0.0
    %191 = vmatpush1.xpose.msra.mxu0 0.0
    %192 = vmatprep.subr.mxu0 0.0
    %193 = vmatpush1.xpose.msra.mxu0 0.0
    %194 = vmatprep.subr.mxu0 0.0
    %195 = vmatpush1.xpose.msra.mxu0 0.0
    %196 = vmatprep.subr.mxu0 0.0
    %197 = vmatpush1.xpose.msra.mxu0 0.0
    %198 = vmatprep.subr.mxu0 0.0
    %199 = vmatpush1.xpose.msra.mxu0 0.0
    %200 = vmatprep.mubr.f32.mxu0 0.0
    %201 = vmatmul.mubr.f32.gmra.mrb[0].mxu0 %v134
    %v202 = vpop.f32.mrb[0].mxu0
    %v203 = vadd.f32 0.0, %v202
    %v204 = vpop.f32.mrb[0].mxu0
    %205 = vdwg.mxu0
    %vm206 = vcmask 64512
    %v207 = vsel %vm206, %v203, 0.0
    %v208 = vrot.slane %v207, 4
    %v209 = vadd.f32 %v207, %v208
    %v210 = vrot.slane %v209, 2
    %v211 = vadd.f32 %v209, %v210
    %v212 = vrot.slane %v211, 1
    %v213 = vadd.f32 %v211, %v212
    %v214 = vsel %vm206, %v213, -inf
    %215 = vmax.xlane.f32.xlu0 %v214
    %v216 = vpop.xlane.xlu0 %215
    %v217 = vsub.f32 %v213, %v216
    %v218 = vmul.f32 %v217, 1.442695
    %v219 = vpow.pop %v218
    %v220 = vsel %vm206, %v219, 0.0
    %221 = vadd.xlane.f32.xlu0 %v220
    %v222 = vpop.xlane.xlu0 %221
    %v223 = vrcp.pop %v222
    %v224 = vmul.f32 %v219, %v223
    %v226 = vsel %vm206, %v224, 0
    %228 = vmatprep.subr.mxu0 0.0
    %229 = vmatpush1.msra.mxu0 %v27
    %230 = vmatprep.subr.mxu0 0.0
    %231 = vmatpush1.msra.mxu0 0.0
    %232 = vmatprep.subr.mxu0 0.0
    %233 = vmatpush1.msra.mxu0 0.0
    %234 = vmatprep.subr.mxu0 0.0
    %235 = vmatpush1.msra.mxu0 0.0
    %236 = vmatprep.subr.mxu0 0.0
    %237 = vmatpush1.msra.mxu0 0.0
    %238 = vmatprep.subr.mxu0 0.0
    %239 = vmatpush1.msra.mxu0 0.0
    %240 = vmatprep.subr.mxu0 0.0
    %241 = vmatpush1.msra.mxu0 0.0
    %242 = vmatprep.subr.mxu0 0.0
    %243 = vmatpush1.msra.mxu0 0.0
    %244 = vmatprep.subr.mxu0 0.0
    %245 = vmatpush1.msra.mxu0 0.0
    %246 = vmatprep.subr.mxu0 0.0
    %247 = vmatpush1.msra.mxu0 0.0
    %248 = vmatprep.subr.mxu0 0.0
    %249 = vmatpush1.msra.mxu0 0.0
    %250 = vmatprep.subr.mxu0 0.0
    %251 = vmatpush1.msra.mxu0 0.0
    %252 = vmatprep.subr.mxu0 0.0
    %253 = vmatpush1.msra.mxu0 0.0
    %254 = vmatprep.subr.mxu0 0.0
    %255 = vmatpush1.msra.mxu0 0.0
    %256 = vmatprep.subr.mxu0 0.0
    %257 = vmatpush1.msra.mxu0 0.0
    %258 = vmatprep.subr.mxu0 0.0
    %259 = vmatpush1.msra.mxu0 0.0
    %260 = vmatprep.subr.mxu0 0.0
    %261 = vmatpush1.msra.mxu0 0.0
    %262 = vmatprep.subr.mxu0 0.0
    %263 = vmatpush1.msra.mxu0 0.0
    %264 = vmatprep.subr.mxu0 0.0
    %265 = vmatpush1.msra.mxu0 0.0
    %266 = vmatprep.subr.mxu0 0.0
    %267 = vmatpush1.msra.mxu0 0.0
    %268 = vmatprep.subr.mxu0 0.0
    %269 = vmatpush1.msra.mxu0 0.0
    %270 = vmatprep.subr.mxu0 0.0
    %271 = vmatpush1.msra.mxu0 0.0
    %272 = vmatprep.subr.mxu0 0.0
    %273 = vmatpush1.msra.mxu0 0.0
    %274 = vmatprep.subr.mxu0 0.0
    %275 = vmatpush1.msra.mxu0 0.0
    %276 = vmatprep.subr.mxu0 0.0
    %277 = vmatpush1.msra.mxu0 0.0
    %278 = vmatprep.subr.mxu0 0.0
    %279 = vmatpush1.msra.mxu0 0.0
    %280 = vmatprep.subr.mxu0 0.0
    %281 = vmatpush1.msra.mxu0 0.0
    %282 = vmatprep.subr.mxu0 0.0
    %283 = vmatpush1.msra.mxu0 0.0
    %284 = vmatprep.subr.mxu0 0.0
    %285 = vmatpush1.msra.mxu0 0.0
    %286 = vmatprep.subr.mxu0 0.0
    %287 = vmatpush1.msra.mxu0 0.0
    %288 = vmatprep.subr.mxu0 0.0
    %289 = vmatpush1.msra.mxu0 0.0
    %290 = vmatprep.subr.mxu0 0.0
    %291 = vmatpush1.msra.mxu0 0.0
    %292 = vmatprep.mubr.f32.mxu0 0.0
    %293 = vmatmul.mubr.f32.gmra.mrb[0].mxu0 %v226
    %v294 = vpop.f32.mrb[0].mxu0
    %v295 = vadd.f32 0.0, %v294
    %v296 = vpop.f32.mrb[0].mxu0
    %297 = vdwg.mxu0
    %v298 = vld [vmem:[%s3] sm:$0xff]
    %v299 = vld [vmem:[%s3 + $0x8] sm:$0xff]
    %v300 = vld [vmem:[%s3 + $0x10] sm:$0xff]
    %v301 = vld [vmem:[%s3 + $0x18] sm:$0xff]
    %v302 = vld [vmem:[%s4] sm:$0xff]
    %v303 = vld [vmem:[%s4 + $0x8] sm:$0xff]
    %v304 = vld [vmem:[%s4 + $0x10] sm:$0xff]
    %v305 = vld [vmem:[%s4 + $0x18] sm:$0xff]
    %v307 = vsel %vm36, %v295, 0
    %309 = vmatprep.subr.mxu0 0.0
    %310 = vmatpush1.msra.mxu0 %v302
    %311 = vmatprep.subr.mxu0 0.0
    %312 = vmatpush1.msra.mxu0 %v303
    %313 = vmatprep.subr.mxu0 0.0
    %314 = vmatpush1.msra.mxu0 %v304
    %315 = vmatprep.subr.mxu0 0.0
    %316 = vmatpush1.msra.mxu0 %v305
    %317 = vmatprep.subr.mxu0 0.0
    %318 = vmatpush1.msra.mxu0 0.0
    %319 = vmatprep.subr.mxu0 0.0
    %320 = vmatpush1.msra.mxu0 0.0
    %321 = vmatprep.subr.mxu0 0.0
    %322 = vmatpush1.msra.mxu0 0.0
    %323 = vmatprep.subr.mxu0 0.0
    %324 = vmatpush1.msra.mxu0 0.0
    %325 = vmatprep.subr.mxu0 0.0
    %326 = vmatpush1.msra.mxu0 0.0
    %327 = vmatprep.subr.mxu0 0.0
    %328 = vmatpush1.msra.mxu0 0.0
    %329 = vmatprep.subr.mxu0 0.0
    %330 = vmatpush1.msra.mxu0 0.0
    %331 = vmatprep.subr.mxu0 0.0
    %332 = vmatpush1.msra.mxu0 0.0
    %333 = vmatprep.subr.mxu0 0.0
    %334 = vmatpush1.msra.mxu0 0.0
    %335 = vmatprep.subr.mxu0 0.0
    %336 = vmatpush1.msra.mxu0 0.0
    %337 = vmatprep.subr.mxu0 0.0
    %338 = vmatpush1.msra.mxu0 0.0
    %339 = vmatprep.subr.mxu0 0.0
    %340 = vmatpush1.msra.mxu0 0.0
    %341 = vmatprep.subr.mxu0 0.0
    %342 = vmatpush1.msra.mxu0 0.0
    %343 = vmatprep.subr.mxu0 0.0
    %344 = vmatpush1.msra.mxu0 0.0
    %345 = vmatprep.subr.mxu0 0.0
    %346 = vmatpush1.msra.mxu0 0.0
    %347 = vmatprep.subr.mxu0 0.0
    %348 = vmatpush1.msra.mxu0 0.0
    %349 = vmatprep.subr.mxu0 0.0
    %350 = vmatpush1.msra.mxu0 0.0
    %351 = vmatprep.subr.mxu0 0.0
    %352 = vmatpush1.msra.mxu0 0.0
    %353 = vmatprep.subr.mxu0 0.0
    %354 = vmatpush1.msra.mxu0 0.0
    %355 = vmatprep.subr.mxu0 0.0
    %356 = vmatpush1.msra.mxu0 0.0
    %357 = vmatprep.subr.mxu0 0.0
    %358 = vmatpush1.msra.mxu0 0.0
    %359 = vmatprep.subr.mxu0 0.0
    %360 = vmatpush1.msra.mxu0 0.0
    %361 = vmatprep.subr.mxu0 0.0
    %362 = vmatpush1.msra.mxu0 0.0
    %363 = vmatprep.subr.mxu0 0.0
    %364 = vmatpush1.msra.mxu0 0.0
    %365 = vmatprep.subr.mxu0 0.0
    %366 = vmatpush1.msra.mxu0 0.0
    %367 = vmatprep.subr.mxu0 0.0
    %368 = vmatpush1.msra.mxu0 0.0
    %369 = vmatprep.subr.mxu0 0.0
    %370 = vmatpush1.msra.mxu0 0.0
    %371 = vmatprep.subr.mxu0 0.0
    %372 = vmatpush1.msra.mxu0 0.0
    %373 = vmatprep.mubr.f32.mxu0 0.0
    %374 = vmatmul.mubr.f32.gmra.mrb[0].mxu0 %v307
    %v375 = vpop.f32.mrb[0].mxu0
    %v376 = vadd.f32 0.0, %v375
    %v377 = vpop.f32.mrb[0].mxu0
    %378 = vdwg.mxu0
    %379 = vmatprep.subr.mxu0 0.0
    %380 = vmatpush1.msra.mxu0 %v298
    %381 = vmatprep.subr.mxu0 0.0
    %382 = vmatpush1.msra.mxu0 %v299
    %383 = vmatprep.subr.mxu0 0.0
    %384 = vmatpush1.msra.mxu0 %v300
    %385 = vmatprep.subr.mxu0 0.0
    %386 = vmatpush1.msra.mxu0 %v301
    %387 = vmatprep.subr.mxu0 0.0
    %388 = vmatpush1.msra.mxu0 0.0
    %389 = vmatprep.subr.mxu0 0.0
    %390 = vmatpush1.msra.mxu0 0.0
    %391 = vmatprep.subr.mxu0 0.0
    %392 = vmatpush1.msra.mxu0 0.0
    %393 = vmatprep.subr.mxu0 0.0
    %394 = vmatpush1.msra.mxu0 0.0
    %395 = vmatprep.subr.mxu0 0.0
    %396 = vmatpush1.msra.mxu0 0.0
    %397 = vmatprep.subr.mxu0 0.0
    %398 = vmatpush1.msra.mxu0 0.0
    %399 = vmatprep.subr.mxu0 0.0
    %400 = vmatpush1.msra.mxu0 0.0
    %401 = vmatprep.subr.mxu0 0.0
    %402 = vmatpush1.msra.mxu0 0.0
    %403 = vmatprep.subr.mxu0 0.0
    %404 = vmatpush1.msra.mxu0 0.0
    %405 = vmatprep.subr.mxu0 0.0
    %406 = vmatpush1.msra.mxu0 0.0
    %407 = vmatprep.subr.mxu0 0.0
    %408 = vmatpush1.msra.mxu0 0.0
    %409 = vmatprep.subr.mxu0 0.0
    %410 = vmatpush1.msra.mxu0 0.0
    %411 = vmatprep.subr.mxu0 0.0
    %412 = vmatpush1.msra.mxu0 0.0
    %413 = vmatprep.subr.mxu0 0.0
    %414 = vmatpush1.msra.mxu0 0.0
    %415 = vmatprep.subr.mxu0 0.0
    %416 = vmatpush1.msra.mxu0 0.0
    %417 = vmatprep.subr.mxu0 0.0
    %418 = vmatpush1.msra.mxu0 0.0
    %419 = vmatprep.subr.mxu0 0.0
    %420 = vmatpush1.msra.mxu0 0.0
    %421 = vmatprep.subr.mxu0 0.0
    %422 = vmatpush1.msra.mxu0 0.0
    %423 = vmatprep.subr.mxu0 0.0
    %424 = vmatpush1.msra.mxu0 0.0
    %425 = vmatprep.subr.mxu0 0.0
    %426 = vmatpush1.msra.mxu0 0.0
    %427 = vmatprep.subr.mxu0 0.0
    %428 = vmatpush1.msra.mxu0 0.0
    %429 = vmatprep.subr.mxu0 0.0
    %430 = vmatpush1.msra.mxu0 0.0
    %431 = vmatprep.subr.mxu0 0.0
    %432 = vmatpush1.msra.mxu0 0.0
    %433 = vmatprep.subr.mxu0 0.0
    %434 = vmatpush1.msra.mxu0 0.0
    %435 = vmatprep.subr.mxu0 0.0
    %436 = vmatpush1.msra.mxu0 0.0
    %437 = vmatprep.subr.mxu0 0.0
    %438 = vmatpush1.msra.mxu0 0.0
    %439 = vmatprep.subr.mxu0 0.0
    %440 = vmatpush1.msra.mxu0 0.0
    %441 = vmatprep.subr.mxu0 0.0
    %442 = vmatpush1.msra.mxu0 0.0
    %443 = vmatprep.mubr.f32.mxu0 0.0
    %444 = vmatmul.mubr.f32.gmra.mrb[0].mxu0 %v45
    %v445 = vpop.f32.mrb[0].mxu0
    %v446 = vadd.f32 %v376, %v445
    %v447 = vpop.f32.mrb[0].mxu0
    %448 = vdwg.mxu0
    %v449 = vld [vmem:[%s5] sm:$0x1]
    %v450 = vadd.f32 %v446, %v449
    %451 = vst [vmem:[#allocation2] sm:$0x1] %v450
    %452 = vst.msk [vmem:[#allocation4] sm:$0x1] %vm120, %v131
    %s453 = scalar_lea.vmem %s0, 8
    %v454 = vld [vmem:[%s453] sm:$0xff]
    %s455 = scalar_lea.vmem %s1, 8
    %v456 = vld [vmem:[%s455] sm:$0xff]
    %s457 = scalar_lea.vmem %s2, 8
    %v458 = vld [vmem:[%s457] sm:$0xff]
    %460 = vset.pattern.permute.xlu0 0
    %461 = vperm.xlu0 %460, %v458
    %v462 = vpop.permute.xlu0 %461
    %v464 = vmul.f32 %v456, %v462
    %v465 = vsel %vm36, %v464, -inf
    %v466 = vrot.slane %v465, 4
    %v467 = vmax.f32 %v465, %v466
    %v468 = vrot.slane %v467, 2
    %v469 = vmax.f32 %v467, %v468
    %v470 = vrot.slane %v469, 1
    %v471 = vmax.f32 %v469, %v470
    %v473 = vsel %vm36, %v471, 0
    %v476 = vsel %vm36, %v454, 0
    %478 = vmatprep.subr.mxu0 0.0
    %479 = vmatpush1.xpose.msra.mxu0 %v476
    %480 = vmatprep.subr.mxu0 0.0
    %481 = vmatpush1.xpose.msra.mxu0 0.0
    %482 = vmatprep.subr.mxu0 0.0
    %483 = vmatpush1.xpose.msra.mxu0 0.0
    %484 = vmatprep.subr.mxu0 0.0
    %485 = vmatpush1.xpose.msra.mxu0 0.0
    %486 = vmatprep.subr.mxu0 0.0
    %487 = vmatpush1.xpose.msra.mxu0 0.0
    %488 = vmatprep.subr.mxu0 0.0
    %489 = vmatpush1.xpose.msra.mxu0 0.0
    %490 = vmatprep.subr.mxu0 0.0
    %491 = vmatpush1.xpose.msra.mxu0 0.0
    %492 = vmatprep.subr.mxu0 0.0
    %493 = vmatpush1.xpose.msra.mxu0 0.0
    %494 = vmatprep.subr.mxu0 0.0
    %495 = vmatpush1.xpose.msra.mxu0 0.0
    %496 = vmatprep.subr.mxu0 0.0
    %497 = vmatpush1.xpose.msra.mxu0 0.0
    %498 = vmatprep.subr.mxu0 0.0
    %499 = vmatpush1.xpose.msra.mxu0 0.0
    %500 = vmatprep.subr.mxu0 0.0
    %501 = vmatpush1.xpose.msra.mxu0 0.0
    %502 = vmatprep.subr.mxu0 0.0
    %503 = vmatpush1.xpose.msra.mxu0 0.0
    %504 = vmatprep.subr.mxu0 0.0
    %505 = vmatpush1.xpose.msra.mxu0 0.0
    %506 = vmatprep.subr.mxu0 0.0
    %507 = vmatpush1.xpose.msra.mxu0 0.0
    %508 = vmatprep.subr.mxu0 0.0
    %509 = vmatpush1.xpose.msra.mxu0 0.0
    %510 = vmatprep.subr.mxu0 0.0
    %511 = vmatpush1.xpose.msra.mxu0 0.0
    %512 = vmatprep.subr.mxu0 0.0
    %513 = vmatpush1.xpose.msra.mxu0 0.0
    %514 = vmatprep.subr.mxu0 0.0
    %515 = vmatpush1.xpose.msra.mxu0 0.0
    %516 = vmatprep.subr.mxu0 0.0
    %517 = vmatpush1.xpose.msra.mxu0 0.0
    %518 = vmatprep.subr.mxu0 0.0
    %519 = vmatpush1.xpose.msra.mxu0 0.0
    %520 = vmatprep.subr.mxu0 0.0
    %521 = vmatpush1.xpose.msra.mxu0 0.0
    %522 = vmatprep.subr.mxu0 0.0
    %523 = vmatpush1.xpose.msra.mxu0 0.0
    %524 = vmatprep.subr.mxu0 0.0
    %525 = vmatpush1.xpose.msra.mxu0 0.0
    %526 = vmatprep.subr.mxu0 0.0
    %527 = vmatpush1.xpose.msra.mxu0 0.0
    %528 = vmatprep.subr.mxu0 0.0
    %529 = vmatpush1.xpose.msra.mxu0 0.0
    %530 = vmatprep.subr.mxu0 0.0
    %531 = vmatpush1.xpose.msra.mxu0 0.0
    %532 = vmatprep.subr.mxu0 0.0
    %533 = vmatpush1.xpose.msra.mxu0 0.0
    %534 = vmatprep.subr.mxu0 0.0
    %535 = vmatpush1.xpose.msra.mxu0 0.0
    %536 = vmatprep.subr.mxu0 0.0
    %537 = vmatpush1.xpose.msra.mxu0 0.0
    %538 = vmatprep.subr.mxu0 0.0
    %539 = vmatpush1.xpose.msra.mxu0 0.0
    %540 = vmatprep.subr.mxu0 0.0
    %541 = vmatpush1.xpose.msra.mxu0 0.0
    %542 = vmatprep.mubr.f32.mxu0 0.0
    %543 = vmatmul.mubr.f32.gmra.mrb[0].mxu0 %v473
    %v544 = vpop.f32.mrb[0].mxu0
    %v545 = vadd.f32 0.0, %v544
    %v546 = vpop.f32.mrb[0].mxu0
    %547 = vdwg.mxu0
    %v548 = vsel %vm120, %v545, -inf
    %549 = vmax.xlane.f32.xlu0 %v548
    %v550 = vpop.xlane.xlu0 %549
    %v551 = vsub.f32 %v545, %v550
    %v552 = vmul.f32 %v551, 1.442695
    %v553 = vpow.pop %v552
    %v554 = vsel %vm120, %v553, 0.0
    %555 = vadd.xlane.f32.xlu0 %v554
    %v556 = vpop.xlane.xlu0 %555
    %v557 = vrcp.pop %v556
    %v558 = vmul.f32 %v553, %v557
    %v559 = vmul.f32 %v454, %v462
    %v561 = vsel %vm36, %v559, 0
    %563 = vmatprep.subr.mxu0 0.0
    %564 = vmatpush1.xpose.msra.mxu0 %v476
    %565 = vmatprep.subr.mxu0 0.0
    %566 = vmatpush1.xpose.msra.mxu0 0.0
    %567 = vmatprep.subr.mxu0 0.0
    %568 = vmatpush1.xpose.msra.mxu0 0.0
    %569 = vmatprep.subr.mxu0 0.0
    %570 = vmatpush1.xpose.msra.mxu0 0.0
    %571 = vmatprep.subr.mxu0 0.0
    %572 = vmatpush1.xpose.msra.mxu0 0.0
    %573 = vmatprep.subr.mxu0 0.0
    %574 = vmatpush1.xpose.msra.mxu0 0.0
    %575 = vmatprep.subr.mxu0 0.0
    %576 = vmatpush1.xpose.msra.mxu0 0.0
    %577 = vmatprep.subr.mxu0 0.0
    %578 = vmatpush1.xpose.msra.mxu0 0.0
    %579 = vmatprep.subr.mxu0 0.0
    %580 = vmatpush1.xpose.msra.mxu0 0.0
    %581 = vmatprep.subr.mxu0 0.0
    %582 = vmatpush1.xpose.msra.mxu0 0.0
    %583 = vmatprep.subr.mxu0 0.0
    %584 = vmatpush1.xpose.msra.mxu0 0.0
    %585 = vmatprep.subr.mxu0 0.0
    %586 = vmatpush1.xpose.msra.mxu0 0.0
    %587 = vmatprep.subr.mxu0 0.0
    %588 = vmatpush1.xpose.msra.mxu0 0.0
    %589 = vmatprep.subr.mxu0 0.0
    %590 = vmatpush1.xpose.msra.mxu0 0.0
    %591 = vmatprep.subr.mxu0 0.0
    %592 = vmatpush1.xpose.msra.mxu0 0.0
    %593 = vmatprep.subr.mxu0 0.0
    %594 = vmatpush1.xpose.msra.mxu0 0.0
    %595 = vmatprep.subr.mxu0 0.0
    %596 = vmatpush1.xpose.msra.mxu0 0.0
    %597 = vmatprep.subr.mxu0 0.0
    %598 = vmatpush1.xpose.msra.mxu0 0.0
    %599 = vmatprep.subr.mxu0 0.0
    %600 = vmatpush1.xpose.msra.mxu0 0.0
    %601 = vmatprep.subr.mxu0 0.0
    %602 = vmatpush1.xpose.msra.mxu0 0.0
    %603 = vmatprep.subr.mxu0 0.0
    %604 = vmatpush1.xpose.msra.mxu0 0.0
    %605 = vmatprep.subr.mxu0 0.0
    %606 = vmatpush1.xpose.msra.mxu0 0.0
    %607 = vmatprep.subr.mxu0 0.0
    %608 = vmatpush1.xpose.msra.mxu0 0.0
    %609 = vmatprep.subr.mxu0 0.0
    %610 = vmatpush1.xpose.msra.mxu0 0.0
    %611 = vmatprep.subr.mxu0 0.0
    %612 = vmatpush1.xpose.msra.mxu0 0.0
    %613 = vmatprep.subr.mxu0 0.0
    %614 = vmatpush1.xpose.msra.mxu0 0.0
    %615 = vmatprep.subr.mxu0 0.0
    %616 = vmatpush1.xpose.msra.mxu0 0.0
    %617 = vmatprep.subr.mxu0 0.0
    %618 = vmatpush1.xpose.msra.mxu0 0.0
    %619 = vmatprep.subr.mxu0 0.0
    %620 = vmatpush1.xpose.msra.mxu0 0.0
    %621 = vmatprep.subr.mxu0 0.0
    %622 = vmatpush1.xpose.msra.mxu0 0.0
    %623 = vmatprep.subr.mxu0 0.0
    %624 = vmatpush1.xpose.msra.mxu0 0.0
    %625 = vmatprep.subr.mxu0 0.0
    %626 = vmatpush1.xpose.msra.mxu0 0.0
    %627 = vmatprep.mubr.f32.mxu0 0.0
    %628 = vmatmul.mubr.f32.gmra.mrb[0].mxu0 %v561
    %v629 = vpop.f32.mrb[0].mxu0
    %v630 = vadd.f32 0.0, %v629
    %v631 = vpop.f32.mrb[0].mxu0
    %632 = vdwg.mxu0
    %v633 = vsel %vm206, %v630, 0.0
    %v634 = vrot.slane %v633, 4
    %v635 = vadd.f32 %v633, %v634
    %v636 = vrot.slane %v635, 2
    %v637 = vadd.f32 %v635, %v636
    %v638 = vrot.slane %v637, 1
    %v639 = vadd.f32 %v637, %v638
    %v640 = vsel %vm206, %v639, -inf
    %641 = vmax.xlane.f32.xlu0 %v640
    %v642 = vpop.xlane.xlu0 %641
    %v643 = vsub.f32 %v639, %v642
    %v644 = vmul.f32 %v643, 1.442695
    %v645 = vpow.pop %v644
    %v646 = vsel %vm206, %v645, 0.0
    %647 = vadd.xlane.f32.xlu0 %v646
    %v648 = vpop.xlane.xlu0 %647
    %v649 = vrcp.pop %v648
    %v650 = vmul.f32 %v645, %v649
    %v652 = vsel %vm206, %v650, 0
    %654 = vmatprep.subr.mxu0 0.0
    %655 = vmatpush1.msra.mxu0 %v454
    %656 = vmatprep.subr.mxu0 0.0
    %657 = vmatpush1.msra.mxu0 0.0
    %658 = vmatprep.subr.mxu0 0.0
    %659 = vmatpush1.msra.mxu0 0.0
    %660 = vmatprep.subr.mxu0 0.0
    %661 = vmatpush1.msra.mxu0 0.0
    %662 = vmatprep.subr.mxu0 0.0
    %663 = vmatpush1.msra.mxu0 0.0
    %664 = vmatprep.subr.mxu0 0.0
    %665 = vmatpush1.msra.mxu0 0.0
    %666 = vmatprep.subr.mxu0 0.0
    %667 = vmatpush1.msra.mxu0 0.0
    %668 = vmatprep.subr.mxu0 0.0
    %669 = vmatpush1.msra.mxu0 0.0
    %670 = vmatprep.subr.mxu0 0.0
    %671 = vmatpush1.msra.mxu0 0.0
    %672 = vmatprep.subr.mxu0 0.0
    %673 = vmatpush1.msra.mxu0 0.0
    %674 = vmatprep.subr.mxu0 0.0
    %675 = vmatpush1.msra.mxu0 0.0
    %676 = vmatprep.subr.mxu0 0.0
    %677 = vmatpush1.msra.mxu0 0.0
    %678 = vmatprep.subr.mxu0 0.0
    %679 = vmatpush1.msra.mxu0 0.0
    %680 = vmatprep.subr.mxu0 0.0
    %681 = vmatpush1.msra.mxu0 0.0
    %682 = vmatprep.subr.mxu0 0.0
    %683 = vmatpush1.msra.mxu0 0.0
    %684 = vmatprep.subr.mxu0 0.0
    %685 = vmatpush1.msra.mxu0 0.0
    %686 = vmatprep.subr.mxu0 0.0
    %687 = vmatpush1.msra.mxu0 0.0
    %688 = vmatprep.subr.mxu0 0.0
    %689 = vmatpush1.msra.mxu0 0.0
    %690 = vmatprep.subr.mxu0 0.0
    %691 = vmatpush1.msra.mxu0 0.0
    %692 = vmatprep.subr.mxu0 0.0
    %693 = vmatpush1.msra.mxu0 0.0
    %694 = vmatprep.subr.mxu0 0.0
    %695 = vmatpush1.msra.mxu0 0.0
    %696 = vmatprep.subr.mxu0 0.0
    %697 = vmatpush1.msra.mxu0 0.0
    %698 = vmatprep.subr.mxu0 0.0
    %699 = vmatpush1.msra.mxu0 0.0
    %700 = vmatprep.subr.mxu0 0.0
    %701 = vmatpush1.msra.mxu0 0.0
    %702 = vmatprep.subr.mxu0 0.0
    %703 = vmatpush1.msra.mxu0 0.0
    %704 = vmatprep.subr.mxu0 0.0
    %705 = vmatpush1.msra.mxu0 0.0
    %706 = vmatprep.subr.mxu0 0.0
    %707 = vmatpush1.msra.mxu0 0.0
    %708 = vmatprep.subr.mxu0 0.0
    %709 = vmatpush1.msra.mxu0 0.0
    %710 = vmatprep.subr.mxu0 0.0
    %711 = vmatpush1.msra.mxu0 0.0
    %712 = vmatprep.subr.mxu0 0.0
    %713 = vmatpush1.msra.mxu0 0.0
    %714 = vmatprep.subr.mxu0 0.0
    %715 = vmatpush1.msra.mxu0 0.0
    %716 = vmatprep.subr.mxu0 0.0
    %717 = vmatpush1.msra.mxu0 0.0
    %718 = vmatprep.mubr.f32.mxu0 0.0
    %719 = vmatmul.mubr.f32.gmra.mrb[0].mxu0 %v652
    %v720 = vpop.f32.mrb[0].mxu0
    %v721 = vadd.f32 0.0, %v720
    %v722 = vpop.f32.mrb[0].mxu0
    %723 = vdwg.mxu0
    %v724 = vld [vmem:[%s3] sm:$0xff]
    %v725 = vld [vmem:[%s3 + $0x8] sm:$0xff]
    %v726 = vld [vmem:[%s3 + $0x10] sm:$0xff]
    %v727 = vld [vmem:[%s3 + $0x18] sm:$0xff]
    %v728 = vld [vmem:[%s4] sm:$0xff]
    %v729 = vld [vmem:[%s4 + $0x8] sm:$0xff]
    %v730 = vld [vmem:[%s4 + $0x10] sm:$0xff]
    %v731 = vld [vmem:[%s4 + $0x18] sm:$0xff]
    %v733 = vsel %vm36, %v721, 0
    %735 = vmatprep.subr.mxu0 0.0
    %736 = vmatpush1.msra.mxu0 %v728
    %737 = vmatprep.subr.mxu0 0.0
    %738 = vmatpush1.msra.mxu0 %v729
    %739 = vmatprep.subr.mxu0 0.0
    %740 = vmatpush1.msra.mxu0 %v730
    %741 = vmatprep.subr.mxu0 0.0
    %742 = vmatpush1.msra.mxu0 %v731
    %743 = vmatprep.subr.mxu0 0.0
    %744 = vmatpush1.msra.mxu0 0.0
    %745 = vmatprep.subr.mxu0 0.0
    %746 = vmatpush1.msra.mxu0 0.0
    %747 = vmatprep.subr.mxu0 0.0
    %748 = vmatpush1.msra.mxu0 0.0
    %749 = vmatprep.subr.mxu0 0.0
    %750 = vmatpush1.msra.mxu0 0.0
    %751 = vmatprep.subr.mxu0 0.0
    %752 = vmatpush1.msra.mxu0 0.0
    %753 = vmatprep.subr.mxu0 0.0
    %754 = vmatpush1.msra.mxu0 0.0
    %755 = vmatprep.subr.mxu0 0.0
    %756 = vmatpush1.msra.mxu0 0.0
    %757 = vmatprep.subr.mxu0 0.0
    %758 = vmatpush1.msra.mxu0 0.0
    %759 = vmatprep.subr.mxu0 0.0
    %760 = vmatpush1.msra.mxu0 0.0
    %761 = vmatprep.subr.mxu0 0.0
    %762 = vmatpush1.msra.mxu0 0.0
    %763 = vmatprep.subr.mxu0 0.0
    %764 = vmatpush1.msra.mxu0 0.0
    %765 = vmatprep.subr.mxu0 0.0
    %766 = vmatpush1.msra.mxu0 0.0
    %767 = vmatprep.subr.mxu0 0.0
    %768 = vmatpush1.msra.mxu0 0.0
    %769 = vmatprep.subr.mxu0 0.0
    %770 = vmatpush1.msra.mxu0 0.0
    %771 = vmatprep.subr.mxu0 0.0
    %772 = vmatpush1.msra.mxu0 0.0
    %773 = vmatprep.subr.mxu0 0.0
    %774 = vmatpush1.msra.mxu0 0.0
    %775 = vmatprep.subr.mxu0 0.0
    %776 = vmatpush1.msra.mxu0 0.0
    %777 = vmatprep.subr.mxu0 0.0
    %778 = vmatpush1.msra.mxu0 0.0
    %779 = vmatprep.subr.mxu0 0.0
    %780 = vmatpush1.msra.mxu0 0.0
    %781 = vmatprep.subr.mxu0 0.0
    %782 = vmatpush1.msra.mxu0 0.0
    %783 = vmatprep.subr.mxu0 0.0
    %784 = vmatpush1.msra.mxu0 0.0
    %785 = vmatprep.subr.mxu0 0.0
    %786 = vmatpush1.msra.mxu0 0.0
    %787 = vmatprep.subr.mxu0 0.0
    %788 = vmatpush1.msra.mxu0 0.0
    %789 = vmatprep.subr.mxu0 0.0
    %790 = vmatpush1.msra.mxu0 0.0
    %791 = vmatprep.subr.mxu0 0.0
    %792 = vmatpush1.msra.mxu0 0.0
    %793 = vmatprep.subr.mxu0 0.0
    %794 = vmatpush1.msra.mxu0 0.0
    %795 = vmatprep.subr.mxu0 0.0
    %796 = vmatpush1.msra.mxu0 0.0
    %797 = vmatprep.subr.mxu0 0.0
    %798 = vmatpush1.msra.mxu0 0.0
    %799 = vmatprep.mubr.f32.mxu0 0.0
    %800 = vmatmul.mubr.f32.gmra.mrb[0].mxu0 %v733
    %v801 = vpop.f32.mrb[0].mxu0
    %v802 = vadd.f32 0.0, %v801
    %v803 = vpop.f32.mrb[0].mxu0
    %804 = vdwg.mxu0
    %805 = vmatprep.subr.mxu0 0.0
    %806 = vmatpush1.msra.mxu0 %v724
    %807 = vmatprep.subr.mxu0 0.0
    %808 = vmatpush1.msra.mxu0 %v725
    %809 = vmatprep.subr.mxu0 0.0
    %810 = vmatpush1.msra.mxu0 %v726
    %811 = vmatprep.subr.mxu0 0.0
    %812 = vmatpush1.msra.mxu0 %v727
    %813 = vmatprep.subr.mxu0 0.0
    %814 = vmatpush1.msra.mxu0 0.0
    %815 = vmatprep.subr.mxu0 0.0
    %816 = vmatpush1.msra.mxu0 0.0
    %817 = vmatprep.subr.mxu0 0.0
    %818 = vmatpush1.msra.mxu0 0.0
    %819 = vmatprep.subr.mxu0 0.0
    %820 = vmatpush1.msra.mxu0 0.0
    %821 = vmatprep.subr.mxu0 0.0
    %822 = vmatpush1.msra.mxu0 0.0
    %823 = vmatprep.subr.mxu0 0.0
    %824 = vmatpush1.msra.mxu0 0.0
    %825 = vmatprep.subr.mxu0 0.0
    %826 = vmatpush1.msra.mxu0 0.0
    %827 = vmatprep.subr.mxu0 0.0
    %828 = vmatpush1.msra.mxu0 0.0
    %829 = vmatprep.subr.mxu0 0.0
    %830 = vmatpush1.msra.mxu0 0.0
    %831 = vmatprep.subr.mxu0 0.0
    %832 = vmatpush1.msra.mxu0 0.0
    %833 = vmatprep.subr.mxu0 0.0
    %834 = vmatpush1.msra.mxu0 0.0
    %835 = vmatprep.subr.mxu0 0.0
    %836 = vmatpush1.msra.mxu0 0.0
    %837 = vmatprep.subr.mxu0 0.0
    %838 = vmatpush1.msra.mxu0 0.0
    %839 = vmatprep.subr.mxu0 0.0
    %840 = vmatpush1.msra.mxu0 0.0
    %841 = vmatprep.subr.mxu0 0.0
    %842 = vmatpush1.msra.mxu0 0.0
    %843 = vmatprep.subr.mxu0 0.0
    %844 = vmatpush1.msra.mxu0 0.0
    %845 = vmatprep.subr.mxu0 0.0
    %846 = vmatpush1.msra.mxu0 0.0
    %847 = vmatprep.subr.mxu0 0.0
    %848 = vmatpush1.msra.mxu0 0.0
    %849 = vmatprep.subr.mxu0 0.0
    %850 = vmatpush1.msra.mxu0 0.0
    %851 = vmatprep.subr.mxu0 0.0
    %852 = vmatpush1.msra.mxu0 0.0
    %853 = vmatprep.subr.mxu0 0.0
    %854 = vmatpush1.msra.mxu0 0.0
    %855 = vmatprep.subr.mxu0 0.0
    %856 = vmatpush1.msra.mxu0 0.0
    %857 = vmatprep.subr.mxu0 0.0
    %858 = vmatpush1.msra.mxu0 0.0
    %859 = vmatprep.subr.mxu0 0.0
    %860 = vmatpush1.msra.mxu0 0.0
    %861 = vmatprep.subr.mxu0 0.0
    %862 = vmatpush1.msra.mxu0 0.0
    %863 = vmatprep.subr.mxu0 0.0
    %864 = vmatpush1.msra.mxu0 0.0
    %865 = vmatprep.subr.mxu0 0.0
    %866 = vmatpush1.msra.mxu0 0.0
    %867 = vmatprep.subr.mxu0 0.0
    %868 = vmatpush1.msra.mxu0 0.0
    %869 = vmatprep.mubr.f32.mxu0 0.0
    %870 = vmatmul.mubr.f32.gmra.mrb[0].mxu0 %v473
    %v871 = vpop.f32.mrb[0].mxu0
    %v872 = vadd.f32 %v802, %v871
    %v873 = vpop.f32.mrb[0].mxu0
    %874 = vdwg.mxu0
    %v875 = vld [vmem:[%s5] sm:$0x1]
    %v876 = vadd.f32 %v872, %v875
    %s877 = scalar_lea.vmem [#allocation2], 1
    %878 = vst [vmem:[%s877] sm:$0x1] %v876
    %s879 = scalar_lea.vmem [#allocation4], 1
    %880 = vst.msk [vmem:[%s879] sm:$0x1] %vm120, %v558
    // Predicated region
    $region26: #{relation_aware_pos_forward.3} parent=1 // pred_check
      _
    $region27: #{relation_aware_pos_forward.3} parent=1 // pred_check_branch
      %882 = sbr.rel (0) target = $region29
    $region28: #{relation_aware_pos_forward.3} parent=1 // pred_region
      %s884 = ssub.s32 32, 32
      %885 = vsyncadd [#allocation3], %s884
      %s886 = sshll.u32 [#allocation2], 4
      %s887 = int_to_ptr.vmem [resolvable:$true] %s886
      %892 = dma.vmem_to_hbm [thread:$0]  %s887, 32, %s6, [#allocation3], 16, 16, 1
    $region29: #{relation_aware_pos_forward.3} parent=1 // pred_fallthru
      _
    // Predicated region
    $region30: #{relation_aware_pos_forward.3} parent=1 // pred_check
      _
    $region31: #{relation_aware_pos_forward.3} parent=1 // pred_check_branch
      %894 = sbr.rel (0) target = $region33
    $region32: #{relation_aware_pos_forward.3} parent=1 // pred_region
      %s896 = ssub.s32 32, 32
      %897 = vsyncadd [#allocation5], %s896
      %s898 = sshll.u32 [#allocation4], 4
      %s899 = int_to_ptr.vmem [resolvable:$true] %s898
      %904 = dma.vmem_to_hbm [thread:$0]  %s899, 32, %s7, [#allocation5], 16, 16, 1
    $region33: #{relation_aware_pos_forward.3} parent=1 // pred_fallthru
      _
    // Predicated region
    $region34: #{relation_aware_pos_forward.3} parent=1 // pred_check
      _
    $region35: #{relation_aware_pos_forward.3} parent=1 // pred_check_branch
      %906 = sbr.rel (0) target = $region37
    $region36: #{relation_aware_pos_forward.3} parent=1 // pred_region
      %907 = dma.done [#allocation3], 32
    $region37: #{relation_aware_pos_forward.3} parent=1 // pred_fallthru
      _
    // Predicated region
    $region38: #{relation_aware_pos_forward.3} parent=1 // pred_check
      _
    $region39: #{relation_aware_pos_forward.3} parent=1 // pred_check_branch
      %909 = sbr.rel (0) target = $region41
    $region40: #{relation_aware_pos_forward.3} parent=1 // pred_region
      %910 = dma.done [#allocation5], 32
    $region41: #{relation_aware_pos_forward.3} parent=1 // pred_fallthru
      _
    %911 = vsyncpa [#allocation3], 1
    %912 = vsyncpa [#allocation5], 1

// kernel: relation_aware_pos_forward.2
$region0: #{relation_aware_pos_forward.2}
  #allocation0 [shape = 'u32[]', space=smem, size = 0x4, offset = 0x4, fixed_abs, tag = 'smem constant byte address 0x4 - core index']
  #allocation1 [shape = 'u32[144,128]{1,0:T(1,128)}', space=vmem, size = 0x12000, scoped, tag = 'internal scratch']
  #allocation2 [shape = 'f32[8,32]{1,0:T(8,128)}', space=vmem, size = 0x1000, scoped, tag = 'scratch operand']
  #allocation3 [shape = 'f32[2,8,32]{2,1,0:T(8,128)}', space=vmem, size = 0x2000, scoped, tag = 'scratch operand']
  #allocation4 [shape = 'f32[1,1]{1,0:T(1,128)S(1)}', space=vmem, size = 0x200, scoped, tag = 'scoped memory for relation_aware_pos_forward.2']
  #allocation5 [shape = 'f32[1,1]{1,0:T(1,128)S(1)}', space=vmem, size = 0x200, scoped, tag = 'scoped memory for relation_aware_pos_forward.2']
  %s0 = inlined_call_operand.vmem [shape: f32[2,8,32], index: 0, kind: input, shape index: {}]
  %s1 = inlined_call_operand.vmem [shape: f32[2,8,1], index: 1, kind: input, shape index: {}]
  %s2 = inlined_call_operand.vmem [shape: f32[2,8,128], index: 2, kind: input, shape index: {}]
  %s3 = inlined_call_operand.vmem [shape: f32[2,8,8], index: 3, kind: input, shape index: {}]
  %s4 = inlined_call_operand.vmem [shape: f32[2,8,1], index: 4, kind: input, shape index: {}]
  %s5 = inlined_call_operand.vmem [shape: f32[2,2,128,128], index: 5, kind: input, shape index: {}]
  %s6 = inlined_call_operand.vmem [shape: f32[2,2,128,8], index: 6, kind: input, shape index: {}]
  %s7 = inlined_call_operand.vmem [shape: f32[2,2,32,32], index: 7, kind: input, shape index: {}]
  %s8 = inlined_call_operand.vmem [shape: f32[2,2,1,32], index: 8, kind: input, shape index: {}]
  %s9 = inlined_call_operand.vmem [shape: f32[2,32,32], index: 9, kind: input, shape index: {}]
  %s10 = inlined_call_operand.vmem [shape: f32[2,1,32], index: 10, kind: input, shape index: {}]
  %s11 = inlined_call_operand.vmem [shape: f32[2,32,1], index: 11, kind: input, shape index: {}]
  %s12 = inlined_call_operand.vmem [shape: f32[2,32,1], index: 12, kind: input, shape index: {}]
  %s13 = inlined_call_operand.vmem [shape: f32[2,1,1], index: 13, kind: input, shape index: {}]
  %s14 = inlined_call_operand.vmem [shape: f32[32,1], index: 14, kind: input, shape index: {}]
  %s15 = inlined_call_operand.vmem [shape: f32[32,1], index: 15, kind: input, shape index: {}]
  %s16 = inlined_call_operand.<no memory space> [shape: f32[1,1], index: 16, kind: input, shape index: {}]
  %s17 = inlined_call_operand.vmem [shape: f32[32,1], index: 17, kind: input, shape index: {}]
  %s18 = inlined_call_operand.vmem [shape: f32[32,1], index: 18, kind: input, shape index: {}]
  %s19 = inlined_call_operand.<no memory space> [shape: f32[1,1], index: 19, kind: input, shape index: {}]
  %s20 = inlined_call_operand.vmem [shape: f32[32,32], index: 20, kind: input, shape index: {}]
  %s21 = inlined_call_operand.vmem [shape: f32[1,32], index: 21, kind: input, shape index: {}]
  %s22 = inlined_call_operand.vmem [shape: f32[32,32], index: 22, kind: input, shape index: {}]
  %s23 = inlined_call_operand.vmem [shape: f32[1,32], index: 23, kind: input, shape index: {}]
  %s24 = inlined_call_operand.vmem [shape: f32[2,8,32], index: 24, kind: output, shape index: {}]
  %s25 = sld [smem:[#allocation0]]
  $region133: #{relation_aware_pos_forward.2} parent=0
    _
  %s27 = ssub.s32 1, %s25
  %s28 = scalar_select 0, %s27, %s25
  %v29 = vstv %s16
  %30 = vst [vmem:[#allocation4] sm:$0x1] %v29
  %v31 = vstv %s19
  %32 = vst [vmem:[#allocation5] sm:$0x1] %v31
  loop: start=0, step=1, limit=6
  $region2: #{relation_aware_pos_forward.2} parent=0 // loop_pre_header
    _
  $region3: #{relation_aware_pos_forward.2} parent=0 // loop_header
    %s34 = sphi 0, %s38
    %p35 = scmp.ge.s32.totalorder %s34, 6
    %s41 = sphi 0, %s53
    %s42 = sphi 0, %s49
    %s43 = sphi 0, %s41
    %s44 = sphi 0, %s42
    %s45 = sphi 0, %s43
    %s46 = sphi 0, %s44
    %s56 = sphi 0, %s58
    %s59 = sphi 0, %s56
    %s60 = sphi 0, %s59
    %s76 = sphi 0, %s60
    %s82 = sphi 0, %s84
    %s85 = sphi 0, %s82
    %s86 = sphi 0, %s85
    %s102 = sphi 0, %s86
    %s108 = sphi 0, %s110
    %s111 = sphi 0, %s108
    %s112 = sphi 0, %s111
    %s128 = sphi 0, %s112
    %s134 = sphi 0, %s136
    %s137 = sphi 0, %s134
    %s138 = sphi 0, %s137
    %s154 = sphi 0, %s138
    %s160 = sphi 0, %s162
    %s163 = sphi 0, %s160
    %s164 = sphi 0, %s163
    %s180 = sphi 0, %s164
    %s186 = sphi 0, %s188
    %s189 = sphi 0, %s186
    %s190 = sphi 0, %s189
    %s206 = sphi 0, %s190
    %s212 = sphi 0, %s214
    %s215 = sphi 0, %s212
    %s216 = sphi 0, %s215
    %s232 = sphi 0, %s216
    %s238 = sphi 0, %s240
    %s241 = sphi 0, %s238
    %s242 = sphi 0, %s241
    %s258 = sphi 0, %s242
    %s264 = sphi 0, %s266
    %s267 = sphi 0, %s264
    %s268 = sphi 0, %s267
    %s284 = sphi 0, %s268
    %s290 = sphi 0, %s292
    %s293 = sphi 0, %s290
    %s294 = sphi 0, %s293
    %s310 = sphi 0, %s294
    %s316 = sphi 0, %s318
    %s319 = sphi 0, %s316
    %s320 = sphi 0, %s319
    %s336 = sphi 0, %s320
    %s342 = sphi 0, %s344
    %s345 = sphi 0, %s342
    %s346 = sphi 0, %s345
    %s362 = sphi 0, %s346
    %s368 = sphi 0, %s370
    %s371 = sphi 0, %s368
    %s372 = sphi 0, %s371
    %s388 = sphi 0, %s372
    %s394 = sphi 0, %s396
    %s397 = sphi 0, %s394
    %s398 = sphi 0, %s397
    %s414 = sphi 0, %s398
    %s418 = sphi 0, %s418
    %s420 = sphi 0, %s418
    %s421 = sphi 0, %s420
    %s435 = sphi 0, %s421
    %s439 = sphi 0, %s439
    %s441 = sphi 0, %s439
    %s442 = sphi 0, %s441
    %s456 = sphi 0, %s442
    %s460 = sphi 0, %s460
    %s462 = sphi 0, %s460
    %s463 = sphi 0, %s462
    %s477 = sphi 0, %s463
    %s481 = sphi 0, %s481
    %s483 = sphi 0, %s481
    %s484 = sphi 0, %s483
    %s498 = sphi 0, %s484
    %s502 = sphi 0, %s502
    %s504 = sphi 0, %s502
    %s505 = sphi 0, %s504
    %s519 = sphi 0, %s505
    %s523 = sphi 0, %s523
    %s525 = sphi 0, %s523
    %s526 = sphi 0, %s525
    %s540 = sphi 0, %s526
    %s544 = sphi 0, %s544
    %s546 = sphi 0, %s544
    %s547 = sphi 0, %s546
    %s561 = sphi 0, %s547
    %s565 = sphi 0, %s565
    %s567 = sphi 0, %s565
    %s568 = sphi 0, %s567
    %s582 = sphi 0, %s568
    %s586 = sphi 0, %s586
    %s588 = sphi 0, %s586
    %s589 = sphi 0, %s588
    %s603 = sphi 0, %s589
    %s607 = sphi 0, %s607
    %s609 = sphi 0, %s607
    %s610 = sphi 0, %s609
    %s624 = sphi 0, %s610
    %s630 = sphi 0, %s632
    %s633 = sphi 0, %s630
    %s634 = sphi 0, %s633
    %s650 = sphi 0, %s634
  $region4: #{relation_aware_pos_forward.2} parent=0 // loop_header_branch
    %37 = sbr.rel (%p35) target = $region8
  $region5: #{relation_aware_pos_forward.2} parent=0 // loop_body
    %s39 = ssub.s32 %s34, 1
    %s40 = ssub.s32 %s34, 2
    %s47 = sadd.s32 1, %s42
    %p48 = scmp.ge.s32.totalorder %s47, 2
    %s49 = scalar_select %p48, 0, %s47
    %s50 = sadd.s32 1, %s41
    %s51 = scalar_select %p48, %s50, %s41
    %p52 = scmp.ge.s32.totalorder %s51, 2
    %s53 = scalar_select %p52, 0, %s51
    %s54 = ssub.s32 %s41, %s53
    %p55 = scmp.eq.s32.totalorder %s54, 0
    %s57 = sadd.s32 %s56, 1
    %s58 = scalar_select %p55, %s56, %s57
    %p61 = pneg %p55
    %p62 = scmp.eq.s32.totalorder %s34, 3
    %p63 = por %p61, %p62
    %p64 = scmp.ne.s32.totalorder %s56, %s59
    %p65 = scmp.eq.s32.totalorder %s34, 0
    %p66 = por %p64, %p65
    %p67 = scmp.ne.s32.totalorder %s56, %s59
    %p68 = scmp.eq.s32.totalorder %s39, 3
    %p69 = por %p67, %p68
    %p70 = scmp.ne.s32.totalorder %s59, %s60
    %p71 = scmp.eq.s32.totalorder %s39, 0
    %p72 = por %p70, %p71
    %p73 = scmp.ne.s32.totalorder %s59, %s60
    %p74 = scmp.eq.s32.totalorder %s40, 3
    %p75 = por %p73, %p74
    %p77 = scmp.ne.s32.totalorder %s60, %s76
    %p78 = scmp.eq.s32.totalorder %s40, 0
    %p79 = por %p77, %p78
    %s80 = ssub.s32 %s41, %s53
    %p81 = scmp.eq.s32.totalorder %s80, 0
    %s83 = sadd.s32 %s82, 1
    %s84 = scalar_select %p81, %s82, %s83
    %p87 = pneg %p81
    %p88 = scmp.eq.s32.totalorder %s34, 3
    %p89 = por %p87, %p88
    %p90 = scmp.ne.s32.totalorder %s82, %s85
    %p91 = scmp.eq.s32.totalorder %s34, 0
    %p92 = por %p90, %p91
    %p93 = scmp.ne.s32.totalorder %s82, %s85
    %p94 = scmp.eq.s32.totalorder %s39, 3
    %p95 = por %p93, %p94
    %p96 = scmp.ne.s32.totalorder %s85, %s86
    %p97 = scmp.eq.s32.totalorder %s39, 0
    %p98 = por %p96, %p97
    %p99 = scmp.ne.s32.totalorder %s85, %s86
    %p100 = scmp.eq.s32.totalorder %s40, 3
    %p101 = por %p99, %p100
    %p103 = scmp.ne.s32.totalorder %s86, %s102
    %p104 = scmp.eq.s32.totalorder %s40, 0
    %p105 = por %p103, %p104
    %s106 = ssub.s32 %s41, %s53
    %p107 = scmp.eq.s32.totalorder %s106, 0
    %s109 = sadd.s32 %s108, 1
    %s110 = scalar_select %p107, %s108, %s109
    %p113 = pneg %p107
    %p114 = scmp.eq.s32.totalorder %s34, 3
    %p115 = por %p113, %p114
    %p116 = scmp.ne.s32.totalorder %s108, %s111
    %p117 = scmp.eq.s32.totalorder %s34, 0
    %p118 = por %p116, %p117
    %p119 = scmp.ne.s32.totalorder %s108, %s111
    %p120 = scmp.eq.s32.totalorder %s39, 3
    %p121 = por %p119, %p120
    %p122 = scmp.ne.s32.totalorder %s111, %s112
    %p123 = scmp.eq.s32.totalorder %s39, 0
    %p124 = por %p122, %p123
    %p125 = scmp.ne.s32.totalorder %s111, %s112
    %p126 = scmp.eq.s32.totalorder %s40, 3
    %p127 = por %p125, %p126
    %p129 = scmp.ne.s32.totalorder %s112, %s128
    %p130 = scmp.eq.s32.totalorder %s40, 0
    %p131 = por %p129, %p130
    %s132 = ssub.s32 %s41, %s53
    %p133 = scmp.eq.s32.totalorder %s132, 0
    %s135 = sadd.s32 %s134, 1
    %s136 = scalar_select %p133, %s134, %s135
    %p139 = pneg %p133
    %p140 = scmp.eq.s32.totalorder %s34, 3
    %p141 = por %p139, %p140
    %p142 = scmp.ne.s32.totalorder %s134, %s137
    %p143 = scmp.eq.s32.totalorder %s34, 0
    %p144 = por %p142, %p143
    %p145 = scmp.ne.s32.totalorder %s134, %s137
    %p146 = scmp.eq.s32.totalorder %s39, 3
    %p147 = por %p145, %p146
    %p148 = scmp.ne.s32.totalorder %s137, %s138
    %p149 = scmp.eq.s32.totalorder %s39, 0
    %p150 = por %p148, %p149
    %p151 = scmp.ne.s32.totalorder %s137, %s138
    %p152 = scmp.eq.s32.totalorder %s40, 3
    %p153 = por %p151, %p152
    %p155 = scmp.ne.s32.totalorder %s138, %s154
    %p156 = scmp.eq.s32.totalorder %s40, 0
    %p157 = por %p155, %p156
    %s158 = ssub.s32 %s41, %s53
    %p159 = scmp.eq.s32.totalorder %s158, 0
    %s161 = sadd.s32 %s160, 1
    %s162 = scalar_select %p159, %s160, %s161
    %p165 = pneg %p159
    %p166 = scmp.eq.s32.totalorder %s34, 3
    %p167 = por %p165, %p166
    %p168 = scmp.ne.s32.totalorder %s160, %s163
    %p169 = scmp.eq.s32.totalorder %s34, 0
    %p170 = por %p168, %p169
    %p171 = scmp.ne.s32.totalorder %s160, %s163
    %p172 = scmp.eq.s32.totalorder %s39, 3
    %p173 = por %p171, %p172
    %p174 = scmp.ne.s32.totalorder %s163, %s164
    %p175 = scmp.eq.s32.totalorder %s39, 0
    %p176 = por %p174, %p175
    %p177 = scmp.ne.s32.totalorder %s163, %s164
    %p178 = scmp.eq.s32.totalorder %s40, 3
    %p179 = por %p177, %p178
    %p181 = scmp.ne.s32.totalorder %s164, %s180
    %p182 = scmp.eq.s32.totalorder %s40, 0
    %p183 = por %p181, %p182
    %s184 = ssub.s32 %s42, %s49
    %p185 = scmp.eq.s32.totalorder %s184, 0
    %s187 = sadd.s32 %s186, 1
    %s188 = scalar_select %p185, %s186, %s187
    %p191 = pneg %p185
    %p192 = scmp.eq.s32.totalorder %s34, 3
    %p193 = por %p191, %p192
    %p194 = scmp.ne.s32.totalorder %s186, %s189
    %p195 = scmp.eq.s32.totalorder %s34, 0
    %p196 = por %p194, %p195
    %p197 = scmp.ne.s32.totalorder %s186, %s189
    %p198 = scmp.eq.s32.totalorder %s39, 3
    %p199 = por %p197, %p198
    %p200 = scmp.ne.s32.totalorder %s189, %s190
    %p201 = scmp.eq.s32.totalorder %s39, 0
    %p202 = por %p200, %p201
    %p203 = scmp.ne.s32.totalorder %s189, %s190
    %p204 = scmp.eq.s32.totalorder %s40, 3
    %p205 = por %p203, %p204
    %p207 = scmp.ne.s32.totalorder %s190, %s206
    %p208 = scmp.eq.s32.totalorder %s40, 0
    %p209 = por %p207, %p208
    %s210 = ssub.s32 %s42, %s49
    %p211 = scmp.eq.s32.totalorder %s210, 0
    %s213 = sadd.s32 %s212, 1
    %s214 = scalar_select %p211, %s212, %s213
    %p217 = pneg %p211
    %p218 = scmp.eq.s32.totalorder %s34, 3
    %p219 = por %p217, %p218
    %p220 = scmp.ne.s32.totalorder %s212, %s215
    %p221 = scmp.eq.s32.totalorder %s34, 0
    %p222 = por %p220, %p221
    %p223 = scmp.ne.s32.totalorder %s212, %s215
    %p224 = scmp.eq.s32.totalorder %s39, 3
    %p225 = por %p223, %p224
    %p226 = scmp.ne.s32.totalorder %s215, %s216
    %p227 = scmp.eq.s32.totalorder %s39, 0
    %p228 = por %p226, %p227
    %p229 = scmp.ne.s32.totalorder %s215, %s216
    %p230 = scmp.eq.s32.totalorder %s40, 3
    %p231 = por %p229, %p230
    %p233 = scmp.ne.s32.totalorder %s216, %s232
    %p234 = scmp.eq.s32.totalorder %s40, 0
    %p235 = por %p233, %p234
    %s236 = ssub.s32 %s42, %s49
    %p237 = scmp.eq.s32.totalorder %s236, 0
    %s239 = sadd.s32 %s238, 1
    %s240 = scalar_select %p237, %s238, %s239
    %p243 = pneg %p237
    %p244 = scmp.eq.s32.totalorder %s34, 3
    %p245 = por %p243, %p244
    %p246 = scmp.ne.s32.totalorder %s238, %s241
    %p247 = scmp.eq.s32.totalorder %s34, 0
    %p248 = por %p246, %p247
    %p249 = scmp.ne.s32.totalorder %s238, %s241
    %p250 = scmp.eq.s32.totalorder %s39, 3
    %p251 = por %p249, %p250
    %p252 = scmp.ne.s32.totalorder %s241, %s242
    %p253 = scmp.eq.s32.totalorder %s39, 0
    %p254 = por %p252, %p253
    %p255 = scmp.ne.s32.totalorder %s241, %s242
    %p256 = scmp.eq.s32.totalorder %s40, 3
    %p257 = por %p255, %p256
    %p259 = scmp.ne.s32.totalorder %s242, %s258
    %p260 = scmp.eq.s32.totalorder %s40, 0
    %p261 = por %p259, %p260
    %s262 = ssub.s32 %s42, %s49
    %p263 = scmp.eq.s32.totalorder %s262, 0
    %s265 = sadd.s32 %s264, 1
    %s266 = scalar_select %p263, %s264, %s265
    %p269 = pneg %p263
    %p270 = scmp.eq.s32.totalorder %s34, 3
    %p271 = por %p269, %p270
    %p272 = scmp.ne.s32.totalorder %s264, %s267
    %p273 = scmp.eq.s32.totalorder %s34, 0
    %p274 = por %p272, %p273
    %p275 = scmp.ne.s32.totalorder %s264, %s267
    %p276 = scmp.eq.s32.totalorder %s39, 3
    %p277 = por %p275, %p276
    %p278 = scmp.ne.s32.totalorder %s267, %s268
    %p279 = scmp.eq.s32.totalorder %s39, 0
    %p280 = por %p278, %p279
    %p281 = scmp.ne.s32.totalorder %s267, %s268
    %p282 = scmp.eq.s32.totalorder %s40, 3
    %p283 = por %p281, %p282
    %p285 = scmp.ne.s32.totalorder %s268, %s284
    %p286 = scmp.eq.s32.totalorder %s40, 0
    %p287 = por %p285, %p286
    %s288 = ssub.s32 %s42, %s49
    %p289 = scmp.eq.s32.totalorder %s288, 0
    %s291 = sadd.s32 %s290, 1
    %s292 = scalar_select %p289, %s290, %s291
    %p295 = pneg %p289
    %p296 = scmp.eq.s32.totalorder %s34, 3
    %p297 = por %p295, %p296
    %p298 = scmp.ne.s32.totalorder %s290, %s293
    %p299 = scmp.eq.s32.totalorder %s34, 0
    %p300 = por %p298, %p299
    %p301 = scmp.ne.s32.totalorder %s290, %s293
    %p302 = scmp.eq.s32.totalorder %s39, 3
    %p303 = por %p301, %p302
    %p304 = scmp.ne.s32.totalorder %s293, %s294
    %p305 = scmp.eq.s32.totalorder %s39, 0
    %p306 = por %p304, %p305
    %p307 = scmp.ne.s32.totalorder %s293, %s294
    %p308 = scmp.eq.s32.totalorder %s40, 3
    %p309 = por %p307, %p308
    %p311 = scmp.ne.s32.totalorder %s294, %s310
    %p312 = scmp.eq.s32.totalorder %s40, 0
    %p313 = por %p311, %p312
    %s314 = ssub.s32 %s42, %s49
    %p315 = scmp.eq.s32.totalorder %s314, 0
    %s317 = sadd.s32 %s316, 1
    %s318 = scalar_select %p315, %s316, %s317
    %p321 = pneg %p315
    %p322 = scmp.eq.s32.totalorder %s34, 3
    %p323 = por %p321, %p322
    %p324 = scmp.ne.s32.totalorder %s316, %s319
    %p325 = scmp.eq.s32.totalorder %s34, 0
    %p326 = por %p324, %p325
    %p327 = scmp.ne.s32.totalorder %s316, %s319
    %p328 = scmp.eq.s32.totalorder %s39, 3
    %p329 = por %p327, %p328
    %p330 = scmp.ne.s32.totalorder %s319, %s320
    %p331 = scmp.eq.s32.totalorder %s39, 0
    %p332 = por %p330, %p331
    %p333 = scmp.ne.s32.totalorder %s319, %s320
    %p334 = scmp.eq.s32.totalorder %s40, 3
    %p335 = por %p333, %p334
    %p337 = scmp.ne.s32.totalorder %s320, %s336
    %p338 = scmp.eq.s32.totalorder %s40, 0
    %p339 = por %p337, %p338
    %s340 = ssub.s32 %s42, %s49
    %p341 = scmp.eq.s32.totalorder %s340, 0
    %s343 = sadd.s32 %s342, 1
    %s344 = scalar_select %p341, %s342, %s343
    %p347 = pneg %p341
    %p348 = scmp.eq.s32.totalorder %s34, 3
    %p349 = por %p347, %p348
    %p350 = scmp.ne.s32.totalorder %s342, %s345
    %p351 = scmp.eq.s32.totalorder %s34, 0
    %p352 = por %p350, %p351
    %p353 = scmp.ne.s32.totalorder %s342, %s345
    %p354 = scmp.eq.s32.totalorder %s39, 3
    %p355 = por %p353, %p354
    %p356 = scmp.ne.s32.totalorder %s345, %s346
    %p357 = scmp.eq.s32.totalorder %s39, 0
    %p358 = por %p356, %p357
    %p359 = scmp.ne.s32.totalorder %s345, %s346
    %p360 = scmp.eq.s32.totalorder %s40, 3
    %p361 = por %p359, %p360
    %p363 = scmp.ne.s32.totalorder %s346, %s362
    %p364 = scmp.eq.s32.totalorder %s40, 0
    %p365 = por %p363, %p364
    %s366 = ssub.s32 %s42, %s49
    %p367 = scmp.eq.s32.totalorder %s366, 0
    %s369 = sadd.s32 %s368, 1
    %s370 = scalar_select %p367, %s368, %s369
    %p373 = pneg %p367
    %p374 = scmp.eq.s32.totalorder %s34, 3
    %p375 = por %p373, %p374
    %p376 = scmp.ne.s32.totalorder %s368, %s371
    %p377 = scmp.eq.s32.totalorder %s34, 0
    %p378 = por %p376, %p377
    %p379 = scmp.ne.s32.totalorder %s368, %s371
    %p380 = scmp.eq.s32.totalorder %s39, 3
    %p381 = por %p379, %p380
    %p382 = scmp.ne.s32.totalorder %s371, %s372
    %p383 = scmp.eq.s32.totalorder %s39, 0
    %p384 = por %p382, %p383
    %p385 = scmp.ne.s32.totalorder %s371, %s372
    %p386 = scmp.eq.s32.totalorder %s40, 3
    %p387 = por %p385, %p386
    %p389 = scmp.ne.s32.totalorder %s372, %s388
    %p390 = scmp.eq.s32.totalorder %s40, 0
    %p391 = por %p389, %p390
    %s392 = ssub.s32 %s42, %s49
    %p393 = scmp.eq.s32.totalorder %s392, 0
    %s395 = sadd.s32 %s394, 1
    %s396 = scalar_select %p393, %s394, %s395
    %p399 = pneg %p393
    %p400 = scmp.eq.s32.totalorder %s34, 3
    %p401 = por %p399, %p400
    %p402 = scmp.ne.s32.totalorder %s394, %s397
    %p403 = scmp.eq.s32.totalorder %s34, 0
    %p404 = por %p402, %p403
    %p405 = scmp.ne.s32.totalorder %s394, %s397
    %p406 = scmp.eq.s32.totalorder %s39, 3
    %p407 = por %p405, %p406
    %p408 = scmp.ne.s32.totalorder %s397, %s398
    %p409 = scmp.eq.s32.totalorder %s39, 0
    %p410 = por %p408, %p409
    %p411 = scmp.ne.s32.totalorder %s397, %s398
    %p412 = scmp.eq.s32.totalorder %s40, 3
    %p413 = por %p411, %p412
    %p415 = scmp.ne.s32.totalorder %s398, %s414
    %p416 = scmp.eq.s32.totalorder %s40, 0
    %p417 = por %p415, %p416
    %s419 = sadd.s32 %s418, 1
    %p422 = scmp.eq.s32.totalorder %s34, 3
    %p423 = scmp.ne.s32.totalorder %s418, %s420
    %p424 = scmp.eq.s32.totalorder %s34, 0
    %p425 = por %p423, %p424
    %p426 = scmp.ne.s32.totalorder %s418, %s420
    %p427 = scmp.eq.s32.totalorder %s39, 3
    %p428 = por %p426, %p427
    %p429 = scmp.ne.s32.totalorder %s420, %s421
    %p430 = scmp.eq.s32.totalorder %s39, 0
    %p431 = por %p429, %p430
    %p432 = scmp.ne.s32.totalorder %s420, %s421
    %p433 = scmp.eq.s32.totalorder %s40, 3
    %p434 = por %p432, %p433
    %p436 = scmp.ne.s32.totalorder %s421, %s435
    %p437 = scmp.eq.s32.totalorder %s40, 0
    %p438 = por %p436, %p437
    %s440 = sadd.s32 %s439, 1
    %p443 = scmp.eq.s32.totalorder %s34, 3
    %p444 = scmp.ne.s32.totalorder %s439, %s441
    %p445 = scmp.eq.s32.totalorder %s34, 0
    %p446 = por %p444, %p445
    %p447 = scmp.ne.s32.totalorder %s439, %s441
    %p448 = scmp.eq.s32.totalorder %s39, 3
    %p449 = por %p447, %p448
    %p450 = scmp.ne.s32.totalorder %s441, %s442
    %p451 = scmp.eq.s32.totalorder %s39, 0
    %p452 = por %p450, %p451
    %p453 = scmp.ne.s32.totalorder %s441, %s442
    %p454 = scmp.eq.s32.totalorder %s40, 3
    %p455 = por %p453, %p454
    %p457 = scmp.ne.s32.totalorder %s442, %s456
    %p458 = scmp.eq.s32.totalorder %s40, 0
    %p459 = por %p457, %p458
    %s461 = sadd.s32 %s460, 1
    %p464 = scmp.eq.s32.totalorder %s34, 3
    %p465 = scmp.ne.s32.totalorder %s460, %s462
    %p466 = scmp.eq.s32.totalorder %s34, 0
    %p467 = por %p465, %p466
    %p468 = scmp.ne.s32.totalorder %s460, %s462
    %p469 = scmp.eq.s32.totalorder %s39, 3
    %p470 = por %p468, %p469
    %p471 = scmp.ne.s32.totalorder %s462, %s463
    %p472 = scmp.eq.s32.totalorder %s39, 0
    %p473 = por %p471, %p472
    %p474 = scmp.ne.s32.totalorder %s462, %s463
    %p475 = scmp.eq.s32.totalorder %s40, 3
    %p476 = por %p474, %p475
    %p478 = scmp.ne.s32.totalorder %s463, %s477
    %p479 = scmp.eq.s32.totalorder %s40, 0
    %p480 = por %p478, %p479
    %s482 = sadd.s32 %s481, 1
    %p485 = scmp.eq.s32.totalorder %s34, 3
    %p486 = scmp.ne.s32.totalorder %s481, %s483
    %p487 = scmp.eq.s32.totalorder %s34, 0
    %p488 = por %p486, %p487
    %p489 = scmp.ne.s32.totalorder %s481, %s483
    %p490 = scmp.eq.s32.totalorder %s39, 3
    %p491 = por %p489, %p490
    %p492 = scmp.ne.s32.totalorder %s483, %s484
    %p493 = scmp.eq.s32.totalorder %s39, 0
    %p494 = por %p492, %p493
    %p495 = scmp.ne.s32.totalorder %s483, %s484
    %p496 = scmp.eq.s32.totalorder %s40, 3
    %p497 = por %p495, %p496
    %p499 = scmp.ne.s32.totalorder %s484, %s498
    %p500 = scmp.eq.s32.totalorder %s40, 0
    %p501 = por %p499, %p500
    %s503 = sadd.s32 %s502, 1
    %p506 = scmp.eq.s32.totalorder %s34, 3
    %p507 = scmp.ne.s32.totalorder %s502, %s504
    %p508 = scmp.eq.s32.totalorder %s34, 0
    %p509 = por %p507, %p508
    %p510 = scmp.ne.s32.totalorder %s502, %s504
    %p511 = scmp.eq.s32.totalorder %s39, 3
    %p512 = por %p510, %p511
    %p513 = scmp.ne.s32.totalorder %s504, %s505
    %p514 = scmp.eq.s32.totalorder %s39, 0
    %p515 = por %p513, %p514
    %p516 = scmp.ne.s32.totalorder %s504, %s505
    %p517 = scmp.eq.s32.totalorder %s40, 3
    %p518 = por %p516, %p517
    %p520 = scmp.ne.s32.totalorder %s505, %s519
    %p521 = scmp.eq.s32.totalorder %s40, 0
    %p522 = por %p520, %p521
    %s524 = sadd.s32 %s523, 1
    %p527 = scmp.eq.s32.totalorder %s34, 3
    %p528 = scmp.ne.s32.totalorder %s523, %s525
    %p529 = scmp.eq.s32.totalorder %s34, 0
    %p530 = por %p528, %p529
    %p531 = scmp.ne.s32.totalorder %s523, %s525
    %p532 = scmp.eq.s32.totalorder %s39, 3
    %p533 = por %p531, %p532
    %p534 = scmp.ne.s32.totalorder %s525, %s526
    %p535 = scmp.eq.s32.totalorder %s39, 0
    %p536 = por %p534, %p535
    %p537 = scmp.ne.s32.totalorder %s525, %s526
    %p538 = scmp.eq.s32.totalorder %s40, 3
    %p539 = por %p537, %p538
    %p541 = scmp.ne.s32.totalorder %s526, %s540
    %p542 = scmp.eq.s32.totalorder %s40, 0
    %p543 = por %p541, %p542
    %s545 = sadd.s32 %s544, 1
    %p548 = scmp.eq.s32.totalorder %s34, 3
    %p549 = scmp.ne.s32.totalorder %s544, %s546
    %p550 = scmp.eq.s32.totalorder %s34, 0
    %p551 = por %p549, %p550
    %p552 = scmp.ne.s32.totalorder %s544, %s546
    %p553 = scmp.eq.s32.totalorder %s39, 3
    %p554 = por %p552, %p553
    %p555 = scmp.ne.s32.totalorder %s546, %s547
    %p556 = scmp.eq.s32.totalorder %s39, 0
    %p557 = por %p555, %p556
    %p558 = scmp.ne.s32.totalorder %s546, %s547
    %p559 = scmp.eq.s32.totalorder %s40, 3
    %p560 = por %p558, %p559
    %p562 = scmp.ne.s32.totalorder %s547, %s561
    %p563 = scmp.eq.s32.totalorder %s40, 0
    %p564 = por %p562, %p563
    %s566 = sadd.s32 %s565, 1
    %p569 = scmp.eq.s32.totalorder %s34, 3
    %p570 = scmp.ne.s32.totalorder %s565, %s567
    %p571 = scmp.eq.s32.totalorder %s34, 0
    %p572 = por %p570, %p571
    %p573 = scmp.ne.s32.totalorder %s565, %s567
    %p574 = scmp.eq.s32.totalorder %s39, 3
    %p575 = por %p573, %p574
    %p576 = scmp.ne.s32.totalorder %s567, %s568
    %p577 = scmp.eq.s32.totalorder %s39, 0
    %p578 = por %p576, %p577
    %p579 = scmp.ne.s32.totalorder %s567, %s568
    %p580 = scmp.eq.s32.totalorder %s40, 3
    %p581 = por %p579, %p580
    %p583 = scmp.ne.s32.totalorder %s568, %s582
    %p584 = scmp.eq.s32.totalorder %s40, 0
    %p585 = por %p583, %p584
    %s587 = sadd.s32 %s586, 1
    %p590 = scmp.eq.s32.totalorder %s34, 3
    %p591 = scmp.ne.s32.totalorder %s586, %s588
    %p592 = scmp.eq.s32.totalorder %s34, 0
    %p593 = por %p591, %p592
    %p594 = scmp.ne.s32.totalorder %s586, %s588
    %p595 = scmp.eq.s32.totalorder %s39, 3
    %p596 = por %p594, %p595
    %p597 = scmp.ne.s32.totalorder %s588, %s589
    %p598 = scmp.eq.s32.totalorder %s39, 0
    %p599 = por %p597, %p598
    %p600 = scmp.ne.s32.totalorder %s588, %s589
    %p601 = scmp.eq.s32.totalorder %s40, 3
    %p602 = por %p600, %p601
    %p604 = scmp.ne.s32.totalorder %s589, %s603
    %p605 = scmp.eq.s32.totalorder %s40, 0
    %p606 = por %p604, %p605
    %s608 = sadd.s32 %s607, 1
    %p611 = scmp.eq.s32.totalorder %s34, 3
    %p612 = scmp.ne.s32.totalorder %s607, %s609
    %p613 = scmp.eq.s32.totalorder %s34, 0
    %p614 = por %p612, %p613
    %p615 = scmp.ne.s32.totalorder %s607, %s609
    %p616 = scmp.eq.s32.totalorder %s39, 3
    %p617 = por %p615, %p616
    %p618 = scmp.ne.s32.totalorder %s609, %s610
    %p619 = scmp.eq.s32.totalorder %s39, 0
    %p620 = por %p618, %p619
    %p621 = scmp.ne.s32.totalorder %s609, %s610
    %p622 = scmp.eq.s32.totalorder %s40, 3
    %p623 = por %p621, %p622
    %p625 = scmp.ne.s32.totalorder %s610, %s624
    %p626 = scmp.eq.s32.totalorder %s40, 0
    %p627 = por %p625, %p626
    %s628 = ssub.s32 %s41, %s53
    %p629 = scmp.eq.s32.totalorder %s628, 0
    %s631 = sadd.s32 %s630, 1
    %s632 = scalar_select %p629, %s630, %s631
    %p635 = pneg %p629
    %p636 = scmp.eq.s32.totalorder %s34, 3
    %p637 = por %p635, %p636
    %p638 = scmp.ne.s32.totalorder %s630, %s633
    %p639 = scmp.eq.s32.totalorder %s34, 0
    %p640 = por %p638, %p639
    %p641 = scmp.ne.s32.totalorder %s630, %s633
    %p642 = scmp.eq.s32.totalorder %s39, 3
    %p643 = por %p641, %p642
    %p644 = scmp.ne.s32.totalorder %s633, %s634
    %p645 = scmp.eq.s32.totalorder %s39, 0
    %p646 = por %p644, %p645
    %p647 = scmp.ne.s32.totalorder %s633, %s634
    %p648 = scmp.eq.s32.totalorder %s40, 3
    %p649 = por %p647, %p648
    %p651 = scmp.ne.s32.totalorder %s634, %s650
    %p652 = scmp.eq.s32.totalorder %s40, 0
    %p653 = por %p651, %p652
    %p654 = scmp.le.s32.totalorder 1, %s34
    %p655 = scmp.lt.s32.totalorder %s34, 5
    %p656 = pnand %p654, %p655
    %p657 = pneg %p656
    // Predicated region
    $region9: #{relation_aware_pos_forward.2} parent=5 // pred_check
      _
    $region10: #{relation_aware_pos_forward.2} parent=5 // pred_check_branch
      %659 = sbr.rel (%p656) target = $region12
    $region11: #{relation_aware_pos_forward.2} parent=5 // pred_region
      %s660 = ssub.s32 %s34, 1
      // Predicated region
      $region13: #{relation_aware_pos_forward.2} parent=11 // pred_check
        %p661 = pneg %p431
      $region14: #{relation_aware_pos_forward.2} parent=11 // pred_check_branch
        %663 = sbr.rel (%p661) target = $region16
      $region15: #{relation_aware_pos_forward.2} parent=11 // pred_region
        _
      $region16: #{relation_aware_pos_forward.2} parent=11 // pred_fallthru
        _
      // Predicated region
      $region17: #{relation_aware_pos_forward.2} parent=11 // pred_check
        %p664 = pneg %p452
      $region18: #{relation_aware_pos_forward.2} parent=11 // pred_check_branch
        %666 = sbr.rel (%p664) target = $region20
      $region19: #{relation_aware_pos_forward.2} parent=11 // pred_region
        _
      $region20: #{relation_aware_pos_forward.2} parent=11 // pred_fallthru
        _
      // Predicated region
      $region21: #{relation_aware_pos_forward.2} parent=11 // pred_check
        %p667 = pneg %p473
      $region22: #{relation_aware_pos_forward.2} parent=11 // pred_check_branch
        %669 = sbr.rel (%p667) target = $region24
      $region23: #{relation_aware_pos_forward.2} parent=11 // pred_region
        _
      $region24: #{relation_aware_pos_forward.2} parent=11 // pred_fallthru
        _
      // Predicated region
      $region25: #{relation_aware_pos_forward.2} parent=11 // pred_check
        %p670 = pneg %p494
      $region26: #{relation_aware_pos_forward.2} parent=11 // pred_check_branch
        %672 = sbr.rel (%p670) target = $region28
      $region27: #{relation_aware_pos_forward.2} parent=11 // pred_region
        _
      $region28: #{relation_aware_pos_forward.2} parent=11 // pred_fallthru
        _
      // Predicated region
      $region29: #{relation_aware_pos_forward.2} parent=11 // pred_check
        %p673 = pneg %p515
      $region30: #{relation_aware_pos_forward.2} parent=11 // pred_check_branch
        %675 = sbr.rel (%p673) target = $region32
      $region31: #{relation_aware_pos_forward.2} parent=11 // pred_region
        _
      $region32: #{relation_aware_pos_forward.2} parent=11 // pred_fallthru
        _
      // Predicated region
      $region33: #{relation_aware_pos_forward.2} parent=11 // pred_check
        %p676 = pneg %p536
      $region34: #{relation_aware_pos_forward.2} parent=11 // pred_check_branch
        %678 = sbr.rel (%p676) target = $region36
      $region35: #{relation_aware_pos_forward.2} parent=11 // pred_region
        _
      $region36: #{relation_aware_pos_forward.2} parent=11 // pred_fallthru
        _
      // Predicated region
      $region37: #{relation_aware_pos_forward.2} parent=11 // pred_check
        %p679 = pneg %p557
      $region38: #{relation_aware_pos_forward.2} parent=11 // pred_check_branch
        %681 = sbr.rel (%p679) target = $region40
      $region39: #{relation_aware_pos_forward.2} parent=11 // pred_region
        _
      $region40: #{relation_aware_pos_forward.2} parent=11 // pred_fallthru
        _
      // Predicated region
      $region41: #{relation_aware_pos_forward.2} parent=11 // pred_check
        %p682 = pneg %p578
      $region42: #{relation_aware_pos_forward.2} parent=11 // pred_check_branch
        %684 = sbr.rel (%p682) target = $region44
      $region43: #{relation_aware_pos_forward.2} parent=11 // pred_region
        _
      $region44: #{relation_aware_pos_forward.2} parent=11 // pred_fallthru
        _
      // Predicated region
      $region45: #{relation_aware_pos_forward.2} parent=11 // pred_check
        %p685 = pneg %p599
      $region46: #{relation_aware_pos_forward.2} parent=11 // pred_check_branch
        %687 = sbr.rel (%p685) target = $region48
      $region47: #{relation_aware_pos_forward.2} parent=11 // pred_region
        _
      $region48: #{relation_aware_pos_forward.2} parent=11 // pred_fallthru
        _
      // Predicated region
      $region49: #{relation_aware_pos_forward.2} parent=11 // pred_check
        %p688 = pneg %p620
      $region50: #{relation_aware_pos_forward.2} parent=11 // pred_check_branch
        %690 = sbr.rel (%p688) target = $region52
      $region51: #{relation_aware_pos_forward.2} parent=11 // pred_region
        _
      $region52: #{relation_aware_pos_forward.2} parent=11 // pred_fallthru
        _
    $region12: #{relation_aware_pos_forward.2} parent=5 // pred_fallthru
      _
    %p691 = scmp.lt.s32.totalorder %s34, 4
    // Predicated region
    $region53: #{relation_aware_pos_forward.2} parent=5 // pred_check
      %p692 = pneg %p691
    $region54: #{relation_aware_pos_forward.2} parent=5 // pred_check_branch
      %694 = sbr.rel (%p692) target = $region56
    $region55: #{relation_aware_pos_forward.2} parent=5 // pred_region
      // Predicated region
      $region57: #{relation_aware_pos_forward.2} parent=55 // pred_check
        %p695 = pneg %p66
      $region58: #{relation_aware_pos_forward.2} parent=55 // pred_check_branch
        %697 = sbr.rel (%p695) target = $region60
      $region59: #{relation_aware_pos_forward.2} parent=55 // pred_region
        %p698 = scmp.lt.s32.totalorder %s41, 1
        %s699 = scalar_select %p698, %s41, 1
        %s700 = smul.addr %s699, 8
        %s701 = scalar_lea.vmem %s0, %s700
      $region60: #{relation_aware_pos_forward.2} parent=55 // pred_fallthru
        _
      // Predicated region
      $region61: #{relation_aware_pos_forward.2} parent=55 // pred_check
        %p702 = pneg %p92
      $region62: #{relation_aware_pos_forward.2} parent=55 // pred_check_branch
        %704 = sbr.rel (%p702) target = $region64
      $region63: #{relation_aware_pos_forward.2} parent=55 // pred_region
        %p705 = scmp.lt.s32.totalorder %s41, 1
        %s706 = scalar_select %p705, %s41, 1
        %s707 = smul.addr %s706, 8
        %s708 = scalar_lea.vmem %s1, %s707
      $region64: #{relation_aware_pos_forward.2} parent=55 // pred_fallthru
        _
      // Predicated region
      $region65: #{relation_aware_pos_forward.2} parent=55 // pred_check
        %p709 = pneg %p118
      $region66: #{relation_aware_pos_forward.2} parent=55 // pred_check_branch
        %711 = sbr.rel (%p709) target = $region68
      $region67: #{relation_aware_pos_forward.2} parent=55 // pred_region
        %p712 = scmp.lt.s32.totalorder %s41, 1
        %s713 = scalar_select %p712, %s41, 1
        %s714 = smul.addr %s713, 8
        %s715 = scalar_lea.vmem %s2, %s714
      $region68: #{relation_aware_pos_forward.2} parent=55 // pred_fallthru
        _
      // Predicated region
      $region69: #{relation_aware_pos_forward.2} parent=55 // pred_check
        %p716 = pneg %p144
      $region70: #{relation_aware_pos_forward.2} parent=55 // pred_check_branch
        %718 = sbr.rel (%p716) target = $region72
      $region71: #{relation_aware_pos_forward.2} parent=55 // pred_region
        %p719 = scmp.lt.s32.totalorder %s41, 1
        %s720 = scalar_select %p719, %s41, 1
        %s721 = smul.addr %s720, 8
        %s722 = scalar_lea.vmem %s3, %s721
      $region72: #{relation_aware_pos_forward.2} parent=55 // pred_fallthru
        _
      // Predicated region
      $region73: #{relation_aware_pos_forward.2} parent=55 // pred_check
        %p723 = pneg %p170
      $region74: #{relation_aware_pos_forward.2} parent=55 // pred_check_branch
        %725 = sbr.rel (%p723) target = $region76
      $region75: #{relation_aware_pos_forward.2} parent=55 // pred_region
        %p726 = scmp.lt.s32.totalorder %s41, 1
        %s727 = scalar_select %p726, %s41, 1
        %s728 = smul.addr %s727, 8
        %s729 = scalar_lea.vmem %s4, %s728
      $region76: #{relation_aware_pos_forward.2} parent=55 // pred_fallthru
        _
      // Predicated region
      $region77: #{relation_aware_pos_forward.2} parent=55 // pred_check
        %p730 = pneg %p196
      $region78: #{relation_aware_pos_forward.2} parent=55 // pred_check_branch
        %732 = sbr.rel (%p730) target = $region80
      $region79: #{relation_aware_pos_forward.2} parent=55 // pred_region
        %p733 = scmp.lt.s32.totalorder %s42, 1
        %s734 = scalar_select %p733, %s42, 1
        %s735 = smul.addr %s734, 32
        %s736 = smul.addr %s735, 8
        %s737 = scalar_lea.vmem %s5, %s736
      $region80: #{relation_aware_pos_forward.2} parent=55 // pred_fallthru
        _
      // Predicated region
      $region81: #{relation_aware_pos_forward.2} parent=55 // pred_check
        %p738 = pneg %p222
      $region82: #{relation_aware_pos_forward.2} parent=55 // pred_check_branch
        %740 = sbr.rel (%p738) target = $region84
      $region83: #{relation_aware_pos_forward.2} parent=55 // pred_region
        %p741 = scmp.lt.s32.totalorder %s42, 1
        %s742 = scalar_select %p741, %s42, 1
        %s743 = smul.addr %s742, 32
        %s744 = smul.addr %s743, 8
        %s745 = scalar_lea.vmem %s6, %s744
      $region84: #{relation_aware_pos_forward.2} parent=55 // pred_fallthru
        _
      // Predicated region
      $region85: #{relation_aware_pos_forward.2} parent=55 // pred_check
        %p746 = pneg %p248
      $region86: #{relation_aware_pos_forward.2} parent=55 // pred_check_branch
        %748 = sbr.rel (%p746) target = $region88
      $region87: #{relation_aware_pos_forward.2} parent=55 // pred_region
        %p749 = scmp.lt.s32.totalorder %s42, 1
        %s750 = scalar_select %p749, %s42, 1
        %s751 = smul.addr %s750, 8
        %s752 = smul.addr %s751, 8
        %s753 = scalar_lea.vmem %s7, %s752
      $region88: #{relation_aware_pos_forward.2} parent=55 // pred_fallthru
        _
      // Predicated region
      $region89: #{relation_aware_pos_forward.2} parent=55 // pred_check
        %p754 = pneg %p274
      $region90: #{relation_aware_pos_forward.2} parent=55 // pred_check_branch
        %756 = sbr.rel (%p754) target = $region92
      $region91: #{relation_aware_pos_forward.2} parent=55 // pred_region
        %p757 = scmp.lt.s32.totalorder %s42, 1
        %s758 = scalar_select %p757, %s42, 1
        %s759 = smul.addr %s758, 2
        %s760 = scalar_lea.vmem %s8, %s759
      $region92: #{relation_aware_pos_forward.2} parent=55 // pred_fallthru
        _
      // Predicated region
      $region93: #{relation_aware_pos_forward.2} parent=55 // pred_check
        %p761 = pneg %p300
      $region94: #{relation_aware_pos_forward.2} parent=55 // pred_check_branch
        %763 = sbr.rel (%p761) target = $region96
      $region95: #{relation_aware_pos_forward.2} parent=55 // pred_region
        %p764 = scmp.lt.s32.totalorder %s42, 1
        %s765 = scalar_select %p764, %s42, 1
        %s766 = smul.addr %s765, 4
        %s767 = smul.addr %s766, 8
        %s768 = scalar_lea.vmem %s9, %s767
      $region96: #{relation_aware_pos_forward.2} parent=55 // pred_fallthru
        _
      // Predicated region
      $region97: #{relation_aware_pos_forward.2} parent=55 // pred_check
        %p769 = pneg %p326
      $region98: #{relation_aware_pos_forward.2} parent=55 // pred_check_branch
        %771 = sbr.rel (%p769) target = $region100
      $region99: #{relation_aware_pos_forward.2} parent=55 // pred_region
        %p772 = scmp.lt.s32.totalorder %s42, 1
        %s773 = scalar_select %p772, %s42, 1
        %s774 = scalar_lea.vmem %s10, %s773
      $region100: #{relation_aware_pos_forward.2} parent=55 // pred_fallthru
        _
      // Predicated region
      $region101: #{relation_aware_pos_forward.2} parent=55 // pred_check
        %p775 = pneg %p352
      $region102: #{relation_aware_pos_forward.2} parent=55 // pred_check_branch
        %777 = sbr.rel (%p775) target = $region104
      $region103: #{relation_aware_pos_forward.2} parent=55 // pred_region
        %p778 = scmp.lt.s32.totalorder %s42, 1
        %s779 = scalar_select %p778, %s42, 1
        %s780 = smul.addr %s779, 4
        %s781 = smul.addr %s780, 8
        %s782 = scalar_lea.vmem %s11, %s781
      $region104: #{relation_aware_pos_forward.2} parent=55 // pred_fallthru
        _
      // Predicated region
      $region105: #{relation_aware_pos_forward.2} parent=55 // pred_check
        %p783 = pneg %p378
      $region106: #{relation_aware_pos_forward.2} parent=55 // pred_check_branch
        %785 = sbr.rel (%p783) target = $region108
      $region107: #{relation_aware_pos_forward.2} parent=55 // pred_region
        %p786 = scmp.lt.s32.totalorder %s42, 1
        %s787 = scalar_select %p786, %s42, 1
        %s788 = smul.addr %s787, 4
        %s789 = smul.addr %s788, 8
        %s790 = scalar_lea.vmem %s12, %s789
      $region108: #{relation_aware_pos_forward.2} parent=55 // pred_fallthru
        _
      // Predicated region
      $region109: #{relation_aware_pos_forward.2} parent=55 // pred_check
        %p791 = pneg %p404
      $region110: #{relation_aware_pos_forward.2} parent=55 // pred_check_branch
        %793 = sbr.rel (%p791) target = $region112
      $region111: #{relation_aware_pos_forward.2} parent=55 // pred_region
        %p794 = scmp.lt.s32.totalorder %s42, 1
        %s795 = scalar_select %p794, %s42, 1
        %s796 = scalar_lea.vmem %s13, %s795
      $region112: #{relation_aware_pos_forward.2} parent=55 // pred_fallthru
        _
    $region56: #{relation_aware_pos_forward.2} parent=5 // pred_fallthru
      _
    %p797 = scmp.le.s32.totalorder 1, %s34
    %p798 = scmp.lt.s32.totalorder %s34, 5
    %p799 = pnand %p797, %p798
    %p800 = pneg %p799
    // Predicated region
    $region113: #{relation_aware_pos_forward.2} parent=5 // pred_check
      _
    $region114: #{relation_aware_pos_forward.2} parent=5 // pred_check_branch
      %802 = sbr.rel (%p799) target = $region116
    $region115: #{relation_aware_pos_forward.2} parent=5 // pred_region
      %s803 = ssub.s32 %s34, 1
      %p804 = scmp.lt.s32.totalorder %s43, 1
      %s805 = scalar_select %p804, %s43, 1
      %s806 = smul.addr %s805, 8
      %s807 = scalar_lea.vmem %s0, %s806
      %p808 = pneg %p72
      %p809 = pneg %p69
      %p810 = scmp.lt.s32.totalorder %s43, 1
      %s811 = scalar_select %p810, %s43, 1
      %s812 = smul.addr %s811, 8
      %s813 = scalar_lea.vmem %s1, %s812
      %p814 = pneg %p98
      %p815 = pneg %p95
      %p816 = scmp.lt.s32.totalorder %s43, 1
      %s817 = scalar_select %p816, %s43, 1
      %s818 = smul.addr %s817, 8
      %s819 = scalar_lea.vmem %s2, %s818
      %p820 = pneg %p124
      %p821 = pneg %p121
      %p822 = scmp.lt.s32.totalorder %s43, 1
      %s823 = scalar_select %p822, %s43, 1
      %s824 = smul.addr %s823, 8
      %s825 = scalar_lea.vmem %s3, %s824
      %p826 = pneg %p150
      %p827 = pneg %p147
      %p828 = scmp.lt.s32.totalorder %s43, 1
      %s829 = scalar_select %p828, %s43, 1
      %s830 = smul.addr %s829, 8
      %s831 = scalar_lea.vmem %s4, %s830
      %p832 = pneg %p176
      %p833 = pneg %p173
      %p834 = scmp.lt.s32.totalorder %s44, 1
      %s835 = scalar_select %p834, %s44, 1
      %s836 = smul.addr %s835, 32
      %s837 = smul.addr %s836, 8
      %s838 = scalar_lea.vmem %s5, %s837
      %p839 = pneg %p202
      %p840 = pneg %p199
      %p841 = scmp.lt.s32.totalorder %s44, 1
      %s842 = scalar_select %p841, %s44, 1
      %s843 = smul.addr %s842, 32
      %s844 = smul.addr %s843, 8
      %s845 = scalar_lea.vmem %s6, %s844
      %p846 = pneg %p228
      %p847 = pneg %p225
      %p848 = scmp.lt.s32.totalorder %s44, 1
      %s849 = scalar_select %p848, %s44, 1
      %s850 = smul.addr %s849, 8
      %s851 = smul.addr %s850, 8
      %s852 = scalar_lea.vmem %s7, %s851
      %p853 = pneg %p254
      %p854 = pneg %p251
      %p855 = scmp.lt.s32.totalorder %s44, 1
      %s856 = scalar_select %p855, %s44, 1
      %s857 = smul.addr %s856, 2
      %s858 = scalar_lea.vmem %s8, %s857
      %p859 = pneg %p280
      %p860 = pneg %p277
      %p861 = scmp.lt.s32.totalorder %s44, 1
      %s862 = scalar_select %p861, %s44, 1
      %s863 = smul.addr %s862, 4
      %s864 = smul.addr %s863, 8
      %s865 = scalar_lea.vmem %s9, %s864
      %p866 = pneg %p306
      %p867 = pneg %p303
      %p868 = scmp.lt.s32.totalorder %s44, 1
      %s869 = scalar_select %p868, %s44, 1
      %s870 = scalar_lea.vmem %s10, %s869
      %p871 = pneg %p332
      %p872 = pneg %p329
      %p873 = scmp.lt.s32.totalorder %s44, 1
      %s874 = scalar_select %p873, %s44, 1
      %s875 = smul.addr %s874, 4
      %s876 = smul.addr %s875, 8
      %s877 = scalar_lea.vmem %s11, %s876
      %p878 = pneg %p358
      %p879 = pneg %p355
      %p880 = scmp.lt.s32.totalorder %s44, 1
      %s881 = scalar_select %p880, %s44, 1
      %s882 = smul.addr %s881, 4
      %s883 = smul.addr %s882, 8
      %s884 = scalar_lea.vmem %s12, %s883
      %p885 = pneg %p384
      %p886 = pneg %p381
      %p887 = scmp.lt.s32.totalorder %s44, 1
      %s888 = scalar_select %p887, %s44, 1
      %s889 = scalar_lea.vmem %s13, %s888
      %p890 = pneg %p410
      %p891 = pneg %p407
      %p892 = pneg %p431
      %p893 = pneg %p428
      %p894 = pneg %p452
      %p895 = pneg %p449
      %p896 = pneg %p473
      %p897 = pneg %p470
      %p898 = pneg %p494
      %p899 = pneg %p491
      %p900 = pneg %p515
      %p901 = pneg %p512
      %p902 = pneg %p536
      %p903 = pneg %p533
      %p904 = pneg %p557
      %p905 = pneg %p554
      %p906 = pneg %p578
      %p907 = pneg %p575
      %p908 = pneg %p599
      %p909 = pneg %p596
      %p910 = pneg %p620
      %p911 = pneg %p617
      %p912 = pneg %p646
      %p913 = pneg %p643
      %p914 = scmp.lt.s32.totalorder %s43, 1
      %s915 = scalar_select %p914, %s43, 1
      %s916 = smul.addr %s915, 8
      %s917 = scalar_lea.vmem %s24, %s916
      %p918 = scmp.lt.s32.totalorder %s43, 1
      %s919 = scalar_select %p918, %s43, 1
      %s920 = smul.addr %s919, 8
      %s921 = scalar_lea.vmem %s0, %s920
      %p922 = scmp.lt.s32.totalorder %s43, 1
      %s923 = scalar_select %p922, %s43, 1
      %s924 = smul.addr %s923, 8
      %s925 = scalar_lea.vmem %s1, %s924
      %p926 = scmp.lt.s32.totalorder %s43, 1
      %s927 = scalar_select %p926, %s43, 1
      %s928 = smul.addr %s927, 8
      %s929 = scalar_lea.vmem %s2, %s928
      %p930 = scmp.lt.s32.totalorder %s43, 1
      %s931 = scalar_select %p930, %s43, 1
      %s932 = smul.addr %s931, 8
      %s933 = scalar_lea.vmem %s3, %s932
      %p934 = scmp.lt.s32.totalorder %s43, 1
      %s935 = scalar_select %p934, %s43, 1
      %s936 = smul.addr %s935, 8
      %s937 = scalar_lea.vmem %s4, %s936
      %p938 = scmp.lt.s32.totalorder %s44, 1
      %s939 = scalar_select %p938, %s44, 1
      %s940 = smul.addr %s939, 32
      %s941 = smul.addr %s940, 8
      %s942 = scalar_lea.vmem %s5, %s941
      %p943 = scmp.lt.s32.totalorder %s44, 1
      %s944 = scalar_select %p943, %s44, 1
      %s945 = smul.addr %s944, 32
      %s946 = smul.addr %s945, 8
      %s947 = scalar_lea.vmem %s6, %s946
      %p948 = scmp.lt.s32.totalorder %s44, 1
      %s949 = scalar_select %p948, %s44, 1
      %s950 = smul.addr %s949, 8
      %s951 = smul.addr %s950, 8
      %s952 = scalar_lea.vmem %s7, %s951
      %p953 = scmp.lt.s32.totalorder %s44, 1
      %s954 = scalar_select %p953, %s44, 1
      %s955 = smul.addr %s954, 2
      %s956 = scalar_lea.vmem %s8, %s955
      %p957 = scmp.lt.s32.totalorder %s44, 1
      %s958 = scalar_select %p957, %s44, 1
      %s959 = smul.addr %s958, 4
      %s960 = smul.addr %s959, 8
      %s961 = scalar_lea.vmem %s9, %s960
      %p962 = scmp.lt.s32.totalorder %s44, 1
      %s963 = scalar_select %p962, %s44, 1
      %s964 = scalar_lea.vmem %s10, %s963
      %p965 = scmp.lt.s32.totalorder %s44, 1
      %s966 = scalar_select %p965, %s44, 1
      %s967 = smul.addr %s966, 4
      %s968 = smul.addr %s967, 8
      %s969 = scalar_lea.vmem %s11, %s968
      %p970 = scmp.lt.s32.totalorder %s44, 1
      %s971 = scalar_select %p970, %s44, 1
      %s972 = smul.addr %s971, 4
      %s973 = smul.addr %s972, 8
      %s974 = scalar_lea.vmem %s12, %s973
      %p975 = scmp.lt.s32.totalorder %s44, 1
      %s976 = scalar_select %p975, %s44, 1
      %s977 = scalar_lea.vmem %s13, %s976
      %p978 = scmp.lt.s32.totalorder %s43, 1
      %s979 = scalar_select %p978, %s43, 1
      %s980 = smul.addr %s979, 8
      %s981 = scalar_lea.vmem %s24, %s980
      %p982 = scmp.eq.s32.totalorder %s44, 0
      // Predicated region
      $region117: #{relation_aware_pos_forward.2} parent=115 // pred_check
        %p983 = pneg %p982
      $region118: #{relation_aware_pos_forward.2} parent=115 // pred_check_branch
        %985 = sbr.rel (%p983) target = $region120
      $region119: #{relation_aware_pos_forward.2} parent=115 // pred_region
        %v986 = vld [vmem:[%s921] sm:$0xff]
        %vm987 = vcmask 261120
        %988 = vst.msk [vmem:[#allocation2] sm:$0xff] %vm987, %v986
      $region120: #{relation_aware_pos_forward.2} parent=115 // pred_fallthru
        _
      %v989 = vld [vmem:[#allocation2] sm:$0xff]
      %v990 = vld [vmem:[%s925] sm:$0xff]
      %992 = vset.pattern.permute.xlu0 0
      %993 = vperm.xlu0 %992, %v990
      %v994 = vpop.permute.xlu0 %993
      %v996 = vmul.f32 %v989, %v994
      %v997 = vld [vmem:[%s933] sm:$0xff]
      %v998 = vld [vmem:[%s937] sm:$0xff]
      %v999 = vld [vmem:[%s929] sm:$0xff]
      %v1000 = vld [vmem:[%s942] sm:$0xff]
      %v1001 = vld [vmem:[%s942 + $0x8] sm:$0xff]
      %v1002 = vld [vmem:[%s942 + $0x10] sm:$0xff]
      %v1003 = vld [vmem:[%s942 + $0x18] sm:$0xff]
      %v1004 = vld [vmem:[%s942 + $0x20] sm:$0xff]
      %v1005 = vld [vmem:[%s942 + $0x28] sm:$0xff]
      %v1006 = vld [vmem:[%s942 + $0x30] sm:$0xff]
      %v1007 = vld [vmem:[%s942 + $0x38] sm:$0xff]
      %v1008 = vld [vmem:[%s942 + $0x40] sm:$0xff]
      %v1009 = vld [vmem:[%s942 + $0x48] sm:$0xff]
      %v1010 = vld [vmem:[%s942 + $0x50] sm:$0xff]
      %v1011 = vld [vmem:[%s942 + $0x58] sm:$0xff]
      %v1012 = vld [vmem:[%s942 + $0x60] sm:$0xff]
      %v1013 = vld [vmem:[%s942 + $0x68] sm:$0xff]
      %v1014 = vld [vmem:[%s942 + $0x70] sm:$0xff]
      %v1015 = vld [vmem:[%s942 + $0x78] sm:$0xff]
      %1016 = vmatprep.subr.mxu0 0.0
      %1017 = vmatpush1.msra.mxu0 %v1000
      %1018 = vmatprep.subr.mxu0 0.0
      %1019 = vmatpush1.msra.mxu0 %v1001
      %1020 = vmatprep.subr.mxu0 0.0
      %1021 = vmatpush1.msra.mxu0 %v1002
      %1022 = vmatprep.subr.mxu0 0.0
      %1023 = vmatpush1.msra.mxu0 %v1003
      %1024 = vmatprep.subr.mxu0 0.0
      %1025 = vmatpush1.msra.mxu0 %v1004
      %1026 = vmatprep.subr.mxu0 0.0
      %1027 = vmatpush1.msra.mxu0 %v1005
      %1028 = vmatprep.subr.mxu0 0.0
      %1029 = vmatpush1.msra.mxu0 %v1006
      %1030 = vmatprep.subr.mxu0 0.0
      %1031 = vmatpush1.msra.mxu0 %v1007
      %1032 = vmatprep.subr.mxu0 0.0
      %1033 = vmatpush1.msra.mxu0 %v1008
      %1034 = vmatprep.subr.mxu0 0.0
      %1035 = vmatpush1.msra.mxu0 %v1009
      %1036 = vmatprep.subr.mxu0 0.0
      %1037 = vmatpush1.msra.mxu0 %v1010
      %1038 = vmatprep.subr.mxu0 0.0
      %1039 = vmatpush1.msra.mxu0 %v1011
      %1040 = vmatprep.subr.mxu0 0.0
      %1041 = vmatpush1.msra.mxu0 %v1012
      %1042 = vmatprep.subr.mxu0 0.0
      %1043 = vmatpush1.msra.mxu0 %v1013
      %1044 = vmatprep.subr.mxu0 0.0
      %1045 = vmatpush1.msra.mxu0 %v1014
      %1046 = vmatprep.subr.mxu0 0.0
      %1047 = vmatpush1.msra.mxu0 %v1015
      %1048 = vmatprep.subr.mxu0 0.0
      %1049 = vmatpush1.msra.mxu0 0.0
      %1050 = vmatprep.subr.mxu0 0.0
      %1051 = vmatpush1.msra.mxu0 0.0
      %1052 = vmatprep.subr.mxu0 0.0
      %1053 = vmatpush1.msra.mxu0 0.0
      %1054 = vmatprep.subr.mxu0 0.0
      %1055 = vmatpush1.msra.mxu0 0.0
      %1056 = vmatprep.subr.mxu0 0.0
      %1057 = vmatpush1.msra.mxu0 0.0
      %1058 = vmatprep.subr.mxu0 0.0
      %1059 = vmatpush1.msra.mxu0 0.0
      %1060 = vmatprep.subr.mxu0 0.0
      %1061 = vmatpush1.msra.mxu0 0.0
      %1062 = vmatprep.subr.mxu0 0.0
      %1063 = vmatpush1.msra.mxu0 0.0
      %1064 = vmatprep.subr.mxu0 0.0
      %1065 = vmatpush1.msra.mxu0 0.0
      %1066 = vmatprep.subr.mxu0 0.0
      %1067 = vmatpush1.msra.mxu0 0.0
      %1068 = vmatprep.subr.mxu0 0.0
      %1069 = vmatpush1.msra.mxu0 0.0
      %1070 = vmatprep.subr.mxu0 0.0
      %1071 = vmatpush1.msra.mxu0 0.0
      %1072 = vmatprep.subr.mxu0 0.0
      %1073 = vmatpush1.msra.mxu0 0.0
      %1074 = vmatprep.subr.mxu0 0.0
      %1075 = vmatpush1.msra.mxu0 0.0
      %1076 = vmatprep.subr.mxu0 0.0
      %1077 = vmatpush1.msra.mxu0 0.0
      %1078 = vmatprep.subr.mxu0 0.0
      %1079 = vmatpush1.msra.mxu0 0.0
      %1080 = vmatprep.mubr.f32.mxu0 0.0
      %1081 = vmatmul.mubr.f32.gmra.mrb[0].mxu0 %v999
      %v1082 = vpop.f32.mrb[0].mxu0
      %v1083 = vadd.f32 0.0, %v1082
      %v1084 = vpop.f32.mrb[0].mxu0
      %1085 = vdwg.mxu0
      %v1086 = vmax.f32 %v1083, 0.0
      %v1087 = vld [vmem:[%s947] sm:$0xff]
      %v1088 = vld [vmem:[%s947 + $0x8] sm:$0xff]
      %v1089 = vld [vmem:[%s947 + $0x10] sm:$0xff]
      %v1090 = vld [vmem:[%s947 + $0x18] sm:$0xff]
      %v1091 = vld [vmem:[%s947 + $0x20] sm:$0xff]
      %v1092 = vld [vmem:[%s947 + $0x28] sm:$0xff]
      %v1093 = vld [vmem:[%s947 + $0x30] sm:$0xff]
      %v1094 = vld [vmem:[%s947 + $0x38] sm:$0xff]
      %v1095 = vld [vmem:[%s947 + $0x40] sm:$0xff]
      %v1096 = vld [vmem:[%s947 + $0x48] sm:$0xff]
      %v1097 = vld [vmem:[%s947 + $0x50] sm:$0xff]
      %v1098 = vld [vmem:[%s947 + $0x58] sm:$0xff]
      %v1099 = vld [vmem:[%s947 + $0x60] sm:$0xff]
      %v1100 = vld [vmem:[%s947 + $0x68] sm:$0xff]
      %v1101 = vld [vmem:[%s947 + $0x70] sm:$0xff]
      %v1102 = vld [vmem:[%s947 + $0x78] sm:$0xff]
      %1103 = vmatprep.subr.mxu0 0.0
      %1104 = vmatpush1.msra.mxu0 %v1087
      %1105 = vmatprep.subr.mxu0 0.0
      %1106 = vmatpush1.msra.mxu0 %v1088
      %1107 = vmatprep.subr.mxu0 0.0
      %1108 = vmatpush1.msra.mxu0 %v1089
      %1109 = vmatprep.subr.mxu0 0.0
      %1110 = vmatpush1.msra.mxu0 %v1090
      %1111 = vmatprep.subr.mxu0 0.0
      %1112 = vmatpush1.msra.mxu0 %v1091
      %1113 = vmatprep.subr.mxu0 0.0
      %1114 = vmatpush1.msra.mxu0 %v1092
      %1115 = vmatprep.subr.mxu0 0.0
      %1116 = vmatpush1.msra.mxu0 %v1093
      %1117 = vmatprep.subr.mxu0 0.0
      %1118 = vmatpush1.msra.mxu0 %v1094
      %1119 = vmatprep.subr.mxu0 0.0
      %1120 = vmatpush1.msra.mxu0 %v1095
      %1121 = vmatprep.subr.mxu0 0.0
      %1122 = vmatpush1.msra.mxu0 %v1096
      %1123 = vmatprep.subr.mxu0 0.0
      %1124 = vmatpush1.msra.mxu0 %v1097
      %1125 = vmatprep.subr.mxu0 0.0
      %1126 = vmatpush1.msra.mxu0 %v1098
      %1127 = vmatprep.subr.mxu0 0.0
      %1128 = vmatpush1.msra.mxu0 %v1099
      %1129 = vmatprep.subr.mxu0 0.0
      %1130 = vmatpush1.msra.mxu0 %v1100
      %1131 = vmatprep.subr.mxu0 0.0
      %1132 = vmatpush1.msra.mxu0 %v1101
      %1133 = vmatprep.subr.mxu0 0.0
      %1134 = vmatpush1.msra.mxu0 %v1102
      %1135 = vmatprep.subr.mxu0 0.0
      %1136 = vmatpush1.msra.mxu0 0.0
      %1137 = vmatprep.subr.mxu0 0.0
      %1138 = vmatpush1.msra.mxu0 0.0
      %1139 = vmatprep.subr.mxu0 0.0
      %1140 = vmatpush1.msra.mxu0 0.0
      %1141 = vmatprep.subr.mxu0 0.0
      %1142 = vmatpush1.msra.mxu0 0.0
      %1143 = vmatprep.subr.mxu0 0.0
      %1144 = vmatpush1.msra.mxu0 0.0
      %1145 = vmatprep.subr.mxu0 0.0
      %1146 = vmatpush1.msra.mxu0 0.0
      %1147 = vmatprep.subr.mxu0 0.0
      %1148 = vmatpush1.msra.mxu0 0.0
      %1149 = vmatprep.subr.mxu0 0.0
      %1150 = vmatpush1.msra.mxu0 0.0
      %1151 = vmatprep.subr.mxu0 0.0
      %1152 = vmatpush1.msra.mxu0 0.0
      %1153 = vmatprep.subr.mxu0 0.0
      %1154 = vmatpush1.msra.mxu0 0.0
      %1155 = vmatprep.subr.mxu0 0.0
      %1156 = vmatpush1.msra.mxu0 0.0
      %1157 = vmatprep.subr.mxu0 0.0
      %1158 = vmatpush1.msra.mxu0 0.0
      %1159 = vmatprep.subr.mxu0 0.0
      %1160 = vmatpush1.msra.mxu0 0.0
      %1161 = vmatprep.subr.mxu0 0.0
      %1162 = vmatpush1.msra.mxu0 0.0
      %1163 = vmatprep.subr.mxu0 0.0
      %1164 = vmatpush1.msra.mxu0 0.0
      %1165 = vmatprep.subr.mxu0 0.0
      %1166 = vmatpush1.msra.mxu0 0.0
      %1167 = vmatprep.mubr.f32.mxu0 0.0
      %1168 = vmatmul.mubr.f32.gmra.mrb[0].mxu0 %v1086
      %v1169 = vpop.f32.mrb[0].mxu0
      %v1170 = vadd.f32 0.0, %v1169
      %v1171 = vpop.f32.mrb[0].mxu0
      %1172 = vdwg.mxu0
      %vm1173 = vcmask 64512
      %v1174 = vsel %vm1173, %v1170, 0.0
      %1175 = vadd.xlane.f32.xlu0 %v1174
      %v1176 = vpop.xlane.xlu0 %1175
      %v1177 = vrcp.pop 8.0
      %v1178 = vmul.f32 %v1176, %v1177
      %v1179 = vand.u32 2147483647, %v1178
      %v1180 = vadd.f32 %v1179, 1e-10
      %v1181 = vrcp.pop %v1180
      %v1182 = vmul.f32 %v1170, %v1181
      %vm1183 = vcmp.ne.f32.partialorder %v997, 0.0
      %v1184 = vsel %vm1183, %v1182, -9e+15
      %v1185 = vsel %vm1173, %v1184, -inf
      %1186 = vmax.xlane.f32.xlu0 %v1185
      %v1187 = vpop.xlane.xlu0 %1186
      %v1188 = vsub.f32 %v1184, %v1187
      %v1189 = vmul.f32 %v1188, 1.442695
      %v1190 = vpow.pop %v1189
      %v1191 = vsel %vm1173, %v1190, 0.0
      %1192 = vadd.xlane.f32.xlu0 %v1191
      %v1193 = vpop.xlane.xlu0 %1192
      %v1194 = vrcp.pop %v1193
      %v1195 = vmul.f32 %v1190, %v1194
      %v1196 = vld [vmem:[%s952] sm:$0xff]
      %v1197 = vld [vmem:[%s952 + $0x8] sm:$0xff]
      %v1198 = vld [vmem:[%s952 + $0x10] sm:$0xff]
      %v1199 = vld [vmem:[%s952 + $0x18] sm:$0xff]
      %v1200 = vld [vmem:[%s956] sm:$0x1]
      %v1202 = vlaneseq
      %v1203 = vshrl.u32 %v1202, 7
      %v1204 = vsub.s32 0, %v1203
      %v1205 = vrot.slane %v1200, %v1204
      %vm1207 = vcmask 261120
      %v1209 = vsel %vm1207, %v996, 0
      %1211 = vmatprep.subr.mxu0 0.0
      %1212 = vmatpush1.msra.mxu0 %v1196
      %1213 = vmatprep.subr.mxu0 0.0
      %1214 = vmatpush1.msra.mxu0 %v1197
      %1215 = vmatprep.subr.mxu0 0.0
      %1216 = vmatpush1.msra.mxu0 %v1198
      %1217 = vmatprep.subr.mxu0 0.0
      %1218 = vmatpush1.msra.mxu0 %v1199
      %1219 = vmatprep.subr.mxu0 0.0
      %1220 = vmatpush1.msra.mxu0 0.0
      %1221 = vmatprep.subr.mxu0 0.0
      %1222 = vmatpush1.msra.mxu0 0.0
      %1223 = vmatprep.subr.mxu0 0.0
      %1224 = vmatpush1.msra.mxu0 0.0
      %1225 = vmatprep.subr.mxu0 0.0
      %1226 = vmatpush1.msra.mxu0 0.0
      %1227 = vmatprep.subr.mxu0 0.0
      %1228 = vmatpush1.msra.mxu0 0.0
      %1229 = vmatprep.subr.mxu0 0.0
      %1230 = vmatpush1.msra.mxu0 0.0
      %1231 = vmatprep.subr.mxu0 0.0
      %1232 = vmatpush1.msra.mxu0 0.0
      %1233 = vmatprep.subr.mxu0 0.0
      %1234 = vmatpush1.msra.mxu0 0.0
      %1235 = vmatprep.subr.mxu0 0.0
      %1236 = vmatpush1.msra.mxu0 0.0
      %1237 = vmatprep.subr.mxu0 0.0
      %1238 = vmatpush1.msra.mxu0 0.0
      %1239 = vmatprep.subr.mxu0 0.0
      %1240 = vmatpush1.msra.mxu0 0.0
      %1241 = vmatprep.subr.mxu0 0.0
      %1242 = vmatpush1.msra.mxu0 0.0
      %1243 = vmatprep.subr.mxu0 0.0
      %1244 = vmatpush1.msra.mxu0 0.0
      %1245 = vmatprep.subr.mxu0 0.0
      %1246 = vmatpush1.msra.mxu0 0.0
      %1247 = vmatprep.subr.mxu0 0.0
      %1248 = vmatpush1.msra.mxu0 0.0
      %1249 = vmatprep.subr.mxu0 0.0
      %1250 = vmatpush1.msra.mxu0 0.0
      %1251 = vmatprep.subr.mxu0 0.0
      %1252 = vmatpush1.msra.mxu0 0.0
      %1253 = vmatprep.subr.mxu0 0.0
      %1254 = vmatpush1.msra.mxu0 0.0
      %1255 = vmatprep.subr.mxu0 0.0
      %1256 = vmatpush1.msra.mxu0 0.0
      %1257 = vmatprep.subr.mxu0 0.0
      %1258 = vmatpush1.msra.mxu0 0.0
      %1259 = vmatprep.subr.mxu0 0.0
      %1260 = vmatpush1.msra.mxu0 0.0
      %1261 = vmatprep.subr.mxu0 0.0
      %1262 = vmatpush1.msra.mxu0 0.0
      %1263 = vmatprep.subr.mxu0 0.0
      %1264 = vmatpush1.msra.mxu0 0.0
      %1265 = vmatprep.subr.mxu0 0.0
      %1266 = vmatpush1.msra.mxu0 0.0
      %1267 = vmatprep.subr.mxu0 0.0
      %1268 = vmatpush1.msra.mxu0 0.0
      %1269 = vmatprep.subr.mxu0 0.0
      %1270 = vmatpush1.msra.mxu0 0.0
      %1271 = vmatprep.subr.mxu0 0.0
      %1272 = vmatpush1.msra.mxu0 0.0
      %1273 = vmatprep.subr.mxu0 0.0
      %1274 = vmatpush1.msra.mxu0 0.0
      %1275 = vmatprep.mubr.f32.mxu0 0.0
      %1276 = vmatmul.mubr.f32.gmra.mrb[0].mxu0 %v1209
      %v1277 = vpop.f32.mrb[0].mxu0
      %v1278 = vadd.f32 %v1205, %v1277
      %v1279 = vpop.f32.mrb[0].mxu0
      %1280 = vdwg.mxu0
      %v1282 = vsel %vm1173, %v1195, 0
      %1284 = vmatprep.subr.mxu0 0.0
      %1285 = vmatpush1.msra.mxu0 %v1278
      %1286 = vmatprep.subr.mxu0 0.0
      %1287 = vmatpush1.msra.mxu0 0.0
      %1288 = vmatprep.subr.mxu0 0.0
      %1289 = vmatpush1.msra.mxu0 0.0
      %1290 = vmatprep.subr.mxu0 0.0
      %1291 = vmatpush1.msra.mxu0 0.0
      %1292 = vmatprep.subr.mxu0 0.0
      %1293 = vmatpush1.msra.mxu0 0.0
      %1294 = vmatprep.subr.mxu0 0.0
      %1295 = vmatpush1.msra.mxu0 0.0
      %1296 = vmatprep.subr.mxu0 0.0
      %1297 = vmatpush1.msra.mxu0 0.0
      %1298 = vmatprep.subr.mxu0 0.0
      %1299 = vmatpush1.msra.mxu0 0.0
      %1300 = vmatprep.subr.mxu0 0.0
      %1301 = vmatpush1.msra.mxu0 0.0
      %1302 = vmatprep.subr.mxu0 0.0
      %1303 = vmatpush1.msra.mxu0 0.0
      %1304 = vmatprep.subr.mxu0 0.0
      %1305 = vmatpush1.msra.mxu0 0.0
      %1306 = vmatprep.subr.mxu0 0.0
      %1307 = vmatpush1.msra.mxu0 0.0
      %1308 = vmatprep.subr.mxu0 0.0
      %1309 = vmatpush1.msra.mxu0 0.0
      %1310 = vmatprep.subr.mxu0 0.0
      %1311 = vmatpush1.msra.mxu0 0.0
      %1312 = vmatprep.subr.mxu0 0.0
      %1313 = vmatpush1.msra.mxu0 0.0
      %1314 = vmatprep.subr.mxu0 0.0
      %1315 = vmatpush1.msra.mxu0 0.0
      %1316 = vmatprep.subr.mxu0 0.0
      %1317 = vmatpush1.msra.mxu0 0.0
      %1318 = vmatprep.subr.mxu0 0.0
      %1319 = vmatpush1.msra.mxu0 0.0
      %1320 = vmatprep.subr.mxu0 0.0
      %1321 = vmatpush1.msra.mxu0 0.0
      %1322 = vmatprep.subr.mxu0 0.0
      %1323 = vmatpush1.msra.mxu0 0.0
      %1324 = vmatprep.subr.mxu0 0.0
      %1325 = vmatpush1.msra.mxu0 0.0
      %1326 = vmatprep.subr.mxu0 0.0
      %1327 = vmatpush1.msra.mxu0 0.0
      %1328 = vmatprep.subr.mxu0 0.0
      %1329 = vmatpush1.msra.mxu0 0.0
      %1330 = vmatprep.subr.mxu0 0.0
      %1331 = vmatpush1.msra.mxu0 0.0
      %1332 = vmatprep.subr.mxu0 0.0
      %1333 = vmatpush1.msra.mxu0 0.0
      %1334 = vmatprep.subr.mxu0 0.0
      %1335 = vmatpush1.msra.mxu0 0.0
      %1336 = vmatprep.subr.mxu0 0.0
      %1337 = vmatpush1.msra.mxu0 0.0
      %1338 = vmatprep.subr.mxu0 0.0
      %1339 = vmatpush1.msra.mxu0 0.0
      %1340 = vmatprep.subr.mxu0 0.0
      %1341 = vmatpush1.msra.mxu0 0.0
      %1342 = vmatprep.subr.mxu0 0.0
      %1343 = vmatpush1.msra.mxu0 0.0
      %1344 = vmatprep.subr.mxu0 0.0
      %1345 = vmatpush1.msra.mxu0 0.0
      %1346 = vmatprep.subr.mxu0 0.0
      %1347 = vmatpush1.msra.mxu0 0.0
      %1348 = vmatprep.mubr.f32.mxu0 0.0
      %1349 = vmatmul.mubr.f32.gmra.mrb[0].mxu0 %v1282
      %v1350 = vpop.f32.mrb[0].mxu0
      %v1351 = vadd.f32 0.0, %v1350
      %v1352 = vpop.f32.mrb[0].mxu0
      %1353 = vdwg.mxu0
      %v1354 = vmax.f32 %v1351, 0.0
      %1355 = vst.msk [vmem:[#allocation3] sm:$0xff] %vm1207, %v1354
      %s1356 = scalar_lea.vmem %s942, 128
      %v1357 = vld [vmem:[%s1356] sm:$0xff]
      %v1358 = vld [vmem:[%s1356 + $0x8] sm:$0xff]
      %v1359 = vld [vmem:[%s1356 + $0x10] sm:$0xff]
      %v1360 = vld [vmem:[%s1356 + $0x18] sm:$0xff]
      %v1361 = vld [vmem:[%s1356 + $0x20] sm:$0xff]
      %v1362 = vld [vmem:[%s1356 + $0x28] sm:$0xff]
      %v1363 = vld [vmem:[%s1356 + $0x30] sm:$0xff]
      %v1364 = vld [vmem:[%s1356 + $0x38] sm:$0xff]
      %v1365 = vld [vmem:[%s1356 + $0x40] sm:$0xff]
      %v1366 = vld [vmem:[%s1356 + $0x48] sm:$0xff]
      %v1367 = vld [vmem:[%s1356 + $0x50] sm:$0xff]
      %v1368 = vld [vmem:[%s1356 + $0x58] sm:$0xff]
      %v1369 = vld [vmem:[%s1356 + $0x60] sm:$0xff]
      %v1370 = vld [vmem:[%s1356 + $0x68] sm:$0xff]
      %v1371 = vld [vmem:[%s1356 + $0x70] sm:$0xff]
      %v1372 = vld [vmem:[%s1356 + $0x78] sm:$0xff]
      %1373 = vmatprep.subr.mxu0 0.0
      %1374 = vmatpush1.msra.mxu0 %v1357
      %1375 = vmatprep.subr.mxu0 0.0
      %1376 = vmatpush1.msra.mxu0 %v1358
      %1377 = vmatprep.subr.mxu0 0.0
      %1378 = vmatpush1.msra.mxu0 %v1359
      %1379 = vmatprep.subr.mxu0 0.0
      %1380 = vmatpush1.msra.mxu0 %v1360
      %1381 = vmatprep.subr.mxu0 0.0
      %1382 = vmatpush1.msra.mxu0 %v1361
      %1383 = vmatprep.subr.mxu0 0.0
      %1384 = vmatpush1.msra.mxu0 %v1362
      %1385 = vmatprep.subr.mxu0 0.0
      %1386 = vmatpush1.msra.mxu0 %v1363
      %1387 = vmatprep.subr.mxu0 0.0
      %1388 = vmatpush1.msra.mxu0 %v1364
      %1389 = vmatprep.subr.mxu0 0.0
      %1390 = vmatpush1.msra.mxu0 %v1365
      %1391 = vmatprep.subr.mxu0 0.0
      %1392 = vmatpush1.msra.mxu0 %v1366
      %1393 = vmatprep.subr.mxu0 0.0
      %1394 = vmatpush1.msra.mxu0 %v1367
      %1395 = vmatprep.subr.mxu0 0.0
      %1396 = vmatpush1.msra.mxu0 %v1368
      %1397 = vmatprep.subr.mxu0 0.0
      %1398 = vmatpush1.msra.mxu0 %v1369
      %1399 = vmatprep.subr.mxu0 0.0
      %1400 = vmatpush1.msra.mxu0 %v1370
      %1401 = vmatprep.subr.mxu0 0.0
      %1402 = vmatpush1.msra.mxu0 %v1371
      %1403 = vmatprep.subr.mxu0 0.0
      %1404 = vmatpush1.msra.mxu0 %v1372
      %1405 = vmatprep.subr.mxu0 0.0
      %1406 = vmatpush1.msra.mxu0 0.0
      %1407 = vmatprep.subr.mxu0 0.0
      %1408 = vmatpush1.msra.mxu0 0.0
      %1409 = vmatprep.subr.mxu0 0.0
      %1410 = vmatpush1.msra.mxu0 0.0
      %1411 = vmatprep.subr.mxu0 0.0
      %1412 = vmatpush1.msra.mxu0 0.0
      %1413 = vmatprep.subr.mxu0 0.0
      %1414 = vmatpush1.msra.mxu0 0.0
      %1415 = vmatprep.subr.mxu0 0.0
      %1416 = vmatpush1.msra.mxu0 0.0
      %1417 = vmatprep.subr.mxu0 0.0
      %1418 = vmatpush1.msra.mxu0 0.0
      %1419 = vmatprep.subr.mxu0 0.0
      %1420 = vmatpush1.msra.mxu0 0.0
      %1421 = vmatprep.subr.mxu0 0.0
      %1422 = vmatpush1.msra.mxu0 0.0
      %1423 = vmatprep.subr.mxu0 0.0
      %1424 = vmatpush1.msra.mxu0 0.0
      %1425 = vmatprep.subr.mxu0 0.0
      %1426 = vmatpush1.msra.mxu0 0.0
      %1427 = vmatprep.subr.mxu0 0.0
      %1428 = vmatpush1.msra.mxu0 0.0
      %1429 = vmatprep.subr.mxu0 0.0
      %1430 = vmatpush1.msra.mxu0 0.0
      %1431 = vmatprep.subr.mxu0 0.0
      %1432 = vmatpush1.msra.mxu0 0.0
      %1433 = vmatprep.subr.mxu0 0.0
      %1434 = vmatpush1.msra.mxu0 0.0
      %1435 = vmatprep.subr.mxu0 0.0
      %1436 = vmatpush1.msra.mxu0 0.0
      %1437 = vmatprep.mubr.f32.mxu0 0.0
      %1438 = vmatmul.mubr.f32.gmra.mrb[0].mxu0 %v999
      %v1439 = vpop.f32.mrb[0].mxu0
      %v1440 = vadd.f32 0.0, %v1439
      %v1441 = vpop.f32.mrb[0].mxu0
      %1442 = vdwg.mxu0
      %v1443 = vmax.f32 %v1440, 0.0
      %s1444 = scalar_lea.vmem %s947, 128
      %v1445 = vld [vmem:[%s1444] sm:$0xff]
      %v1446 = vld [vmem:[%s1444 + $0x8] sm:$0xff]
      %v1447 = vld [vmem:[%s1444 + $0x10] sm:$0xff]
      %v1448 = vld [vmem:[%s1444 + $0x18] sm:$0xff]
      %v1449 = vld [vmem:[%s1444 + $0x20] sm:$0xff]
      %v1450 = vld [vmem:[%s1444 + $0x28] sm:$0xff]
      %v1451 = vld [vmem:[%s1444 + $0x30] sm:$0xff]
      %v1452 = vld [vmem:[%s1444 + $0x38] sm:$0xff]
      %v1453 = vld [vmem:[%s1444 + $0x40] sm:$0xff]
      %v1454 = vld [vmem:[%s1444 + $0x48] sm:$0xff]
      %v1455 = vld [vmem:[%s1444 + $0x50] sm:$0xff]
      %v1456 = vld [vmem:[%s1444 + $0x58] sm:$0xff]
      %v1457 = vld [vmem:[%s1444 + $0x60] sm:$0xff]
      %v1458 = vld [vmem:[%s1444 + $0x68] sm:$0xff]
      %v1459 = vld [vmem:[%s1444 + $0x70] sm:$0xff]
      %v1460 = vld [vmem:[%s1444 + $0x78] sm:$0xff]
      %1461 = vmatprep.subr.mxu0 0.0
      %1462 = vmatpush1.msra.mxu0 %v1445
      %1463 = vmatprep.subr.mxu0 0.0
      %1464 = vmatpush1.msra.mxu0 %v1446
      %1465 = vmatprep.subr.mxu0 0.0
      %1466 = vmatpush1.msra.mxu0 %v1447
      %1467 = vmatprep.subr.mxu0 0.0
      %1468 = vmatpush1.msra.mxu0 %v1448
      %1469 = vmatprep.subr.mxu0 0.0
      %1470 = vmatpush1.msra.mxu0 %v1449
      %1471 = vmatprep.subr.mxu0 0.0
      %1472 = vmatpush1.msra.mxu0 %v1450
      %1473 = vmatprep.subr.mxu0 0.0
      %1474 = vmatpush1.msra.mxu0 %v1451
      %1475 = vmatprep.subr.mxu0 0.0
      %1476 = vmatpush1.msra.mxu0 %v1452
      %1477 = vmatprep.subr.mxu0 0.0
      %1478 = vmatpush1.msra.mxu0 %v1453
      %1479 = vmatprep.subr.mxu0 0.0
      %1480 = vmatpush1.msra.mxu0 %v1454
      %1481 = vmatprep.subr.mxu0 0.0
      %1482 = vmatpush1.msra.mxu0 %v1455
      %1483 = vmatprep.subr.mxu0 0.0
      %1484 = vmatpush1.msra.mxu0 %v1456
      %1485 = vmatprep.subr.mxu0 0.0
      %1486 = vmatpush1.msra.mxu0 %v1457
      %1487 = vmatprep.subr.mxu0 0.0
      %1488 = vmatpush1.msra.mxu0 %v1458
      %1489 = vmatprep.subr.mxu0 0.0
      %1490 = vmatpush1.msra.mxu0 %v1459
      %1491 = vmatprep.subr.mxu0 0.0
      %1492 = vmatpush1.msra.mxu0 %v1460
      %1493 = vmatprep.subr.mxu0 0.0
      %1494 = vmatpush1.msra.mxu0 0.0
      %1495 = vmatprep.subr.mxu0 0.0
      %1496 = vmatpush1.msra.mxu0 0.0
      %1497 = vmatprep.subr.mxu0 0.0
      %1498 = vmatpush1.msra.mxu0 0.0
      %1499 = vmatprep.subr.mxu0 0.0
      %1500 = vmatpush1.msra.mxu0 0.0
      %1501 = vmatprep.subr.mxu0 0.0
      %1502 = vmatpush1.msra.mxu0 0.0
      %1503 = vmatprep.subr.mxu0 0.0
      %1504 = vmatpush1.msra.mxu0 0.0
      %1505 = vmatprep.subr.mxu0 0.0
      %1506 = vmatpush1.msra.mxu0 0.0
      %1507 = vmatprep.subr.mxu0 0.0
      %1508 = vmatpush1.msra.mxu0 0.0
      %1509 = vmatprep.subr.mxu0 0.0
      %1510 = vmatpush1.msra.mxu0 0.0
      %1511 = vmatprep.subr.mxu0 0.0
      %1512 = vmatpush1.msra.mxu0 0.0
      %1513 = vmatprep.subr.mxu0 0.0
      %1514 = vmatpush1.msra.mxu0 0.0
      %1515 = vmatprep.subr.mxu0 0.0
      %1516 = vmatpush1.msra.mxu0 0.0
      %1517 = vmatprep.subr.mxu0 0.0
      %1518 = vmatpush1.msra.mxu0 0.0
      %1519 = vmatprep.subr.mxu0 0.0
      %1520 = vmatpush1.msra.mxu0 0.0
      %1521 = vmatprep.subr.mxu0 0.0
      %1522 = vmatpush1.msra.mxu0 0.0
      %1523 = vmatprep.subr.mxu0 0.0
      %1524 = vmatpush1.msra.mxu0 0.0
      %1525 = vmatprep.mubr.f32.mxu0 0.0
      %1526 = vmatmul.mubr.f32.gmra.mrb[0].mxu0 %v1443
      %v1527 = vpop.f32.mrb[0].mxu0
      %v1528 = vadd.f32 0.0, %v1527
      %v1529 = vpop.f32.mrb[0].mxu0
      %1530 = vdwg.mxu0
      %v1531 = vsel %vm1173, %v1528, 0.0
      %1532 = vadd.xlane.f32.xlu0 %v1531
      %v1533 = vpop.xlane.xlu0 %1532
      %v1534 = vmul.f32 %v1533, %v1177
      %v1535 = vand.u32 2147483647, %v1534
      %v1536 = vadd.f32 %v1535, 1e-10
      %v1537 = vrcp.pop %v1536
      %v1538 = vmul.f32 %v1528, %v1537
      %v1539 = vsel %vm1183, %v1538, -9e+15
      %v1540 = vsel %vm1173, %v1539, -inf
      %1541 = vmax.xlane.f32.xlu0 %v1540
      %v1542 = vpop.xlane.xlu0 %1541
      %v1543 = vsub.f32 %v1539, %v1542
      %v1544 = vmul.f32 %v1543, 1.442695
      %v1545 = vpow.pop %v1544
      %v1546 = vsel %vm1173, %v1545, 0.0
      %1547 = vadd.xlane.f32.xlu0 %v1546
      %v1548 = vpop.xlane.xlu0 %1547
      %v1549 = vrcp.pop %v1548
      %v1550 = vmul.f32 %v1545, %v1549
      %s1551 = scalar_lea.vmem %s952, 32
      %v1552 = vld [vmem:[%s1551] sm:$0xff]
      %v1553 = vld [vmem:[%s1551 + $0x8] sm:$0xff]
      %v1554 = vld [vmem:[%s1551 + $0x10] sm:$0xff]
      %v1555 = vld [vmem:[%s1551 + $0x18] sm:$0xff]
      %s1556 = scalar_lea.vmem %s956, 1
      %v1557 = vld [vmem:[%s1556] sm:$0x1]
      %v1559 = vlaneseq
      %v1560 = vshrl.u32 %v1559, 7
      %v1561 = vsub.s32 0, %v1560
      %v1562 = vrot.slane %v1557, %v1561
      %1564 = vmatprep.subr.mxu0 0.0
      %1565 = vmatpush1.msra.mxu0 %v1552
      %1566 = vmatprep.subr.mxu0 0.0
      %1567 = vmatpush1.msra.mxu0 %v1553
      %1568 = vmatprep.subr.mxu0 0.0
      %1569 = vmatpush1.msra.mxu0 %v1554
      %1570 = vmatprep.subr.mxu0 0.0
      %1571 = vmatpush1.msra.mxu0 %v1555
      %1572 = vmatprep.subr.mxu0 0.0
      %1573 = vmatpush1.msra.mxu0 0.0
      %1574 = vmatprep.subr.mxu0 0.0
      %1575 = vmatpush1.msra.mxu0 0.0
      %1576 = vmatprep.subr.mxu0 0.0
      %1577 = vmatpush1.msra.mxu0 0.0
      %1578 = vmatprep.subr.mxu0 0.0
      %1579 = vmatpush1.msra.mxu0 0.0
      %1580 = vmatprep.subr.mxu0 0.0
      %1581 = vmatpush1.msra.mxu0 0.0
      %1582 = vmatprep.subr.mxu0 0.0
      %1583 = vmatpush1.msra.mxu0 0.0
      %1584 = vmatprep.subr.mxu0 0.0
      %1585 = vmatpush1.msra.mxu0 0.0
      %1586 = vmatprep.subr.mxu0 0.0
      %1587 = vmatpush1.msra.mxu0 0.0
      %1588 = vmatprep.subr.mxu0 0.0
      %1589 = vmatpush1.msra.mxu0 0.0
      %1590 = vmatprep.subr.mxu0 0.0
      %1591 = vmatpush1.msra.mxu0 0.0
      %1592 = vmatprep.subr.mxu0 0.0
      %1593 = vmatpush1.msra.mxu0 0.0
      %1594 = vmatprep.subr.mxu0 0.0
      %1595 = vmatpush1.msra.mxu0 0.0
      %1596 = vmatprep.subr.mxu0 0.0
      %1597 = vmatpush1.msra.mxu0 0.0
      %1598 = vmatprep.subr.mxu0 0.0
      %1599 = vmatpush1.msra.mxu0 0.0
      %1600 = vmatprep.subr.mxu0 0.0
      %1601 = vmatpush1.msra.mxu0 0.0
      %1602 = vmatprep.subr.mxu0 0.0
      %1603 = vmatpush1.msra.mxu0 0.0
      %1604 = vmatprep.subr.mxu0 0.0
      %1605 = vmatpush1.msra.mxu0 0.0
      %1606 = vmatprep.subr.mxu0 0.0
      %1607 = vmatpush1.msra.mxu0 0.0
      %1608 = vmatprep.subr.mxu0 0.0
      %1609 = vmatpush1.msra.mxu0 0.0
      %1610 = vmatprep.subr.mxu0 0.0
      %1611 = vmatpush1.msra.mxu0 0.0
      %1612 = vmatprep.subr.mxu0 0.0
      %1613 = vmatpush1.msra.mxu0 0.0
      %1614 = vmatprep.subr.mxu0 0.0
      %1615 = vmatpush1.msra.mxu0 0.0
      %1616 = vmatprep.subr.mxu0 0.0
      %1617 = vmatpush1.msra.mxu0 0.0
      %1618 = vmatprep.subr.mxu0 0.0
      %1619 = vmatpush1.msra.mxu0 0.0
      %1620 = vmatprep.subr.mxu0 0.0
      %1621 = vmatpush1.msra.mxu0 0.0
      %1622 = vmatprep.subr.mxu0 0.0
      %1623 = vmatpush1.msra.mxu0 0.0
      %1624 = vmatprep.subr.mxu0 0.0
      %1625 = vmatpush1.msra.mxu0 0.0
      %1626 = vmatprep.subr.mxu0 0.0
      %1627 = vmatpush1.msra.mxu0 0.0
      %1628 = vmatprep.mubr.f32.mxu0 0.0
      %1629 = vmatmul.mubr.f32.gmra.mrb[0].mxu0 %v1209
      %v1630 = vpop.f32.mrb[0].mxu0
      %v1631 = vadd.f32 %v1562, %v1630
      %v1632 = vpop.f32.mrb[0].mxu0
      %1633 = vdwg.mxu0
      %v1635 = vsel %vm1173, %v1550, 0
      %1637 = vmatprep.subr.mxu0 0.0
      %1638 = vmatpush1.msra.mxu0 %v1631
      %1639 = vmatprep.subr.mxu0 0.0
      %1640 = vmatpush1.msra.mxu0 0.0
      %1641 = vmatprep.subr.mxu0 0.0
      %1642 = vmatpush1.msra.mxu0 0.0
      %1643 = vmatprep.subr.mxu0 0.0
      %1644 = vmatpush1.msra.mxu0 0.0
      %1645 = vmatprep.subr.mxu0 0.0
      %1646 = vmatpush1.msra.mxu0 0.0
      %1647 = vmatprep.subr.mxu0 0.0
      %1648 = vmatpush1.msra.mxu0 0.0
      %1649 = vmatprep.subr.mxu0 0.0
      %1650 = vmatpush1.msra.mxu0 0.0
      %1651 = vmatprep.subr.mxu0 0.0
      %1652 = vmatpush1.msra.mxu0 0.0
      %1653 = vmatprep.subr.mxu0 0.0
      %1654 = vmatpush1.msra.mxu0 0.0
      %1655 = vmatprep.subr.mxu0 0.0
      %1656 = vmatpush1.msra.mxu0 0.0
      %1657 = vmatprep.subr.mxu0 0.0
      %1658 = vmatpush1.msra.mxu0 0.0
      %1659 = vmatprep.subr.mxu0 0.0
      %1660 = vmatpush1.msra.mxu0 0.0
      %1661 = vmatprep.subr.mxu0 0.0
      %1662 = vmatpush1.msra.mxu0 0.0
      %1663 = vmatprep.subr.mxu0 0.0
      %1664 = vmatpush1.msra.mxu0 0.0
      %1665 = vmatprep.subr.mxu0 0.0
      %1666 = vmatpush1.msra.mxu0 0.0
      %1667 = vmatprep.subr.mxu0 0.0
      %1668 = vmatpush1.msra.mxu0 0.0
      %1669 = vmatprep.subr.mxu0 0.0
      %1670 = vmatpush1.msra.mxu0 0.0
      %1671 = vmatprep.subr.mxu0 0.0
      %1672 = vmatpush1.msra.mxu0 0.0
      %1673 = vmatprep.subr.mxu0 0.0
      %1674 = vmatpush1.msra.mxu0 0.0
      %1675 = vmatprep.subr.mxu0 0.0
      %1676 = vmatpush1.msra.mxu0 0.0
      %1677 = vmatprep.subr.mxu0 0.0
      %1678 = vmatpush1.msra.mxu0 0.0
      %1679 = vmatprep.subr.mxu0 0.0
      %1680 = vmatpush1.msra.mxu0 0.0
      %1681 = vmatprep.subr.mxu0 0.0
      %1682 = vmatpush1.msra.mxu0 0.0
      %1683 = vmatprep.subr.mxu0 0.0
      %1684 = vmatpush1.msra.mxu0 0.0
      %1685 = vmatprep.subr.mxu0 0.0
      %1686 = vmatpush1.msra.mxu0 0.0
      %1687 = vmatprep.subr.mxu0 0.0
      %1688 = vmatpush1.msra.mxu0 0.0
      %1689 = vmatprep.subr.mxu0 0.0
      %1690 = vmatpush1.msra.mxu0 0.0
      %1691 = vmatprep.subr.mxu0 0.0
      %1692 = vmatpush1.msra.mxu0 0.0
      %1693 = vmatprep.subr.mxu0 0.0
      %1694 = vmatpush1.msra.mxu0 0.0
      %1695 = vmatprep.subr.mxu0 0.0
      %1696 = vmatpush1.msra.mxu0 0.0
      %1697 = vmatprep.subr.mxu0 0.0
      %1698 = vmatpush1.msra.mxu0 0.0
      %1699 = vmatprep.subr.mxu0 0.0
      %1700 = vmatpush1.msra.mxu0 0.0
      %1701 = vmatprep.mubr.f32.mxu0 0.0
      %1702 = vmatmul.mubr.f32.gmra.mrb[0].mxu0 %v1635
      %v1703 = vpop.f32.mrb[0].mxu0
      %v1704 = vadd.f32 0.0, %v1703
      %v1705 = vpop.f32.mrb[0].mxu0
      %1706 = vdwg.mxu0
      %v1707 = vmax.f32 %v1704, 0.0
      %s1708 = scalar_lea.vmem [#allocation3], 8
      %1709 = vst.msk [vmem:[%s1708] sm:$0xff] %vm1207, %v1707
      %v1710 = vld [vmem:[#allocation3] sm:$0xff]
      %v1711 = vld [vmem:[#allocation3 + $0x8] sm:$0xff]
      %1713 = vset.pattern.permute.xlu0 0
      %1714 = vperm.xlu0 %1713, %v998
      %v1715 = vpop.permute.xlu0 %1714
      %v1717 = vmul.f32 %v996, %v1715
      %v1718 = vsel %vm1207, %v1717, -inf
      %v1719 = vrot.slane %v1718, 4
      %v1720 = vmax.f32 %v1718, %v1719
      %v1721 = vrot.slane %v1720, 2
      %v1722 = vmax.f32 %v1720, %v1721
      %v1723 = vrot.slane %v1722, 1
      %v1724 = vmax.f32 %v1722, %v1723
      %v1725 = vmul.f32 %v1710, %v1715
      %v1726 = vmul.f32 %v1711, %v1715
      %v1727 = vsel %vm1207, %v1725, -inf
      %v1728 = vrot.slane %v1727, 4
      %v1729 = vmax.f32 %v1727, %v1728
      %v1730 = vrot.slane %v1729, 2
      %v1731 = vmax.f32 %v1729, %v1730
      %v1732 = vrot.slane %v1731, 1
      %v1733 = vmax.f32 %v1731, %v1732
      %v1734 = vsel %vm1207, %v1726, -inf
      %v1735 = vrot.slane %v1734, 4
      %v1736 = vmax.f32 %v1734, %v1735
      %v1737 = vrot.slane %v1736, 2
      %v1738 = vmax.f32 %v1736, %v1737
      %v1739 = vrot.slane %v1738, 1
      %v1740 = vmax.f32 %v1738, %v1739
      %v1741 = vld [vmem:[%s961] sm:$0xff]
      %v1742 = vld [vmem:[%s961 + $0x8] sm:$0xff]
      %v1743 = vld [vmem:[%s961 + $0x10] sm:$0xff]
      %v1744 = vld [vmem:[%s961 + $0x18] sm:$0xff]
      %v1745 = vld [vmem:[%s964] sm:$0x1]
      %v1747 = vlaneseq
      %v1748 = vshrl.u32 %v1747, 7
      %v1749 = vsub.s32 0, %v1748
      %v1750 = vrot.slane %v1745, %v1749
      %vm1754 = vcmask 1041409
      %v1755 = vsel %vm1754, %v1740, %v1733
      %v1756 = vsel %vm1207, %v1755, 0
      %1758 = vmatprep.subr.mxu0 0.0
      %1759 = vmatpush1.msra.mxu0 %v1741
      %1760 = vmatprep.subr.mxu0 0.0
      %1761 = vmatpush1.msra.mxu0 %v1742
      %1762 = vmatprep.subr.mxu0 0.0
      %1763 = vmatpush1.msra.mxu0 %v1743
      %1764 = vmatprep.subr.mxu0 0.0
      %1765 = vmatpush1.msra.mxu0 %v1744
      %1766 = vmatprep.subr.mxu0 0.0
      %1767 = vmatpush1.msra.mxu0 0.0
      %1768 = vmatprep.subr.mxu0 0.0
      %1769 = vmatpush1.msra.mxu0 0.0
      %1770 = vmatprep.subr.mxu0 0.0
      %1771 = vmatpush1.msra.mxu0 0.0
      %1772 = vmatprep.subr.mxu0 0.0
      %1773 = vmatpush1.msra.mxu0 0.0
      %1774 = vmatprep.subr.mxu0 0.0
      %1775 = vmatpush1.msra.mxu0 0.0
      %1776 = vmatprep.subr.mxu0 0.0
      %1777 = vmatpush1.msra.mxu0 0.0
      %1778 = vmatprep.subr.mxu0 0.0
      %1779 = vmatpush1.msra.mxu0 0.0
      %1780 = vmatprep.subr.mxu0 0.0
      %1781 = vmatpush1.msra.mxu0 0.0
      %1782 = vmatprep.subr.mxu0 0.0
      %1783 = vmatpush1.msra.mxu0 0.0
      %1784 = vmatprep.subr.mxu0 0.0
      %1785 = vmatpush1.msra.mxu0 0.0
      %1786 = vmatprep.subr.mxu0 0.0
      %1787 = vmatpush1.msra.mxu0 0.0
      %1788 = vmatprep.subr.mxu0 0.0
      %1789 = vmatpush1.msra.mxu0 0.0
      %1790 = vmatprep.subr.mxu0 0.0
      %1791 = vmatpush1.msra.mxu0 0.0
      %1792 = vmatprep.subr.mxu0 0.0
      %1793 = vmatpush1.msra.mxu0 0.0
      %1794 = vmatprep.subr.mxu0 0.0
      %1795 = vmatpush1.msra.mxu0 0.0
      %1796 = vmatprep.subr.mxu0 0.0
      %1797 = vmatpush1.msra.mxu0 0.0
      %1798 = vmatprep.subr.mxu0 0.0
      %1799 = vmatpush1.msra.mxu0 0.0
      %1800 = vmatprep.subr.mxu0 0.0
      %1801 = vmatpush1.msra.mxu0 0.0
      %1802 = vmatprep.subr.mxu0 0.0
      %1803 = vmatpush1.msra.mxu0 0.0
      %1804 = vmatprep.subr.mxu0 0.0
      %1805 = vmatpush1.msra.mxu0 0.0
      %1806 = vmatprep.subr.mxu0 0.0
      %1807 = vmatpush1.msra.mxu0 0.0
      %1808 = vmatprep.subr.mxu0 0.0
      %1809 = vmatpush1.msra.mxu0 0.0
      %1810 = vmatprep.subr.mxu0 0.0
      %1811 = vmatpush1.msra.mxu0 0.0
      %1812 = vmatprep.subr.mxu0 0.0
      %1813 = vmatpush1.msra.mxu0 0.0
      %1814 = vmatprep.subr.mxu0 0.0
      %1815 = vmatpush1.msra.mxu0 0.0
      %1816 = vmatprep.subr.mxu0 0.0
      %1817 = vmatpush1.msra.mxu0 0.0
      %1818 = vmatprep.subr.mxu0 0.0
      %1819 = vmatpush1.msra.mxu0 0.0
      %1820 = vmatprep.subr.mxu0 0.0
      %1821 = vmatpush1.msra.mxu0 0.0
      %1822 = vmatprep.mubr.f32.mxu0 0.0
      %1823 = vmatmul.mubr.f32.gmra.mrb[0].mxu0 %v1756
      %v1824 = vpop.f32.mrb[0].mxu0
      %v1825 = vadd.f32 %v1750, %v1824
      %v1826 = vpop.f32.mrb[0].mxu0
      %1827 = vdwg.mxu0
      %v1828 = vtanh.pop %v1825
      %v1829 = vld [vmem:[%s969] sm:$0xff]
      %v1830 = vld [vmem:[%s969 + $0x8] sm:$0xff]
      %v1831 = vld [vmem:[%s969 + $0x10] sm:$0xff]
      %v1832 = vld [vmem:[%s969 + $0x18] sm:$0xff]
      %v1834 = vsel %vm1207, %v1724, 0
      %1836 = vmatprep.subr.mxu0 0.0
      %1837 = vmatpush1.msra.mxu0 %v1829
      %1838 = vmatprep.subr.mxu0 0.0
      %1839 = vmatpush1.msra.mxu0 %v1830
      %1840 = vmatprep.subr.mxu0 0.0
      %1841 = vmatpush1.msra.mxu0 %v1831
      %1842 = vmatprep.subr.mxu0 0.0
      %1843 = vmatpush1.msra.mxu0 %v1832
      %1844 = vmatprep.subr.mxu0 0.0
      %1845 = vmatpush1.msra.mxu0 0.0
      %1846 = vmatprep.subr.mxu0 0.0
      %1847 = vmatpush1.msra.mxu0 0.0
      %1848 = vmatprep.subr.mxu0 0.0
      %1849 = vmatpush1.msra.mxu0 0.0
      %1850 = vmatprep.subr.mxu0 0.0
      %1851 = vmatpush1.msra.mxu0 0.0
      %1852 = vmatprep.subr.mxu0 0.0
      %1853 = vmatpush1.msra.mxu0 0.0
      %1854 = vmatprep.subr.mxu0 0.0
      %1855 = vmatpush1.msra.mxu0 0.0
      %1856 = vmatprep.subr.mxu0 0.0
      %1857 = vmatpush1.msra.mxu0 0.0
      %1858 = vmatprep.subr.mxu0 0.0
      %1859 = vmatpush1.msra.mxu0 0.0
      %1860 = vmatprep.subr.mxu0 0.0
      %1861 = vmatpush1.msra.mxu0 0.0
      %1862 = vmatprep.subr.mxu0 0.0
      %1863 = vmatpush1.msra.mxu0 0.0
      %1864 = vmatprep.subr.mxu0 0.0
      %1865 = vmatpush1.msra.mxu0 0.0
      %1866 = vmatprep.subr.mxu0 0.0
      %1867 = vmatpush1.msra.mxu0 0.0
      %1868 = vmatprep.subr.mxu0 0.0
      %1869 = vmatpush1.msra.mxu0 0.0
      %1870 = vmatprep.subr.mxu0 0.0
      %1871 = vmatpush1.msra.mxu0 0.0
      %1872 = vmatprep.subr.mxu0 0.0
      %1873 = vmatpush1.msra.mxu0 0.0
      %1874 = vmatprep.subr.mxu0 0.0
      %1875 = vmatpush1.msra.mxu0 0.0
      %1876 = vmatprep.subr.mxu0 0.0
      %1877 = vmatpush1.msra.mxu0 0.0
      %1878 = vmatprep.subr.mxu0 0.0
      %1879 = vmatpush1.msra.mxu0 0.0
      %1880 = vmatprep.subr.mxu0 0.0
      %1881 = vmatpush1.msra.mxu0 0.0
      %1882 = vmatprep.subr.mxu0 0.0
      %1883 = vmatpush1.msra.mxu0 0.0
      %1884 = vmatprep.subr.mxu0 0.0
      %1885 = vmatpush1.msra.mxu0 0.0
      %1886 = vmatprep.subr.mxu0 0.0
      %1887 = vmatpush1.msra.mxu0 0.0
      %1888 = vmatprep.subr.mxu0 0.0
      %1889 = vmatpush1.msra.mxu0 0.0
      %1890 = vmatprep.subr.mxu0 0.0
      %1891 = vmatpush1.msra.mxu0 0.0
      %1892 = vmatprep.subr.mxu0 0.0
      %1893 = vmatpush1.msra.mxu0 0.0
      %1894 = vmatprep.subr.mxu0 0.0
      %1895 = vmatpush1.msra.mxu0 0.0
      %1896 = vmatprep.subr.mxu0 0.0
      %1897 = vmatpush1.msra.mxu0 0.0
      %1898 = vmatprep.subr.mxu0 0.0
      %1899 = vmatpush1.msra.mxu0 0.0
      %1900 = vmatprep.mubr.f32.mxu0 0.0
      %1901 = vmatmul.mubr.f32.gmra.mrb[0].mxu0 %v1834
      %v1902 = vpop.f32.mrb[0].mxu0
      %v1903 = vadd.f32 0.0, %v1902
      %v1904 = vpop.f32.mrb[0].mxu0
      %1905 = vdwg.mxu0
      %v1906 = vld [vmem:[%s974] sm:$0xff]
      %v1907 = vld [vmem:[%s974 + $0x8] sm:$0xff]
      %v1908 = vld [vmem:[%s974 + $0x10] sm:$0xff]
      %v1909 = vld [vmem:[%s974 + $0x18] sm:$0xff]
      %v1910 = vlaneseq
      %v1911 = vshrl.u32 %v1910, 7
      %v1912 = vsub.s32 0, %v1911
      %v1913 = vrot.slane %v1903, %v1912
      %v1915 = vsel %vm1207, %v1828, 0
      %1917 = vmatprep.subr.mxu0 0.0
      %1918 = vmatpush1.msra.mxu0 %v1906
      %1919 = vmatprep.subr.mxu0 0.0
      %1920 = vmatpush1.msra.mxu0 %v1907
      %1921 = vmatprep.subr.mxu0 0.0
      %1922 = vmatpush1.msra.mxu0 %v1908
      %1923 = vmatprep.subr.mxu0 0.0
      %1924 = vmatpush1.msra.mxu0 %v1909
      %1925 = vmatprep.subr.mxu0 0.0
      %1926 = vmatpush1.msra.mxu0 0.0
      %1927 = vmatprep.subr.mxu0 0.0
      %1928 = vmatpush1.msra.mxu0 0.0
      %1929 = vmatprep.subr.mxu0 0.0
      %1930 = vmatpush1.msra.mxu0 0.0
      %1931 = vmatprep.subr.mxu0 0.0
      %1932 = vmatpush1.msra.mxu0 0.0
      %1933 = vmatprep.subr.mxu0 0.0
      %1934 = vmatpush1.msra.mxu0 0.0
      %1935 = vmatprep.subr.mxu0 0.0
      %1936 = vmatpush1.msra.mxu0 0.0
      %1937 = vmatprep.subr.mxu0 0.0
      %1938 = vmatpush1.msra.mxu0 0.0
      %1939 = vmatprep.subr.mxu0 0.0
      %1940 = vmatpush1.msra.mxu0 0.0
      %1941 = vmatprep.subr.mxu0 0.0
      %1942 = vmatpush1.msra.mxu0 0.0
      %1943 = vmatprep.subr.mxu0 0.0
      %1944 = vmatpush1.msra.mxu0 0.0
      %1945 = vmatprep.subr.mxu0 0.0
      %1946 = vmatpush1.msra.mxu0 0.0
      %1947 = vmatprep.subr.mxu0 0.0
      %1948 = vmatpush1.msra.mxu0 0.0
      %1949 = vmatprep.subr.mxu0 0.0
      %1950 = vmatpush1.msra.mxu0 0.0
      %1951 = vmatprep.subr.mxu0 0.0
      %1952 = vmatpush1.msra.mxu0 0.0
      %1953 = vmatprep.subr.mxu0 0.0
      %1954 = vmatpush1.msra.mxu0 0.0
      %1955 = vmatprep.subr.mxu0 0.0
      %1956 = vmatpush1.msra.mxu0 0.0
      %1957 = vmatprep.subr.mxu0 0.0
      %1958 = vmatpush1.msra.mxu0 0.0
      %1959 = vmatprep.subr.mxu0 0.0
      %1960 = vmatpush1.msra.mxu0 0.0
      %1961 = vmatprep.subr.mxu0 0.0
      %1962 = vmatpush1.msra.mxu0 0.0
      %1963 = vmatprep.subr.mxu0 0.0
      %1964 = vmatpush1.msra.mxu0 0.0
      %1965 = vmatprep.subr.mxu0 0.0
      %1966 = vmatpush1.msra.mxu0 0.0
      %1967 = vmatprep.subr.mxu0 0.0
      %1968 = vmatpush1.msra.mxu0 0.0
      %1969 = vmatprep.subr.mxu0 0.0
      %1970 = vmatpush1.msra.mxu0 0.0
      %1971 = vmatprep.subr.mxu0 0.0
      %1972 = vmatpush1.msra.mxu0 0.0
      %1973 = vmatprep.subr.mxu0 0.0
      %1974 = vmatpush1.msra.mxu0 0.0
      %1975 = vmatprep.subr.mxu0 0.0
      %1976 = vmatpush1.msra.mxu0 0.0
      %1977 = vmatprep.subr.mxu0 0.0
      %1978 = vmatpush1.msra.mxu0 0.0
      %1979 = vmatprep.subr.mxu0 0.0
      %1980 = vmatpush1.msra.mxu0 0.0
      %1981 = vmatprep.mubr.f32.mxu0 0.0
      %1982 = vmatmul.mubr.f32.gmra.mrb[0].mxu0 %v1915
      %v1983 = vpop.f32.mrb[0].mxu0
      %v1984 = vadd.f32 %v1913, %v1983
      %v1985 = vpop.f32.mrb[0].mxu0
      %1986 = vdwg.mxu0
      %v1987 = vld [vmem:[%s977] sm:$0x1]
      %v1989 = vlaneseq
      %v1990 = vshrl.u32 %v1989, 7
      %v1991 = vsub.s32 0, %v1990
      %v1992 = vrot.slane %v1987, %v1991
      %v1994 = vadd.f32 %v1984, %v1992
      %v1995 = vmax.f32 %v1994, 0.0
      %vm1996 = vcmask 1024
      %v1997 = vsel %vm1996, %v1995, -inf
      %v1998 = vrot.slane %v1997, 4
      %v1999 = vmax.f32 %v1997, %v1998
      %v2000 = vrot.slane %v1999, 2
      %v2001 = vmax.f32 %v1999, %v2000
      %v2002 = vrot.slane %v2001, 1
      %v2003 = vmax.f32 %v2001, %v2002
      %v2004 = vsub.f32 %v1995, %v2003
      %v2005 = vmul.f32 %v2004, 1.442695
      %v2006 = vpow.pop %v2005
      %v2007 = vsel %vm1996, %v2006, 0.0
      %v2008 = vrot.slane %v2007, 4
      %v2009 = vadd.f32 %v2007, %v2008
      %v2010 = vrot.slane %v2009, 2
      %v2011 = vadd.f32 %v2009, %v2010
      %v2012 = vrot.slane %v2011, 1
      %v2013 = vadd.f32 %v2011, %v2012
      %v2014 = vrcp.pop %v2013
      %v2015 = vmul.f32 %v2006, %v2014
      %v2018 = vunpack.c.l.s4 1966171168
      %v2019 = vunpack.c.0.s8 %v2018
      %v2020 = vlaneseq
      %v2021 = vshrl.u32 %v2020, 7
      %v2022 = vsub.s32 %v2019, %v2021
      %v2023 = vrot.slane %v2015, %v2022
      %v2024 = vcombine.high %v2023, %v2023
      %v2026 = vunpack.c.l.s4 1966171168
      %v2027 = vunpack.c.0.s8 %v2026
      %v2028 = vlaneseq
      %v2029 = vshrl.u32 %v2028, 7
      %v2030 = vsub.s32 %v2027, %v2029
      %v2031 = vrot.slane %v2023, %v2030
      %v2033 = vunpack.c.l.s4 1966171168
      %v2034 = vunpack.c.0.s8 %v2033
      %v2035 = vlaneseq
      %v2036 = vshrl.u32 %v2035, 7
      %v2037 = vsub.s32 %v2034, %v2036
      %v2038 = vrot.slane %v2024, %v2037
      %v2039 = vlaneseq
      %v2040 = vshrl.u32 %v2039, 7
      %v2041 = vsub.s32 0, %v2040
      %v2042 = vrot.slane %v2031, %v2041
      %v2043 = vlaneseq
      %v2044 = vshrl.u32 %v2043, 7
      %v2045 = vsub.s32 0, %v2044
      %v2046 = vrot.slane %v2038, %v2045
      %2047 = vset.pattern.permute.xlu0 0
      %2048 = vperm.xlu0 %2047, %v2042
      %v2049 = vpop.permute.xlu0 %2048
      %2051 = vset.pattern.permute.xlu0 0
      %2052 = vperm.xlu0 %2051, %v2046
      %v2053 = vpop.permute.xlu0 %2052
      %v2055 = vmul.f32 %v1710, %v2049
      %v2056 = vmul.f32 %v1711, %v2053
      %v2057 = vsel %vm1207, %v2055, 0.0
      %v2058 = vsel %vm1207, %v2056, 0.0
      %v2059 = vadd.f32 %v2057, %v2058
      %v2060 = vrcp.pop 2.0
      %v2061 = vmul.f32 %v2059, %v2060
      %v2062 = vmax.f32 %v2061, 0.0
      %2063 = vst.msk [vmem:[%s981] sm:$0xff] %vm1207, %v2062
      %v2064 = vld [vmem:[%s14] sm:$0xff]
      %v2065 = vld [vmem:[%s14 + $0x8] sm:$0xff]
      %v2066 = vld [vmem:[%s14 + $0x10] sm:$0xff]
      %v2067 = vld [vmem:[%s14 + $0x18] sm:$0xff]
      %v2068 = vld [vmem:[%s15] sm:$0xff]
      %v2069 = vld [vmem:[%s15 + $0x8] sm:$0xff]
      %v2070 = vld [vmem:[%s15 + $0x10] sm:$0xff]
      %v2071 = vld [vmem:[%s15 + $0x18] sm:$0xff]
      %2072 = vmatprep.subr.mxu0 0.0
      %2073 = vmatpush1.msra.mxu0 %v2068
      %2074 = vmatprep.subr.mxu0 0.0
      %2075 = vmatpush1.msra.mxu0 %v2069
      %2076 = vmatprep.subr.mxu0 0.0
      %2077 = vmatpush1.msra.mxu0 %v2070
      %2078 = vmatprep.subr.mxu0 0.0
      %2079 = vmatpush1.msra.mxu0 %v2071
      %2080 = vmatprep.subr.mxu0 0.0
      %2081 = vmatpush1.msra.mxu0 0.0
      %2082 = vmatprep.subr.mxu0 0.0
      %2083 = vmatpush1.msra.mxu0 0.0
      %2084 = vmatprep.subr.mxu0 0.0
      %2085 = vmatpush1.msra.mxu0 0.0
      %2086 = vmatprep.subr.mxu0 0.0
      %2087 = vmatpush1.msra.mxu0 0.0
      %2088 = vmatprep.subr.mxu0 0.0
      %2089 = vmatpush1.msra.mxu0 0.0
      %2090 = vmatprep.subr.mxu0 0.0
      %2091 = vmatpush1.msra.mxu0 0.0
      %2092 = vmatprep.subr.mxu0 0.0
      %2093 = vmatpush1.msra.mxu0 0.0
      %2094 = vmatprep.subr.mxu0 0.0
      %2095 = vmatpush1.msra.mxu0 0.0
      %2096 = vmatprep.subr.mxu0 0.0
      %2097 = vmatpush1.msra.mxu0 0.0
      %2098 = vmatprep.subr.mxu0 0.0
      %2099 = vmatpush1.msra.mxu0 0.0
      %2100 = vmatprep.subr.mxu0 0.0
      %2101 = vmatpush1.msra.mxu0 0.0
      %2102 = vmatprep.subr.mxu0 0.0
      %2103 = vmatpush1.msra.mxu0 0.0
      %2104 = vmatprep.subr.mxu0 0.0
      %2105 = vmatpush1.msra.mxu0 0.0
      %2106 = vmatprep.subr.mxu0 0.0
      %2107 = vmatpush1.msra.mxu0 0.0
      %2108 = vmatprep.subr.mxu0 0.0
      %2109 = vmatpush1.msra.mxu0 0.0
      %2110 = vmatprep.subr.mxu0 0.0
      %2111 = vmatpush1.msra.mxu0 0.0
      %2112 = vmatprep.subr.mxu0 0.0
      %2113 = vmatpush1.msra.mxu0 0.0
      %2114 = vmatprep.subr.mxu0 0.0
      %2115 = vmatpush1.msra.mxu0 0.0
      %2116 = vmatprep.subr.mxu0 0.0
      %2117 = vmatpush1.msra.mxu0 0.0
      %2118 = vmatprep.subr.mxu0 0.0
      %2119 = vmatpush1.msra.mxu0 0.0
      %2120 = vmatprep.subr.mxu0 0.0
      %2121 = vmatpush1.msra.mxu0 0.0
      %2122 = vmatprep.subr.mxu0 0.0
      %2123 = vmatpush1.msra.mxu0 0.0
      %2124 = vmatprep.subr.mxu0 0.0
      %2125 = vmatpush1.msra.mxu0 0.0
      %2126 = vmatprep.subr.mxu0 0.0
      %2127 = vmatpush1.msra.mxu0 0.0
      %2128 = vmatprep.subr.mxu0 0.0
      %2129 = vmatpush1.msra.mxu0 0.0
      %2130 = vmatprep.subr.mxu0 0.0
      %2131 = vmatpush1.msra.mxu0 0.0
      %2132 = vmatprep.subr.mxu0 0.0
      %2133 = vmatpush1.msra.mxu0 0.0
      %2134 = vmatprep.subr.mxu0 0.0
      %2135 = vmatpush1.msra.mxu0 0.0
      %2136 = vmatprep.mubr.f32.mxu0 0.0
      %2137 = vmatmul.mubr.f32.gmra.mrb[0].mxu0 %v1209
      %v2138 = vpop.f32.mrb[0].mxu0
      %v2139 = vadd.f32 0.0, %v2138
      %v2140 = vpop.f32.mrb[0].mxu0
      %2141 = vdwg.mxu0
      %v2143 = vsel %vm1207, %v2062, 0
      %2145 = vmatprep.subr.mxu0 0.0
      %2146 = vmatpush1.msra.mxu0 %v2064
      %2147 = vmatprep.subr.mxu0 0.0
      %2148 = vmatpush1.msra.mxu0 %v2065
      %2149 = vmatprep.subr.mxu0 0.0
      %2150 = vmatpush1.msra.mxu0 %v2066
      %2151 = vmatprep.subr.mxu0 0.0
      %2152 = vmatpush1.msra.mxu0 %v2067
      %2153 = vmatprep.subr.mxu0 0.0
      %2154 = vmatpush1.msra.mxu0 0.0
      %2155 = vmatprep.subr.mxu0 0.0
      %2156 = vmatpush1.msra.mxu0 0.0
      %2157 = vmatprep.subr.mxu0 0.0
      %2158 = vmatpush1.msra.mxu0 0.0
      %2159 = vmatprep.subr.mxu0 0.0
      %2160 = vmatpush1.msra.mxu0 0.0
      %2161 = vmatprep.subr.mxu0 0.0
      %2162 = vmatpush1.msra.mxu0 0.0
      %2163 = vmatprep.subr.mxu0 0.0
      %2164 = vmatpush1.msra.mxu0 0.0
      %2165 = vmatprep.subr.mxu0 0.0
      %2166 = vmatpush1.msra.mxu0 0.0
      %2167 = vmatprep.subr.mxu0 0.0
      %2168 = vmatpush1.msra.mxu0 0.0
      %2169 = vmatprep.subr.mxu0 0.0
      %2170 = vmatpush1.msra.mxu0 0.0
      %2171 = vmatprep.subr.mxu0 0.0
      %2172 = vmatpush1.msra.mxu0 0.0
      %2173 = vmatprep.subr.mxu0 0.0
      %2174 = vmatpush1.msra.mxu0 0.0
      %2175 = vmatprep.subr.mxu0 0.0
      %2176 = vmatpush1.msra.mxu0 0.0
      %2177 = vmatprep.subr.mxu0 0.0
      %2178 = vmatpush1.msra.mxu0 0.0
      %2179 = vmatprep.subr.mxu0 0.0
      %2180 = vmatpush1.msra.mxu0 0.0
      %2181 = vmatprep.subr.mxu0 0.0
      %2182 = vmatpush1.msra.mxu0 0.0
      %2183 = vmatprep.subr.mxu0 0.0
      %2184 = vmatpush1.msra.mxu0 0.0
      %2185 = vmatprep.subr.mxu0 0.0
      %2186 = vmatpush1.msra.mxu0 0.0
      %2187 = vmatprep.subr.mxu0 0.0
      %2188 = vmatpush1.msra.mxu0 0.0
      %2189 = vmatprep.subr.mxu0 0.0
      %2190 = vmatpush1.msra.mxu0 0.0
      %2191 = vmatprep.subr.mxu0 0.0
      %2192 = vmatpush1.msra.mxu0 0.0
      %2193 = vmatprep.subr.mxu0 0.0
      %2194 = vmatpush1.msra.mxu0 0.0
      %2195 = vmatprep.subr.mxu0 0.0
      %2196 = vmatpush1.msra.mxu0 0.0
      %2197 = vmatprep.subr.mxu0 0.0
      %2198 = vmatpush1.msra.mxu0 0.0
      %2199 = vmatprep.subr.mxu0 0.0
      %2200 = vmatpush1.msra.mxu0 0.0
      %2201 = vmatprep.subr.mxu0 0.0
      %2202 = vmatpush1.msra.mxu0 0.0
      %2203 = vmatprep.subr.mxu0 0.0
      %2204 = vmatpush1.msra.mxu0 0.0
      %2205 = vmatprep.subr.mxu0 0.0
      %2206 = vmatpush1.msra.mxu0 0.0
      %2207 = vmatprep.subr.mxu0 0.0
      %2208 = vmatpush1.msra.mxu0 0.0
      %2209 = vmatprep.mubr.f32.mxu0 0.0
      %2210 = vmatmul.mubr.f32.gmra.mrb[0].mxu0 %v2143
      %v2211 = vpop.f32.mrb[0].mxu0
      %v2212 = vadd.f32 %v2139, %v2211
      %v2213 = vpop.f32.mrb[0].mxu0
      %2214 = vdwg.mxu0
      %v2215 = vld [vmem:[#allocation4] sm:$0x1]
      %v2217 = vlaneseq
      %v2218 = vshrl.u32 %v2217, 7
      %v2219 = vsub.s32 0, %v2218
      %v2220 = vrot.slane %v2215, %v2219
      %v2222 = vadd.f32 %v2212, %v2220
      %v2223 = vsub.f32 0.0, %v2222
      %v2224 = vmul.f32 %v2223, 1.442695
      %v2225 = vpow.pop %v2224
      %v2226 = vadd.f32 %v2225, 1.0
      %v2227 = vrcp.pop %v2226
      %v2228 = vld [vmem:[%s17] sm:$0xff]
      %v2229 = vld [vmem:[%s17 + $0x8] sm:$0xff]
      %v2230 = vld [vmem:[%s17 + $0x10] sm:$0xff]
      %v2231 = vld [vmem:[%s17 + $0x18] sm:$0xff]
      %v2232 = vld [vmem:[%s18] sm:$0xff]
      %v2233 = vld [vmem:[%s18 + $0x8] sm:$0xff]
      %v2234 = vld [vmem:[%s18 + $0x10] sm:$0xff]
      %v2235 = vld [vmem:[%s18 + $0x18] sm:$0xff]
      %2236 = vmatprep.subr.mxu0 0.0
      %2237 = vmatpush1.msra.mxu0 %v2232
      %2238 = vmatprep.subr.mxu0 0.0
      %2239 = vmatpush1.msra.mxu0 %v2233
      %2240 = vmatprep.subr.mxu0 0.0
      %2241 = vmatpush1.msra.mxu0 %v2234
      %2242 = vmatprep.subr.mxu0 0.0
      %2243 = vmatpush1.msra.mxu0 %v2235
      %2244 = vmatprep.subr.mxu0 0.0
      %2245 = vmatpush1.msra.mxu0 0.0
      %2246 = vmatprep.subr.mxu0 0.0
      %2247 = vmatpush1.msra.mxu0 0.0
      %2248 = vmatprep.subr.mxu0 0.0
      %2249 = vmatpush1.msra.mxu0 0.0
      %2250 = vmatprep.subr.mxu0 0.0
      %2251 = vmatpush1.msra.mxu0 0.0
      %2252 = vmatprep.subr.mxu0 0.0
      %2253 = vmatpush1.msra.mxu0 0.0
      %2254 = vmatprep.subr.mxu0 0.0
      %2255 = vmatpush1.msra.mxu0 0.0
      %2256 = vmatprep.subr.mxu0 0.0
      %2257 = vmatpush1.msra.mxu0 0.0
      %2258 = vmatprep.subr.mxu0 0.0
      %2259 = vmatpush1.msra.mxu0 0.0
      %2260 = vmatprep.subr.mxu0 0.0
      %2261 = vmatpush1.msra.mxu0 0.0
      %2262 = vmatprep.subr.mxu0 0.0
      %2263 = vmatpush1.msra.mxu0 0.0
      %2264 = vmatprep.subr.mxu0 0.0
      %2265 = vmatpush1.msra.mxu0 0.0
      %2266 = vmatprep.subr.mxu0 0.0
      %2267 = vmatpush1.msra.mxu0 0.0
      %2268 = vmatprep.subr.mxu0 0.0
      %2269 = vmatpush1.msra.mxu0 0.0
      %2270 = vmatprep.subr.mxu0 0.0
      %2271 = vmatpush1.msra.mxu0 0.0
      %2272 = vmatprep.subr.mxu0 0.0
      %2273 = vmatpush1.msra.mxu0 0.0
      %2274 = vmatprep.subr.mxu0 0.0
      %2275 = vmatpush1.msra.mxu0 0.0
      %2276 = vmatprep.subr.mxu0 0.0
      %2277 = vmatpush1.msra.mxu0 0.0
      %2278 = vmatprep.subr.mxu0 0.0
      %2279 = vmatpush1.msra.mxu0 0.0
      %2280 = vmatprep.subr.mxu0 0.0
      %2281 = vmatpush1.msra.mxu0 0.0
      %2282 = vmatprep.subr.mxu0 0.0
      %2283 = vmatpush1.msra.mxu0 0.0
      %2284 = vmatprep.subr.mxu0 0.0
      %2285 = vmatpush1.msra.mxu0 0.0
      %2286 = vmatprep.subr.mxu0 0.0
      %2287 = vmatpush1.msra.mxu0 0.0
      %2288 = vmatprep.subr.mxu0 0.0
      %2289 = vmatpush1.msra.mxu0 0.0
      %2290 = vmatprep.subr.mxu0 0.0
      %2291 = vmatpush1.msra.mxu0 0.0
      %2292 = vmatprep.subr.mxu0 0.0
      %2293 = vmatpush1.msra.mxu0 0.0
      %2294 = vmatprep.subr.mxu0 0.0
      %2295 = vmatpush1.msra.mxu0 0.0
      %2296 = vmatprep.subr.mxu0 0.0
      %2297 = vmatpush1.msra.mxu0 0.0
      %2298 = vmatprep.subr.mxu0 0.0
      %2299 = vmatpush1.msra.mxu0 0.0
      %2300 = vmatprep.mubr.f32.mxu0 0.0
      %2301 = vmatmul.mubr.f32.gmra.mrb[0].mxu0 %v1209
      %v2302 = vpop.f32.mrb[0].mxu0
      %v2303 = vadd.f32 0.0, %v2302
      %v2304 = vpop.f32.mrb[0].mxu0
      %2305 = vdwg.mxu0
      %2306 = vmatprep.subr.mxu0 0.0
      %2307 = vmatpush1.msra.mxu0 %v2228
      %2308 = vmatprep.subr.mxu0 0.0
      %2309 = vmatpush1.msra.mxu0 %v2229
      %2310 = vmatprep.subr.mxu0 0.0
      %2311 = vmatpush1.msra.mxu0 %v2230
      %2312 = vmatprep.subr.mxu0 0.0
      %2313 = vmatpush1.msra.mxu0 %v2231
      %2314 = vmatprep.subr.mxu0 0.0
      %2315 = vmatpush1.msra.mxu0 0.0
      %2316 = vmatprep.subr.mxu0 0.0
      %2317 = vmatpush1.msra.mxu0 0.0
      %2318 = vmatprep.subr.mxu0 0.0
      %2319 = vmatpush1.msra.mxu0 0.0
      %2320 = vmatprep.subr.mxu0 0.0
      %2321 = vmatpush1.msra.mxu0 0.0
      %2322 = vmatprep.subr.mxu0 0.0
      %2323 = vmatpush1.msra.mxu0 0.0
      %2324 = vmatprep.subr.mxu0 0.0
      %2325 = vmatpush1.msra.mxu0 0.0
      %2326 = vmatprep.subr.mxu0 0.0
      %2327 = vmatpush1.msra.mxu0 0.0
      %2328 = vmatprep.subr.mxu0 0.0
      %2329 = vmatpush1.msra.mxu0 0.0
      %2330 = vmatprep.subr.mxu0 0.0
      %2331 = vmatpush1.msra.mxu0 0.0
      %2332 = vmatprep.subr.mxu0 0.0
      %2333 = vmatpush1.msra.mxu0 0.0
      %2334 = vmatprep.subr.mxu0 0.0
      %2335 = vmatpush1.msra.mxu0 0.0
      %2336 = vmatprep.subr.mxu0 0.0
      %2337 = vmatpush1.msra.mxu0 0.0
      %2338 = vmatprep.subr.mxu0 0.0
      %2339 = vmatpush1.msra.mxu0 0.0
      %2340 = vmatprep.subr.mxu0 0.0
      %2341 = vmatpush1.msra.mxu0 0.0
      %2342 = vmatprep.subr.mxu0 0.0
      %2343 = vmatpush1.msra.mxu0 0.0
      %2344 = vmatprep.subr.mxu0 0.0
      %2345 = vmatpush1.msra.mxu0 0.0
      %2346 = vmatprep.subr.mxu0 0.0
      %2347 = vmatpush1.msra.mxu0 0.0
      %2348 = vmatprep.subr.mxu0 0.0
      %2349 = vmatpush1.msra.mxu0 0.0
      %2350 = vmatprep.subr.mxu0 0.0
      %2351 = vmatpush1.msra.mxu0 0.0
      %2352 = vmatprep.subr.mxu0 0.0
      %2353 = vmatpush1.msra.mxu0 0.0
      %2354 = vmatprep.subr.mxu0 0.0
      %2355 = vmatpush1.msra.mxu0 0.0
      %2356 = vmatprep.subr.mxu0 0.0
      %2357 = vmatpush1.msra.mxu0 0.0
      %2358 = vmatprep.subr.mxu0 0.0
      %2359 = vmatpush1.msra.mxu0 0.0
      %2360 = vmatprep.subr.mxu0 0.0
      %2361 = vmatpush1.msra.mxu0 0.0
      %2362 = vmatprep.subr.mxu0 0.0
      %2363 = vmatpush1.msra.mxu0 0.0
      %2364 = vmatprep.subr.mxu0 0.0
      %2365 = vmatpush1.msra.mxu0 0.0
      %2366 = vmatprep.subr.mxu0 0.0
      %2367 = vmatpush1.msra.mxu0 0.0
      %2368 = vmatprep.subr.mxu0 0.0
      %2369 = vmatpush1.msra.mxu0 0.0
      %2370 = vmatprep.mubr.f32.mxu0 0.0
      %2371 = vmatmul.mubr.f32.gmra.mrb[0].mxu0 %v2143
      %v2372 = vpop.f32.mrb[0].mxu0
      %v2373 = vadd.f32 %v2303, %v2372
      %v2374 = vpop.f32.mrb[0].mxu0
      %2375 = vdwg.mxu0
      %v2376 = vld [vmem:[#allocation5] sm:$0x1]
      %v2378 = vlaneseq
      %v2379 = vshrl.u32 %v2378, 7
      %v2380 = vsub.s32 0, %v2379
      %v2381 = vrot.slane %v2376, %v2380
      %v2383 = vadd.f32 %v2373, %v2381
      %v2384 = vsub.f32 0.0, %v2383
      %v2385 = vmul.f32 %v2384, 1.442695
      %v2386 = vpow.pop %v2385
      %v2387 = vadd.f32 %v2386, 1.0
      %v2388 = vrcp.pop %v2387
      %v2389 = vld [vmem:[%s22] sm:$0xff]
      %v2390 = vld [vmem:[%s22 + $0x8] sm:$0xff]
      %v2391 = vld [vmem:[%s22 + $0x10] sm:$0xff]
      %v2392 = vld [vmem:[%s22 + $0x18] sm:$0xff]
      %v2393 = vld [vmem:[%s23] sm:$0x1]
      %v2395 = vlaneseq
      %v2396 = vshrl.u32 %v2395, 7
      %v2397 = vsub.s32 0, %v2396
      %v2398 = vrot.slane %v2393, %v2397
      %2400 = vmatprep.subr.mxu0 0.0
      %2401 = vmatpush1.msra.mxu0 %v2389
      %2402 = vmatprep.subr.mxu0 0.0
      %2403 = vmatpush1.msra.mxu0 %v2390
      %2404 = vmatprep.subr.mxu0 0.0
      %2405 = vmatpush1.msra.mxu0 %v2391
      %2406 = vmatprep.subr.mxu0 0.0
      %2407 = vmatpush1.msra.mxu0 %v2392
      %2408 = vmatprep.subr.mxu0 0.0
      %2409 = vmatpush1.msra.mxu0 0.0
      %2410 = vmatprep.subr.mxu0 0.0
      %2411 = vmatpush1.msra.mxu0 0.0
      %2412 = vmatprep.subr.mxu0 0.0
      %2413 = vmatpush1.msra.mxu0 0.0
      %2414 = vmatprep.subr.mxu0 0.0
      %2415 = vmatpush1.msra.mxu0 0.0
      %2416 = vmatprep.subr.mxu0 0.0
      %2417 = vmatpush1.msra.mxu0 0.0
      %2418 = vmatprep.subr.mxu0 0.0
      %2419 = vmatpush1.msra.mxu0 0.0
      %2420 = vmatprep.subr.mxu0 0.0
      %2421 = vmatpush1.msra.mxu0 0.0
      %2422 = vmatprep.subr.mxu0 0.0
      %2423 = vmatpush1.msra.mxu0 0.0
      %2424 = vmatprep.subr.mxu0 0.0
      %2425 = vmatpush1.msra.mxu0 0.0
      %2426 = vmatprep.subr.mxu0 0.0
      %2427 = vmatpush1.msra.mxu0 0.0
      %2428 = vmatprep.subr.mxu0 0.0
      %2429 = vmatpush1.msra.mxu0 0.0
      %2430 = vmatprep.subr.mxu0 0.0
      %2431 = vmatpush1.msra.mxu0 0.0
      %2432 = vmatprep.subr.mxu0 0.0
      %2433 = vmatpush1.msra.mxu0 0.0
      %2434 = vmatprep.subr.mxu0 0.0
      %2435 = vmatpush1.msra.mxu0 0.0
      %2436 = vmatprep.subr.mxu0 0.0
      %2437 = vmatpush1.msra.mxu0 0.0
      %2438 = vmatprep.subr.mxu0 0.0
      %2439 = vmatpush1.msra.mxu0 0.0
      %2440 = vmatprep.subr.mxu0 0.0
      %2441 = vmatpush1.msra.mxu0 0.0
      %2442 = vmatprep.subr.mxu0 0.0
      %2443 = vmatpush1.msra.mxu0 0.0
      %2444 = vmatprep.subr.mxu0 0.0
      %2445 = vmatpush1.msra.mxu0 0.0
      %2446 = vmatprep.subr.mxu0 0.0
      %2447 = vmatpush1.msra.mxu0 0.0
      %2448 = vmatprep.subr.mxu0 0.0
      %2449 = vmatpush1.msra.mxu0 0.0
      %2450 = vmatprep.subr.mxu0 0.0
      %2451 = vmatpush1.msra.mxu0 0.0
      %2452 = vmatprep.subr.mxu0 0.0
      %2453 = vmatpush1.msra.mxu0 0.0
      %2454 = vmatprep.subr.mxu0 0.0
      %2455 = vmatpush1.msra.mxu0 0.0
      %2456 = vmatprep.subr.mxu0 0.0
      %2457 = vmatpush1.msra.mxu0 0.0
      %2458 = vmatprep.subr.mxu0 0.0
      %2459 = vmatpush1.msra.mxu0 0.0
      %2460 = vmatprep.subr.mxu0 0.0
      %2461 = vmatpush1.msra.mxu0 0.0
      %2462 = vmatprep.subr.mxu0 0.0
      %2463 = vmatpush1.msra.mxu0 0.0
      %2464 = vmatprep.mubr.f32.mxu0 0.0
      %2465 = vmatmul.mubr.f32.gmra.mrb[0].mxu0 %v1209
      %v2466 = vpop.f32.mrb[0].mxu0
      %v2467 = vadd.f32 %v2398, %v2466
      %v2468 = vpop.f32.mrb[0].mxu0
      %2469 = vdwg.mxu0
      %v2470 = vld [vmem:[%s20] sm:$0xff]
      %v2471 = vld [vmem:[%s20 + $0x8] sm:$0xff]
      %v2472 = vld [vmem:[%s20 + $0x10] sm:$0xff]
      %v2473 = vld [vmem:[%s20 + $0x18] sm:$0xff]
      %v2474 = vld [vmem:[%s21] sm:$0x1]
      %v2476 = vlaneseq
      %v2477 = vshrl.u32 %v2476, 7
      %v2478 = vsub.s32 0, %v2477
      %v2479 = vrot.slane %v2474, %v2478
      %2481 = vmatprep.subr.mxu0 0.0
      %2482 = vmatpush1.msra.mxu0 %v2470
      %2483 = vmatprep.subr.mxu0 0.0
      %2484 = vmatpush1.msra.mxu0 %v2471
      %2485 = vmatprep.subr.mxu0 0.0
      %2486 = vmatpush1.msra.mxu0 %v2472
      %2487 = vmatprep.subr.mxu0 0.0
      %2488 = vmatpush1.msra.mxu0 %v2473
      %2489 = vmatprep.subr.mxu0 0.0
      %2490 = vmatpush1.msra.mxu0 0.0
      %2491 = vmatprep.subr.mxu0 0.0
      %2492 = vmatpush1.msra.mxu0 0.0
      %2493 = vmatprep.subr.mxu0 0.0
      %2494 = vmatpush1.msra.mxu0 0.0
      %2495 = vmatprep.subr.mxu0 0.0
      %2496 = vmatpush1.msra.mxu0 0.0
      %2497 = vmatprep.subr.mxu0 0.0
      %2498 = vmatpush1.msra.mxu0 0.0
      %2499 = vmatprep.subr.mxu0 0.0
      %2500 = vmatpush1.msra.mxu0 0.0
      %2501 = vmatprep.subr.mxu0 0.0
      %2502 = vmatpush1.msra.mxu0 0.0
      %2503 = vmatprep.subr.mxu0 0.0
      %2504 = vmatpush1.msra.mxu0 0.0
      %2505 = vmatprep.subr.mxu0 0.0
      %2506 = vmatpush1.msra.mxu0 0.0
      %2507 = vmatprep.subr.mxu0 0.0
      %2508 = vmatpush1.msra.mxu0 0.0
      %2509 = vmatprep.subr.mxu0 0.0
      %2510 = vmatpush1.msra.mxu0 0.0
      %2511 = vmatprep.subr.mxu0 0.0
      %2512 = vmatpush1.msra.mxu0 0.0
      %2513 = vmatprep.subr.mxu0 0.0
      %2514 = vmatpush1.msra.mxu0 0.0
      %2515 = vmatprep.subr.mxu0 0.0
      %2516 = vmatpush1.msra.mxu0 0.0
      %2517 = vmatprep.subr.mxu0 0.0
      %2518 = vmatpush1.msra.mxu0 0.0
      %2519 = vmatprep.subr.mxu0 0.0
      %2520 = vmatpush1.msra.mxu0 0.0
      %2521 = vmatprep.subr.mxu0 0.0
      %2522 = vmatpush1.msra.mxu0 0.0
      %2523 = vmatprep.subr.mxu0 0.0
      %2524 = vmatpush1.msra.mxu0 0.0
      %2525 = vmatprep.subr.mxu0 0.0
      %2526 = vmatpush1.msra.mxu0 0.0
      %2527 = vmatprep.subr.mxu0 0.0
      %2528 = vmatpush1.msra.mxu0 0.0
      %2529 = vmatprep.subr.mxu0 0.0
      %2530 = vmatpush1.msra.mxu0 0.0
      %2531 = vmatprep.subr.mxu0 0.0
      %2532 = vmatpush1.msra.mxu0 0.0
      %2533 = vmatprep.subr.mxu0 0.0
      %2534 = vmatpush1.msra.mxu0 0.0
      %2535 = vmatprep.subr.mxu0 0.0
      %2536 = vmatpush1.msra.mxu0 0.0
      %2537 = vmatprep.subr.mxu0 0.0
      %2538 = vmatpush1.msra.mxu0 0.0
      %2539 = vmatprep.subr.mxu0 0.0
      %2540 = vmatpush1.msra.mxu0 0.0
      %2541 = vmatprep.subr.mxu0 0.0
      %2542 = vmatpush1.msra.mxu0 0.0
      %2543 = vmatprep.subr.mxu0 0.0
      %2544 = vmatpush1.msra.mxu0 0.0
      %2545 = vmatprep.mubr.f32.mxu0 0.0
      %2546 = vmatmul.mubr.f32.gmra.mrb[0].mxu0 %v2143
      %v2547 = vpop.f32.mrb[0].mxu0
      %v2548 = vadd.f32 %v2479, %v2547
      %v2549 = vpop.f32.mrb[0].mxu0
      %2550 = vdwg.mxu0
      %2552 = vset.pattern.permute.xlu0 0
      %2553 = vperm.xlu0 %2552, %v2388
      %v2554 = vpop.permute.xlu0 %2553
      %v2556 = vmul.f32 %v2554, %v2467
      %v2558 = vsel %vm1207, %v2556, 0
      %2560 = vmatprep.subr.mxu0 0.0
      %2561 = vmatpush1.msra.mxu0 %v2389
      %2562 = vmatprep.subr.mxu0 0.0
      %2563 = vmatpush1.msra.mxu0 %v2390
      %2564 = vmatprep.subr.mxu0 0.0
      %2565 = vmatpush1.msra.mxu0 %v2391
      %2566 = vmatprep.subr.mxu0 0.0
      %2567 = vmatpush1.msra.mxu0 %v2392
      %2568 = vmatprep.subr.mxu0 0.0
      %2569 = vmatpush1.msra.mxu0 0.0
      %2570 = vmatprep.subr.mxu0 0.0
      %2571 = vmatpush1.msra.mxu0 0.0
      %2572 = vmatprep.subr.mxu0 0.0
      %2573 = vmatpush1.msra.mxu0 0.0
      %2574 = vmatprep.subr.mxu0 0.0
      %2575 = vmatpush1.msra.mxu0 0.0
      %2576 = vmatprep.subr.mxu0 0.0
      %2577 = vmatpush1.msra.mxu0 0.0
      %2578 = vmatprep.subr.mxu0 0.0
      %2579 = vmatpush1.msra.mxu0 0.0
      %2580 = vmatprep.subr.mxu0 0.0
      %2581 = vmatpush1.msra.mxu0 0.0
      %2582 = vmatprep.subr.mxu0 0.0
      %2583 = vmatpush1.msra.mxu0 0.0
      %2584 = vmatprep.subr.mxu0 0.0
      %2585 = vmatpush1.msra.mxu0 0.0
      %2586 = vmatprep.subr.mxu0 0.0
      %2587 = vmatpush1.msra.mxu0 0.0
      %2588 = vmatprep.subr.mxu0 0.0
      %2589 = vmatpush1.msra.mxu0 0.0
      %2590 = vmatprep.subr.mxu0 0.0
      %2591 = vmatpush1.msra.mxu0 0.0
      %2592 = vmatprep.subr.mxu0 0.0
      %2593 = vmatpush1.msra.mxu0 0.0
      %2594 = vmatprep.subr.mxu0 0.0
      %2595 = vmatpush1.msra.mxu0 0.0
      %2596 = vmatprep.subr.mxu0 0.0
      %2597 = vmatpush1.msra.mxu0 0.0
      %2598 = vmatprep.subr.mxu0 0.0
      %2599 = vmatpush1.msra.mxu0 0.0
      %2600 = vmatprep.subr.mxu0 0.0
      %2601 = vmatpush1.msra.mxu0 0.0
      %2602 = vmatprep.subr.mxu0 0.0
      %2603 = vmatpush1.msra.mxu0 0.0
      %2604 = vmatprep.subr.mxu0 0.0
      %2605 = vmatpush1.msra.mxu0 0.0
      %2606 = vmatprep.subr.mxu0 0.0
      %2607 = vmatpush1.msra.mxu0 0.0
      %2608 = vmatprep.subr.mxu0 0.0
      %2609 = vmatpush1.msra.mxu0 0.0
      %2610 = vmatprep.subr.mxu0 0.0
      %2611 = vmatpush1.msra.mxu0 0.0
      %2612 = vmatprep.subr.mxu0 0.0
      %2613 = vmatpush1.msra.mxu0 0.0
      %2614 = vmatprep.subr.mxu0 0.0
      %2615 = vmatpush1.msra.mxu0 0.0
      %2616 = vmatprep.subr.mxu0 0.0
      %2617 = vmatpush1.msra.mxu0 0.0
      %2618 = vmatprep.subr.mxu0 0.0
      %2619 = vmatpush1.msra.mxu0 0.0
      %2620 = vmatprep.subr.mxu0 0.0
      %2621 = vmatpush1.msra.mxu0 0.0
      %2622 = vmatprep.subr.mxu0 0.0
      %2623 = vmatpush1.msra.mxu0 0.0
      %2624 = vmatprep.mubr.f32.mxu0 0.0
      %2625 = vmatmul.mubr.f32.gmra.mrb[0].mxu0 %v2558
      %v2626 = vpop.f32.mrb[0].mxu0
      %v2627 = vadd.f32 0.0, %v2626
      %v2628 = vpop.f32.mrb[0].mxu0
      %2629 = vdwg.mxu0
      %v2630 = vadd.f32 %v2548, %v2627
      %v2631 = vadd.f32 %v2630, %v2398
      %v2632 = vtanh.pop %v2631
      %v2633 = vsub.f32 1.0, %v2227
      %2635 = vset.pattern.permute.xlu0 0
      %2636 = vperm.xlu0 %2635, %v2633
      %v2637 = vpop.permute.xlu0 %2636
      %v2639 = vmul.f32 %v2637, %v2062
      %2641 = vset.pattern.permute.xlu0 0
      %2642 = vperm.xlu0 %2641, %v2227
      %v2643 = vpop.permute.xlu0 %2642
      %v2645 = vmul.f32 %v2643, %v2632
      %v2646 = vadd.f32 %v2639, %v2645
      %2647 = vst.msk [vmem:[#allocation2] sm:$0xff] %vm1207, %v2646
      %p2648 = scmp.lt.s32.totalorder %s43, 1
      %s2649 = scalar_select %p2648, %s43, 1
      %s2650 = smul.addr %s2649, 8
      %s2651 = scalar_lea.vmem %s24, %s2650
      // Predicated region
      $region121: #{relation_aware_pos_forward.2} parent=115 // pred_check
        %p2652 = pneg %p643
      $region122: #{relation_aware_pos_forward.2} parent=115 // pred_check_branch
        %2654 = sbr.rel (%p2652) target = $region124
      $region123: #{relation_aware_pos_forward.2} parent=115 // pred_region
        _
      $region124: #{relation_aware_pos_forward.2} parent=115 // pred_fallthru
        _
    $region116: #{relation_aware_pos_forward.2} parent=5 // pred_fallthru
      _
    %p2655 = scmp.le.s32.totalorder 2, %s34
    // Predicated region
    $region125: #{relation_aware_pos_forward.2} parent=5 // pred_check
      %p2656 = pneg %p2655
    $region126: #{relation_aware_pos_forward.2} parent=5 // pred_check_branch
      %2658 = sbr.rel (%p2656) target = $region128
    $region127: #{relation_aware_pos_forward.2} parent=5 // pred_region
      %s2659 = ssub.s32 %s34, 2
      // Predicated region
      $region129: #{relation_aware_pos_forward.2} parent=127 // pred_check
        %p2660 = pneg %p649
      $region130: #{relation_aware_pos_forward.2} parent=127 // pred_check_branch
        %2662 = sbr.rel (%p2660) target = $region132
      $region131: #{relation_aware_pos_forward.2} parent=127 // pred_region
        %p2663 = scmp.lt.s32.totalorder %s45, 1
        %s2664 = scalar_select %p2663, %s45, 1
        %s2665 = smul.addr %s2664, 8
        %s2666 = scalar_lea.vmem %s24, %s2665
      $region132: #{relation_aware_pos_forward.2} parent=127 // pred_fallthru
        _
    $region128: #{relation_aware_pos_forward.2} parent=5 // pred_fallthru
      _
  $region6: #{relation_aware_pos_forward.2} parent=0 // loop_footer
    %s38 = sadd.s32 1, %s34
  $region7: #{relation_aware_pos_forward.2} parent=0 // loop_footer_branch
    %33 = sbr.rel target = $region3
  $region8: #{relation_aware_pos_forward.2} parent=0 // loop_exit
    _

</llo_original>
